<compile_context>
chip_gen: v7x
topology: tpu7x:2x2x1
jax: 0.10.0
libtpu: 0.0.40
codegen_flags: <defaults>
</compile_context>

<pallas_src>
import functools
import math

import jax
import jax.numpy as jnp
from jax.experimental import pallas as pl
from jax.experimental.pallas import tpu as pltpu

N_PAD = 128  # lane-dense padded width for the classifier output


# ------------------------------ in-kernel helpers ---------------------------

def _layernorm(x, g, b, eps):
    """LayerNorm with statistics in f32."""
    mean = jnp.mean(x, axis=-1, keepdims=True)
    xc = x - mean
    var = jnp.mean(xc * xc, axis=-1, keepdims=True)
    return (xc * jax.lax.rsqrt(var + eps)) * g + b


def _bf16_dot(a, b_ref, bias):
    """bf16 MXU matmul with f32 accumulation, plus f32 bias."""
    return jnp.dot(a.astype(jnp.bfloat16), b_ref[...],
                   preferred_element_type=jnp.float32) + bias


# --------------------- fully fused Net forward kernel -----------------------

def _net_kernel(x_ref, mask_ref, eg_ref, eb_ref,
                qkv_w_ref, qkv_b_ref, o_w_ref, o_b_ref,
                ag_ref, ab_ref, f1w_ref, f1b_ref, f2w_ref, f2b_ref,
                fg_ref, fb_ref, pw_ref, pb_ref, cw_ref, cb_ref,
                logits_ref, act_ref, *, B, S, nh, hd, eps):
    """One encoder layer per grid step; activation resident in act_ref.

    On the last grid step the pooler (tanh dense on the CLS rows) and the
    classifier are applied and the lane-dense (B, N_PAD) logits are written.
    """
    H = nh * hd
    scale = 1.0 / math.sqrt(hd)
    layer = pl.program_id(0)

    # Layer 0: embedding LayerNorm seeds the resident activation (VMEM
    # scratch persists across the whole layer grid -> no HBM round-trips).
    @pl.when(layer == 0)
    def _():
        act_ref[...] = _layernorm(x_ref[...], eg_ref[...], eb_ref[...], eps)
        logits_ref[...] = jnp.zeros_like(logits_ref)

    x = act_ref[...]                                       # (B*S, H) f32

    # Fused QKV projection: one MXU pass instead of three.
    qkv = _bf16_dot(x, qkv_w_ref, qkv_b_ref[...])          # (B*S, 3H) f32

    # Multi-head self-attention; head split/merge done in-kernel with static
    # slices.  B*nh is tiny here, so the loops are fully unrolled.
    ctx_rows = []
    for b in range(B):
        r0 = b * S
        bias_b = mask_ref[b:b + 1, :]                      # (1, S) additive mask
        ctx_heads = []
        for h in range(nh):
            c0 = h * hd
            q = qkv[r0:r0 + S, c0:c0 + hd]
            k = qkv[r0:r0 + S, H + c0:H + c0 + hd]
            v = qkv[r0:r0 + S, 2 * H + c0:2 * H + c0 + hd]
            s = jnp.dot(q.astype(jnp.bfloat16), k.T.astype(jnp.bfloat16),
                        preferred_element_type=jnp.float32) * scale + bias_b
            m = jnp.max(s, axis=-1, keepdims=True)         # softmax in f32
            p = jnp.exp(s - m)
            p = p * pl.reciprocal(jnp.sum(p, axis=-1, keepdims=True), approx=True)
            ctx_heads.append(
                jnp.dot(p.astype(jnp.bfloat16), v.astype(jnp.bfloat16),
                        preferred_element_type=jnp.float32))
        ctx_rows.append(jnp.concatenate(ctx_heads, axis=1))
    ctx = jnp.concatenate(ctx_rows, axis=0)                # (B*S, H)

    # Attention output projection + residual + LayerNorm.
    attn_out = _bf16_dot(ctx, o_w_ref, o_b_ref[...])
    x1 = _layernorm(attn_out + x, ag_ref[...], ab_ref[...], eps)

    # Feed-forward (tanh-approx GELU) + residual + LayerNorm.
    h1 = jax.nn.gelu(_bf16_dot(x1, f1w_ref, f1b_ref[...]), approximate=True)
    ff = _bf16_dot(h1, f2w_ref, f2b_ref[...])
    act_ref[...] = _layernorm(ff + x1, fg_ref[...], fb_ref[...], eps)

    # Final layer: pooler (tanh dense on CLS rows) + classifier, fused.
    @pl.when(layer == pl.num_programs(0) - 1)
    def _():
        seq = act_ref[...]
        cls = jnp.concatenate([seq[b * S:b * S + 1, :] for b in range(B)], axis=0)
        pooled = jnp.tanh(_bf16_dot(cls, pw_ref, pb_ref[...]))
        # nn.Dropout(p=0.3) is the identity in eval mode.
        # TODO(synk): training-mode dropout (PyTorch RNG stream) is not reproduced.
        logits_ref[...] = _bf16_dot(pooled, cw_ref, cb_ref[...])  # (B, N_PAD)


# ------------------------- parameter construction ---------------------------

def init_params(key, cfg):
    H, F, L = cfg["hidden"], cfg["ffn"], cfg["layers"]
    V, P, C = cfg["vocab"], cfg["max_pos"], cfg["n_classes"]
    bf = jnp.bfloat16

    def nrm(k, shape, dtype=jnp.float32, scale=0.02):
        return (scale * jax.random.normal(k, shape)).astype(dtype)

    keys = iter(jax.random.split(key, 16))
    params = {
        "word_emb": nrm(next(keys), (V, H)),
        "pos_emb": nrm(next(keys), (P, H)),
        "type_emb": nrm(next(keys), (1, H)),
        "emb_ln_g": jnp.ones((1, H), jnp.float32),
        "emb_ln_b": jnp.zeros((1, H), jnp.float32),
        # Per-layer weights stacked along a leading layer axis; the kernel
        # indexes them via the layer grid axis.  MXU weights in bf16, biases /
        # LN params in f32 and pre-shaped (1, N) (no in-kernel reshape).
        "qkv_w": nrm(next(keys), (L, H, 3 * H), bf),      # fused Q|K|V
        "qkv_b": jnp.zeros((L, 1, 3 * H), jnp.float32),
        "o_w": nrm(next(keys), (L, H, H), bf),
        "o_b": jnp.zeros((L, 1, H), jnp.float32),
        "attn_ln_g": jnp.ones((L, 1, H), jnp.float32),
        "attn_ln_b": jnp.zeros((L, 1, H), jnp.float32),
        "ff1_w": nrm(next(keys), (L, H, F), bf),
        "ff1_b": jnp.zeros((L, 1, F), jnp.float32),
        "ff2_w": nrm(next(keys), (L, F, H), bf),
        "ff2_b": jnp.zeros((L, 1, H), jnp.float32),
        "ff_ln_g": jnp.ones((L, 1, H), jnp.float32),
        "ff_ln_b": jnp.zeros((L, 1, H), jnp.float32),
        "pool_w": nrm(next(keys), (H, H), bf),
        "pool_b": jnp.zeros((1, H), jnp.float32),
    }
    # Classifier padded to a lane-dense 128-wide output slab (sliced outside).
    cls_w = nrm(next(keys), (H, C))
    params["cls_w_pad"] = jnp.zeros((H, N_PAD), bf).at[:, :C].set(cls_w.astype(bf))
    params["cls_b_pad"] = jnp.zeros((1, N_PAD), jnp.float32)
    return params


# ------------------------------ model forward --------------------------------

def net_forward(params, input_ids, attention_mask, cfg):
    B, S = input_ids.shape
    H, nh, F, L = cfg["hidden"], cfg["heads"], cfg["ffn"], cfg["layers"]
    hd = H // nh
    M = B * S

    # RoBERTa position ids: padded positions receive the pad position id.
    mask_i = attention_mask.astype(jnp.int32)
    positions = jnp.cumsum(mask_i, axis=1) * mask_i + cfg["pad_token_id"]

    # Embedding gathers stay as plain-JAX glue.
    emb = (params["word_emb"][input_ids]
           + params["pos_emb"][positions]
           + params["type_emb"][0][None, None, :]).reshape(M, H).astype(jnp.float32)

    # Additive attention-mask bias, applied in f32 before softmax.
    mask_bias = (1.0 - attention_mask.astype(jnp.float32)) * -1e9       # (B, S)

    const2 = lambda l: (0, 0)
    lyr3 = lambda l: (l, 0, 0)

    grid_spec = pltpu.PrefetchScalarGridSpec(
        num_scalar_prefetch=0,
        grid=(L,),
        in_specs=[
            pl.BlockSpec((M, H), const2),             # embeddings (pre-LN)
            pl.BlockSpec((B, S), const2),             # additive mask bias
            pl.BlockSpec((1, H), const2),             # emb LN gamma
            pl.BlockSpec((1, H), const2),             # emb LN beta
            pl.BlockSpec((None, H, 3 * H), lyr3),     # qkv_w  (layer-sliced)
            pl.BlockSpec((None, 1, 3 * H), lyr3),     # qkv_b
            pl.BlockSpec((None, H, H), lyr3),         # o_w
            pl.BlockSpec((None, 1, H), lyr3),         # o_b
            pl.BlockSpec((None, 1, H), lyr3),         # attn LN gamma
            pl.BlockSpec((None, 1, H), lyr3),         # attn LN beta
            pl.BlockSpec((None, H, F), lyr3),         # ff1_w
            pl.BlockSpec((None, 1, F), lyr3),         # ff1_b
            pl.BlockSpec((None, F, H), lyr3),         # ff2_w
            pl.BlockSpec((None, 1, H), lyr3),         # ff2_b
            pl.BlockSpec((None, 1, H), lyr3),         # ff LN gamma
            pl.BlockSpec((None, 1, H), lyr3),         # ff LN beta
            pl.BlockSpec((H, H), const2),             # pooler weight
            pl.BlockSpec((1, H), const2),             # pooler bias
            pl.BlockSpec((H, N_PAD), const2),         # classifier weight (padded)
            pl.BlockSpec((1, N_PAD), const2),         # classifier bias (padded)
        ],
        out_specs=pl.BlockSpec((B, N_PAD), const2),   # lane-dense logits slab
        scratch_shapes=[pltpu.VMEM((M, H), jnp.float32)],   # resident activation
    )

    logits_pad = pl.pallas_call(
        functools.partial(_net_kernel, B=B, S=S, nh=nh, hd=hd, eps=1e-5),
        out_shape=jax.ShapeDtypeStruct((B, N_PAD), jnp.float32),
        grid_spec=grid_spec,
        compiler_params=pltpu.CompilerParams(
            dimension_semantics=("arbitrary",)),      # layers are sequential
    )(emb, mask_bias,
      params["emb_ln_g"], params["emb_ln_b"],
      params["qkv_w"], params["qkv_b"],
      params["o_w"], params["o_b"],
      params["attn_ln_g"], params["attn_ln_b"],
      params["ff1_w"], params["ff1_b"],
      params["ff2_w"], params["ff2_b"],
      params["ff_ln_g"], params["ff_ln_b"],
      params["pool_w"], params["pool_b"],
      params["cls_w_pad"], params["cls_b_pad"])

    return logits_pad[:, :cfg["n_classes"]]


# ----------------------------------- main ------------------------------------

if __name__ == "__main__":
    cfg = dict(hidden=32, heads=4, layers=2, ffn=64,
               vocab=100, max_pos=64, pad_token_id=1, n_classes=3)

    key = jax.random.PRNGKey(0)
    k_param, k_ids = jax.random.split(key)
    params = init_params(k_param, cfg)

    B, S = 2, 8
    input_ids = jax.random.randint(k_ids, (B, S), 0, cfg["vocab"], dtype=jnp.int32)
    attention_mask = jnp.array([[1, 1, 1, 1, 1, 1, 1, 1],
                                [1, 1, 1, 1, 1, 1, 0, 0]], dtype=jnp.int32)

    fwd = jax.jit(functools.partial(net_forward, cfg=cfg))
    logits = fwd(params, input_ids, attention_mask)
    jax.block_until_ready(logits)
    assert logits.shape == (B, cfg["n_classes"])
    assert bool(jnp.all(jnp.isfinite(logits)))
    print("KERNEL_OK")
</pallas_src>

<mosaic_0001>
module attributes {stable_mosaic.version = 11 : i64} {
  func.func @_net_kernel(%arg0: i32, %arg1: memref<16x32xf32, #tpu.memory_space<vmem>>, %arg2: memref<2x8xf32, #tpu.memory_space<vmem>>, %arg3: memref<1x32xf32, #tpu.memory_space<vmem>>, %arg4: memref<1x32xf32, #tpu.memory_space<vmem>>, %arg5: memref<1x32x96xbf16, #tpu.memory_space<vmem>>, %arg6: memref<1x1x96xf32, #tpu.memory_space<vmem>>, %arg7: memref<1x32x32xbf16, #tpu.memory_space<vmem>>, %arg8: memref<1x1x32xf32, #tpu.memory_space<vmem>>, %arg9: memref<1x1x32xf32, #tpu.memory_space<vmem>>, %arg10: memref<1x1x32xf32, #tpu.memory_space<vmem>>, %arg11: memref<1x32x64xbf16, #tpu.memory_space<vmem>>, %arg12: memref<1x1x64xf32, #tpu.memory_space<vmem>>, %arg13: memref<1x64x32xbf16, #tpu.memory_space<vmem>>, %arg14: memref<1x1x32xf32, #tpu.memory_space<vmem>>, %arg15: memref<1x1x32xf32, #tpu.memory_space<vmem>>, %arg16: memref<1x1x32xf32, #tpu.memory_space<vmem>>, %arg17: memref<32x32xbf16, #tpu.memory_space<vmem>>, %arg18: memref<1x32xf32, #tpu.memory_space<vmem>>, %arg19: memref<32x128xbf16, #tpu.memory_space<vmem>>, %arg20: memref<1x128xf32, #tpu.memory_space<vmem>>, %arg21: memref<2x128xf32, #tpu.memory_space<vmem>>, %arg22: memref<16x32xf32, #tpu.memory_space<vmem>>) attributes {dimension_semantics = [#tpu.dimension_semantics<arbitrary>], iteration_bounds = array<i64: 2>, scalar_prefetch = 0 : i64, scratch_operands = 1 : i64, tpu.core_type = #tpu.core_type<tc>, window_params = [{pipeline_mode = #tpu.pipeline_mode<synchronous>, transform_indices = @transform_0, window_bounds = array<i64: 16, 32>}, {pipeline_mode = #tpu.pipeline_mode<synchronous>, transform_indices = @transform_1, window_bounds = array<i64: 2, 8>}, {pipeline_mode = #tpu.pipeline_mode<synchronous>, transform_indices = @transform_2, window_bounds = array<i64: 1, 32>}, {pipeline_mode = #tpu.pipeline_mode<synchronous>, transform_indices = @transform_3, window_bounds = array<i64: 1, 32>}, {transform_indices = @transform_4, window_bounds = array<i64: 1, 32, 96>}, {transform_indices = @transform_5, window_bounds = array<i64: 1, 1, 96>}, {transform_indices = @transform_6, window_bounds = array<i64: 1, 32, 32>}, {transform_indices = @transform_7, window_bounds = array<i64: 1, 1, 32>}, {transform_indices = @transform_8, window_bounds = array<i64: 1, 1, 32>}, {transform_indices = @transform_9, window_bounds = array<i64: 1, 1, 32>}, {transform_indices = @transform_10, window_bounds = array<i64: 1, 32, 64>}, {transform_indices = @transform_11, window_bounds = array<i64: 1, 1, 64>}, {transform_indices = @transform_12, window_bounds = array<i64: 1, 64, 32>}, {transform_indices = @transform_13, window_bounds = array<i64: 1, 1, 32>}, {transform_indices = @transform_14, window_bounds = array<i64: 1, 1, 32>}, {transform_indices = @transform_15, window_bounds = array<i64: 1, 1, 32>}, {pipeline_mode = #tpu.pipeline_mode<synchronous>, transform_indices = @transform_16, window_bounds = array<i64: 32, 32>}, {pipeline_mode = #tpu.pipeline_mode<synchronous>, transform_indices = @transform_17, window_bounds = array<i64: 1, 32>}, {pipeline_mode = #tpu.pipeline_mode<synchronous>, transform_indices = @transform_18, window_bounds = array<i64: 32, 128>}, {pipeline_mode = #tpu.pipeline_mode<synchronous>, transform_indices = @transform_19, window_bounds = array<i64: 1, 128>}, {pipeline_mode = #tpu.pipeline_mode<synchronous>, transform_indices = @transform_20, window_bounds = array<i64: 2, 128>}]} {
    %c0_i32 = arith.constant 0 : i32
    %0 = arith.cmpi eq, %arg0, %c0_i32 : i32
    %1 = arith.extui %0 : i1 to i32
    %c0_i32_0 = arith.constant 0 : i32
    %2 = arith.cmpi ne, %1, %c0_i32_0 : i32
    scf.if %2 {
      %c0_101 = arith.constant 0 : index
      %c0_102 = arith.constant 0 : index
      %300 = vector.load %arg1[%c0_101, %c0_102] : memref<16x32xf32, #tpu.memory_space<vmem>>, vector<16x32xf32>
      %c0_103 = arith.constant 0 : index
      %c0_104 = arith.constant 0 : index
      %301 = vector.load %arg3[%c0_103, %c0_104] : memref<1x32xf32, #tpu.memory_space<vmem>>, vector<1x32xf32>
      %c0_105 = arith.constant 0 : index
      %c0_106 = arith.constant 0 : index
      %302 = vector.load %arg4[%c0_105, %c0_106] : memref<1x32xf32, #tpu.memory_space<vmem>>, vector<1x32xf32>
      %cst_107 = arith.constant dense<0.000000e+00> : vector<16xf32>
      %303 = vector.multi_reduction <add>, %300, %cst_107 [1] : vector<16x32xf32> to vector<16xf32>
      %304 = vector.shape_cast %303 : vector<16xf32> to vector<16x1xf32>
      %cst_108 = arith.constant 3.200000e+01 : f32
      %305 = vector.broadcast %cst_108 : f32 to vector<16x1xf32>
      %306 = arith.divf %304, %305 : vector<16x1xf32>
      %307 = vector.broadcast %306 : vector<16x1xf32> to vector<16x32xf32>
      %308 = arith.subf %300, %307 : vector<16x32xf32>
      %309 = arith.mulf %308, %308 : vector<16x32xf32>
      %cst_109 = arith.constant dense<0.000000e+00> : vector<16xf32>
      %310 = vector.multi_reduction <add>, %309, %cst_109 [1] : vector<16x32xf32> to vector<16xf32>
      %311 = vector.shape_cast %310 : vector<16xf32> to vector<16x1xf32>
      %cst_110 = arith.constant 3.200000e+01 : f32
      %312 = vector.broadcast %cst_110 : f32 to vector<16x1xf32>
      %313 = arith.divf %311, %312 : vector<16x1xf32>
      %cst_111 = arith.constant 9.99999974E-6 : f32
      %314 = vector.broadcast %cst_111 : f32 to vector<16x1xf32>
      %315 = arith.addf %313, %314 : vector<16x1xf32>
      %316 = math.rsqrt %315 : vector<16x1xf32>
      %317 = vector.broadcast %316 : vector<16x1xf32> to vector<16x32xf32>
      %318 = arith.mulf %308, %317 : vector<16x32xf32>
      %319 = vector.broadcast %301 : vector<1x32xf32> to vector<16x32xf32>
      %320 = arith.mulf %318, %319 : vector<16x32xf32>
      %321 = vector.broadcast %302 : vector<1x32xf32> to vector<16x32xf32>
      %322 = arith.addf %320, %321 : vector<16x32xf32>
      %c0_112 = arith.constant 0 : index
      %c0_113 = arith.constant 0 : index
      %323 = vector.load %arg22[%c0_112, %c0_113] : memref<16x32xf32, #tpu.memory_space<vmem>>, vector<16x32xf32>
      tpu.vector_store %arg22[%c0_112, %c0_113], %322 {strides = array<i32>} : memref<16x32xf32, #tpu.memory_space<vmem>>, vector<16x32xf32>,
      %cst_114 = arith.constant 0.000000e+00 : f32
      %324 = vector.broadcast %cst_114 : f32 to vector<2x128xf32>
      %c0_115 = arith.constant 0 : index
      %c0_116 = arith.constant 0 : index
      %325 = vector.load %arg21[%c0_115, %c0_116] : memref<2x128xf32, #tpu.memory_space<vmem>>, vector<2x128xf32>
      tpu.vector_store %arg21[%c0_115, %c0_116], %324 {strides = array<i32>} : memref<2x128xf32, #tpu.memory_space<vmem>>, vector<2x128xf32>,
    } else {
    }
    %c0 = arith.constant 0 : index
    %c0_1 = arith.constant 0 : index
    %3 = vector.load %arg22[%c0, %c0_1] : memref<16x32xf32, #tpu.memory_space<vmem>>, vector<16x32xf32>
    %c0_2 = arith.constant 0 : index
    %c0_3 = arith.constant 0 : index
    %c0_4 = arith.constant 0 : index
    %4 = vector.load %arg6[%c0_2, %c0_3, %c0_4] : memref<1x1x96xf32, #tpu.memory_space<vmem>>, vector<1x1x96xf32>
    %5 = vector.shape_cast %4 : vector<1x1x96xf32> to vector<1x96xf32>
    %6 = arith.truncf %3 : vector<16x32xf32> to vector<16x32xbf16>
    %c0_5 = arith.constant 0 : index
    %c0_6 = arith.constant 0 : index
    %c0_7 = arith.constant 0 : index
    %7 = vector.load %arg5[%c0_5, %c0_6, %c0_7] : memref<1x32x96xbf16, #tpu.memory_space<vmem>>, vector<1x32x96xbf16>
    %8 = vector.shape_cast %7 : vector<1x32x96xbf16> to vector<32x96xbf16>
    %cst = arith.constant dense<0.000000e+00> : vector<16x96xf32>
    %9 = tpu.matmul %6, %8, %cst {dimension_numbers = #tpu.dot_dimension_numbers<[1], [0], [0], [1], [0, 0, 1, 1], [], []>} : vector<16x32xbf16>, vector<32x96xbf16>, vector<16x96xf32> -> vector<16x96xf32>
    %10 = vector.broadcast %5 : vector<1x96xf32> to vector<16x96xf32>
    %11 = arith.addf %9, %10 : vector<16x96xf32>
    %c0_8 = arith.constant 0 : index
    %c0_9 = arith.constant 0 : index
    %12 = vector.load %arg2[%c0_8, %c0_9] : memref<2x8xf32, #tpu.memory_space<vmem>>, vector<1x8xf32>
    %13 = vector.extract_strided_slice %11 {offsets = [0, 0], sizes = [8, 8], strides = [1, 1]} : vector<16x96xf32> to vector<8x8xf32>
    %14 = vector.extract_strided_slice %11 {offsets = [0, 32], sizes = [8, 8], strides = [1, 1]} : vector<16x96xf32> to vector<8x8xf32>
    %15 = vector.extract_strided_slice %11 {offsets = [0, 64], sizes = [8, 8], strides = [1, 1]} : vector<16x96xf32> to vector<8x8xf32>
    %16 = arith.truncf %13 : vector<8x8xf32> to vector<8x8xbf16>
    %17 = tpu.transpose %14, [1, 0] : vector<8x8xf32> -> vector<8x8xf32>
    %18 = arith.truncf %17 : vector<8x8xf32> to vector<8x8xbf16>
    %cst_10 = arith.constant dense<0.000000e+00> : vector<8x8xf32>
    %19 = tpu.matmul %16, %18, %cst_10 {dimension_numbers = #tpu.dot_dimension_numbers<[1], [0], [0], [1], [0, 0, 1, 1], [], []>} : vector<8x8xbf16>, vector<8x8xbf16>, vector<8x8xf32> -> vector<8x8xf32>
    %cst_11 = arith.constant 0.353553385 : f32
    %20 = vector.broadcast %cst_11 : f32 to vector<8x8xf32>
    %21 = arith.mulf %19, %20 : vector<8x8xf32>
    %22 = vector.broadcast %12 : vector<1x8xf32> to vector<8x8xf32>
    %23 = arith.addf %21, %22 : vector<8x8xf32>
    %cst_12 = arith.constant dense<0xFF800000> : vector<8xf32>
    %24 = vector.multi_reduction <maximumf>, %23, %cst_12 [1] : vector<8x8xf32> to vector<8xf32>
    %25 = vector.shape_cast %24 : vector<8xf32> to vector<8x1xf32>
    %26 = vector.broadcast %25 : vector<8x1xf32> to vector<8x8xf32>
    %27 = arith.subf %23, %26 : vector<8x8xf32>
    %28 = math.exp %27 : vector<8x8xf32>
    %cst_13 = arith.constant dense<0.000000e+00> : vector<8xf32>
    %29 = vector.multi_reduction <add>, %28, %cst_13 [1] : vector<8x8xf32> to vector<8xf32>
    %30 = vector.shape_cast %29 : vector<8xf32> to vector<8x1xf32>
    %31 = tpu.reciprocal %30 {approx = true} : vector<8x1xf32> -> vector<8x1xf32>
    %32 = vector.broadcast %31 : vector<8x1xf32> to vector<8x8xf32>
    %33 = arith.mulf %28, %32 : vector<8x8xf32>
    %34 = arith.truncf %33 : vector<8x8xf32> to vector<8x8xbf16>
    %35 = arith.truncf %15 : vector<8x8xf32> to vector<8x8xbf16>
    %cst_14 = arith.constant dense<0.000000e+00> : vector<8x8xf32>
    %36 = tpu.matmul %34, %35, %cst_14 {dimension_numbers = #tpu.dot_dimension_numbers<[1], [0], [0], [1], [0, 0, 1, 1], [], []>} : vector<8x8xbf16>, vector<8x8xbf16>, vector<8x8xf32> -> vector<8x8xf32>
    %37 = vector.extract_strided_slice %11 {offsets = [0, 8], sizes = [8, 8], strides = [1, 1]} : vector<16x96xf32> to vector<8x8xf32>
    %38 = vector.extract_strided_slice %11 {offsets = [0, 40], sizes = [8, 8], strides = [1, 1]} : vector<16x96xf32> to vector<8x8xf32>
    %39 = vector.extract_strided_slice %11 {offsets = [0, 72], sizes = [8, 8], strides = [1, 1]} : vector<16x96xf32> to vector<8x8xf32>
    %40 = arith.truncf %37 : vector<8x8xf32> to vector<8x8xbf16>
    %41 = tpu.transpose %38, [1, 0] : vector<8x8xf32> -> vector<8x8xf32>
    %42 = arith.truncf %41 : vector<8x8xf32> to vector<8x8xbf16>
    %cst_15 = arith.constant dense<0.000000e+00> : vector<8x8xf32>
    %43 = tpu.matmul %40, %42, %cst_15 {dimension_numbers = #tpu.dot_dimension_numbers<[1], [0], [0], [1], [0, 0, 1, 1], [], []>} : vector<8x8xbf16>, vector<8x8xbf16>, vector<8x8xf32> -> vector<8x8xf32>
    %cst_16 = arith.constant 0.353553385 : f32
    %44 = vector.broadcast %cst_16 : f32 to vector<8x8xf32>
    %45 = arith.mulf %43, %44 : vector<8x8xf32>
    %46 = vector.broadcast %12 : vector<1x8xf32> to vector<8x8xf32>
    %47 = arith.addf %45, %46 : vector<8x8xf32>
    %cst_17 = arith.constant dense<0xFF800000> : vector<8xf32>
    %48 = vector.multi_reduction <maximumf>, %47, %cst_17 [1] : vector<8x8xf32> to vector<8xf32>
    %49 = vector.shape_cast %48 : vector<8xf32> to vector<8x1xf32>
    %50 = vector.broadcast %49 : vector<8x1xf32> to vector<8x8xf32>
    %51 = arith.subf %47, %50 : vector<8x8xf32>
    %52 = math.exp %51 : vector<8x8xf32>
    %cst_18 = arith.constant dense<0.000000e+00> : vector<8xf32>
    %53 = vector.multi_reduction <add>, %52, %cst_18 [1] : vector<8x8xf32> to vector<8xf32>
    %54 = vector.shape_cast %53 : vector<8xf32> to vector<8x1xf32>
    %55 = tpu.reciprocal %54 {approx = true} : vector<8x1xf32> -> vector<8x1xf32>
    %56 = vector.broadcast %55 : vector<8x1xf32> to vector<8x8xf32>
    %57 = arith.mulf %52, %56 : vector<8x8xf32>
    %58 = arith.truncf %57 : vector<8x8xf32> to vector<8x8xbf16>
    %59 = arith.truncf %39 : vector<8x8xf32> to vector<8x8xbf16>
    %cst_19 = arith.constant dense<0.000000e+00> : vector<8x8xf32>
    %60 = tpu.matmul %58, %59, %cst_19 {dimension_numbers = #tpu.dot_dimension_numbers<[1], [0], [0], [1], [0, 0, 1, 1], [], []>} : vector<8x8xbf16>, vector<8x8xbf16>, vector<8x8xf32> -> vector<8x8xf32>
    %61 = vector.extract_strided_slice %11 {offsets = [0, 16], sizes = [8, 8], strides = [1, 1]} : vector<16x96xf32> to vector<8x8xf32>
    %62 = vector.extract_strided_slice %11 {offsets = [0, 48], sizes = [8, 8], strides = [1, 1]} : vector<16x96xf32> to vector<8x8xf32>
    %63 = vector.extract_strided_slice %11 {offsets = [0, 80], sizes = [8, 8], strides = [1, 1]} : vector<16x96xf32> to vector<8x8xf32>
    %64 = arith.truncf %61 : vector<8x8xf32> to vector<8x8xbf16>
    %65 = tpu.transpose %62, [1, 0] : vector<8x8xf32> -> vector<8x8xf32>
    %66 = arith.truncf %65 : vector<8x8xf32> to vector<8x8xbf16>
    %cst_20 = arith.constant dense<0.000000e+00> : vector<8x8xf32>
    %67 = tpu.matmul %64, %66, %cst_20 {dimension_numbers = #tpu.dot_dimension_numbers<[1], [0], [0], [1], [0, 0, 1, 1], [], []>} : vector<8x8xbf16>, vector<8x8xbf16>, vector<8x8xf32> -> vector<8x8xf32>
    %cst_21 = arith.constant 0.353553385 : f32
    %68 = vector.broadcast %cst_21 : f32 to vector<8x8xf32>
    %69 = arith.mulf %67, %68 : vector<8x8xf32>
    %70 = vector.broadcast %12 : vector<1x8xf32> to vector<8x8xf32>
    %71 = arith.addf %69, %70 : vector<8x8xf32>
    %cst_22 = arith.constant dense<0xFF800000> : vector<8xf32>
    %72 = vector.multi_reduction <maximumf>, %71, %cst_22 [1] : vector<8x8xf32> to vector<8xf32>
    %73 = vector.shape_cast %72 : vector<8xf32> to vector<8x1xf32>
    %74 = vector.broadcast %73 : vector<8x1xf32> to vector<8x8xf32>
    %75 = arith.subf %71, %74 : vector<8x8xf32>
    %76 = math.exp %75 : vector<8x8xf32>
    %cst_23 = arith.constant dense<0.000000e+00> : vector<8xf32>
    %77 = vector.multi_reduction <add>, %76, %cst_23 [1] : vector<8x8xf32> to vector<8xf32>
    %78 = vector.shape_cast %77 : vector<8xf32> to vector<8x1xf32>
    %79 = tpu.reciprocal %78 {approx = true} : vector<8x1xf32> -> vector<8x1xf32>
    %80 = vector.broadcast %79 : vector<8x1xf32> to vector<8x8xf32>
    %81 = arith.mulf %76, %80 : vector<8x8xf32>
    %82 = arith.truncf %81 : vector<8x8xf32> to vector<8x8xbf16>
    %83 = arith.truncf %63 : vector<8x8xf32> to vector<8x8xbf16>
    %cst_24 = arith.constant dense<0.000000e+00> : vector<8x8xf32>
    %84 = tpu.matmul %82, %83, %cst_24 {dimension_numbers = #tpu.dot_dimension_numbers<[1], [0], [0], [1], [0, 0, 1, 1], [], []>} : vector<8x8xbf16>, vector<8x8xbf16>, vector<8x8xf32> -> vector<8x8xf32>
    %85 = vector.extract_strided_slice %11 {offsets = [0, 24], sizes = [8, 8], strides = [1, 1]} : vector<16x96xf32> to vector<8x8xf32>
    %86 = vector.extract_strided_slice %11 {offsets = [0, 56], sizes = [8, 8], strides = [1, 1]} : vector<16x96xf32> to vector<8x8xf32>
    %87 = vector.extract_strided_slice %11 {offsets = [0, 88], sizes = [8, 8], strides = [1, 1]} : vector<16x96xf32> to vector<8x8xf32>
    %88 = arith.truncf %85 : vector<8x8xf32> to vector<8x8xbf16>
    %89 = tpu.transpose %86, [1, 0] : vector<8x8xf32> -> vector<8x8xf32>
    %90 = arith.truncf %89 : vector<8x8xf32> to vector<8x8xbf16>
    %cst_25 = arith.constant dense<0.000000e+00> : vector<8x8xf32>
    %91 = tpu.matmul %88, %90, %cst_25 {dimension_numbers = #tpu.dot_dimension_numbers<[1], [0], [0], [1], [0, 0, 1, 1], [], []>} : vector<8x8xbf16>, vector<8x8xbf16>, vector<8x8xf32> -> vector<8x8xf32>
    %cst_26 = arith.constant 0.353553385 : f32
    %92 = vector.broadcast %cst_26 : f32 to vector<8x8xf32>
    %93 = arith.mulf %91, %92 : vector<8x8xf32>
    %94 = vector.broadcast %12 : vector<1x8xf32> to vector<8x8xf32>
    %95 = arith.addf %93, %94 : vector<8x8xf32>
    %cst_27 = arith.constant dense<0xFF800000> : vector<8xf32>
    %96 = vector.multi_reduction <maximumf>, %95, %cst_27 [1] : vector<8x8xf32> to vector<8xf32>
    %97 = vector.shape_cast %96 : vector<8xf32> to vector<8x1xf32>
    %98 = vector.broadcast %97 : vector<8x1xf32> to vector<8x8xf32>
    %99 = arith.subf %95, %98 : vector<8x8xf32>
    %100 = math.exp %99 : vector<8x8xf32>
    %cst_28 = arith.constant dense<0.000000e+00> : vector<8xf32>
    %101 = vector.multi_reduction <add>, %100, %cst_28 [1] : vector<8x8xf32> to vector<8xf32>
    %102 = vector.shape_cast %101 : vector<8xf32> to vector<8x1xf32>
    %103 = tpu.reciprocal %102 {approx = true} : vector<8x1xf32> -> vector<8x1xf32>
    %104 = vector.broadcast %103 : vector<8x1xf32> to vector<8x8xf32>
    %105 = arith.mulf %100, %104 : vector<8x8xf32>
    %106 = arith.truncf %105 : vector<8x8xf32> to vector<8x8xbf16>
    %107 = arith.truncf %87 : vector<8x8xf32> to vector<8x8xbf16>
    %cst_29 = arith.constant dense<0.000000e+00> : vector<8x8xf32>
    %108 = tpu.matmul %106, %107, %cst_29 {dimension_numbers = #tpu.dot_dimension_numbers<[1], [0], [0], [1], [0, 0, 1, 1], [], []>} : vector<8x8xbf16>, vector<8x8xbf16>, vector<8x8xf32> -> vector<8x8xf32>
    %109 = tpu.concatenate %36, %60, %84, %108 in 1 : vector<8x8xf32>, vector<8x8xf32>, vector<8x8xf32>, vector<8x8xf32> -> vector<8x32xf32>
    %c1 = arith.constant 1 : index
    %c0_30 = arith.constant 0 : index
    %110 = vector.load %arg2[%c1, %c0_30] : memref<2x8xf32, #tpu.memory_space<vmem>>, vector<1x8xf32>
    %111 = vector.extract_strided_slice %11 {offsets = [8, 0], sizes = [8, 8], strides = [1, 1]} : vector<16x96xf32> to vector<8x8xf32>
    %112 = vector.extract_strided_slice %11 {offsets = [8, 32], sizes = [8, 8], strides = [1, 1]} : vector<16x96xf32> to vector<8x8xf32>
    %113 = vector.extract_strided_slice %11 {offsets = [8, 64], sizes = [8, 8], strides = [1, 1]} : vector<16x96xf32> to vector<8x8xf32>
    %114 = arith.truncf %111 : vector<8x8xf32> to vector<8x8xbf16>
    %115 = tpu.transpose %112, [1, 0] : vector<8x8xf32> -> vector<8x8xf32>
    %116 = arith.truncf %115 : vector<8x8xf32> to vector<8x8xbf16>
    %cst_31 = arith.constant dense<0.000000e+00> : vector<8x8xf32>
    %117 = tpu.matmul %114, %116, %cst_31 {dimension_numbers = #tpu.dot_dimension_numbers<[1], [0], [0], [1], [0, 0, 1, 1], [], []>} : vector<8x8xbf16>, vector<8x8xbf16>, vector<8x8xf32> -> vector<8x8xf32>
    %cst_32 = arith.constant 0.353553385 : f32
    %118 = vector.broadcast %cst_32 : f32 to vector<8x8xf32>
    %119 = arith.mulf %117, %118 : vector<8x8xf32>
    %120 = vector.broadcast %110 : vector<1x8xf32> to vector<8x8xf32>
    %121 = arith.addf %119, %120 : vector<8x8xf32>
    %cst_33 = arith.constant dense<0xFF800000> : vector<8xf32>
    %122 = vector.multi_reduction <maximumf>, %121, %cst_33 [1] : vector<8x8xf32> to vector<8xf32>
    %123 = vector.shape_cast %122 : vector<8xf32> to vector<8x1xf32>
    %124 = vector.broadcast %123 : vector<8x1xf32> to vector<8x8xf32>
    %125 = arith.subf %121, %124 : vector<8x8xf32>
    %126 = math.exp %125 : vector<8x8xf32>
    %cst_34 = arith.constant dense<0.000000e+00> : vector<8xf32>
    %127 = vector.multi_reduction <add>, %126, %cst_34 [1] : vector<8x8xf32> to vector<8xf32>
    %128 = vector.shape_cast %127 : vector<8xf32> to vector<8x1xf32>
    %129 = tpu.reciprocal %128 {approx = true} : vector<8x1xf32> -> vector<8x1xf32>
    %130 = vector.broadcast %129 : vector<8x1xf32> to vector<8x8xf32>
    %131 = arith.mulf %126, %130 : vector<8x8xf32>
    %132 = arith.truncf %131 : vector<8x8xf32> to vector<8x8xbf16>
    %133 = arith.truncf %113 : vector<8x8xf32> to vector<8x8xbf16>
    %cst_35 = arith.constant dense<0.000000e+00> : vector<8x8xf32>
    %134 = tpu.matmul %132, %133, %cst_35 {dimension_numbers = #tpu.dot_dimension_numbers<[1], [0], [0], [1], [0, 0, 1, 1], [], []>} : vector<8x8xbf16>, vector<8x8xbf16>, vector<8x8xf32> -> vector<8x8xf32>
    %135 = vector.extract_strided_slice %11 {offsets = [8, 8], sizes = [8, 8], strides = [1, 1]} : vector<16x96xf32> to vector<8x8xf32>
    %136 = vector.extract_strided_slice %11 {offsets = [8, 40], sizes = [8, 8], strides = [1, 1]} : vector<16x96xf32> to vector<8x8xf32>
    %137 = vector.extract_strided_slice %11 {offsets = [8, 72], sizes = [8, 8], strides = [1, 1]} : vector<16x96xf32> to vector<8x8xf32>
    %138 = arith.truncf %135 : vector<8x8xf32> to vector<8x8xbf16>
    %139 = tpu.transpose %136, [1, 0] : vector<8x8xf32> -> vector<8x8xf32>
    %140 = arith.truncf %139 : vector<8x8xf32> to vector<8x8xbf16>
    %cst_36 = arith.constant dense<0.000000e+00> : vector<8x8xf32>
    %141 = tpu.matmul %138, %140, %cst_36 {dimension_numbers = #tpu.dot_dimension_numbers<[1], [0], [0], [1], [0, 0, 1, 1], [], []>} : vector<8x8xbf16>, vector<8x8xbf16>, vector<8x8xf32> -> vector<8x8xf32>
    %cst_37 = arith.constant 0.353553385 : f32
    %142 = vector.broadcast %cst_37 : f32 to vector<8x8xf32>
    %143 = arith.mulf %141, %142 : vector<8x8xf32>
    %144 = vector.broadcast %110 : vector<1x8xf32> to vector<8x8xf32>
    %145 = arith.addf %143, %144 : vector<8x8xf32>
    %cst_38 = arith.constant dense<0xFF800000> : vector<8xf32>
    %146 = vector.multi_reduction <maximumf>, %145, %cst_38 [1] : vector<8x8xf32> to vector<8xf32>
    %147 = vector.shape_cast %146 : vector<8xf32> to vector<8x1xf32>
    %148 = vector.broadcast %147 : vector<8x1xf32> to vector<8x8xf32>
    %149 = arith.subf %145, %148 : vector<8x8xf32>
    %150 = math.exp %149 : vector<8x8xf32>
    %cst_39 = arith.constant dense<0.000000e+00> : vector<8xf32>
    %151 = vector.multi_reduction <add>, %150, %cst_39 [1] : vector<8x8xf32> to vector<8xf32>
    %152 = vector.shape_cast %151 : vector<8xf32> to vector<8x1xf32>
    %153 = tpu.reciprocal %152 {approx = true} : vector<8x1xf32> -> vector<8x1xf32>
    %154 = vector.broadcast %153 : vector<8x1xf32> to vector<8x8xf32>
    %155 = arith.mulf %150, %154 : vector<8x8xf32>
    %156 = arith.truncf %155 : vector<8x8xf32> to vector<8x8xbf16>
    %157 = arith.truncf %137 : vector<8x8xf32> to vector<8x8xbf16>
    %cst_40 = arith.constant dense<0.000000e+00> : vector<8x8xf32>
    %158 = tpu.matmul %156, %157, %cst_40 {dimension_numbers = #tpu.dot_dimension_numbers<[1], [0], [0], [1], [0, 0, 1, 1], [], []>} : vector<8x8xbf16>, vector<8x8xbf16>, vector<8x8xf32> -> vector<8x8xf32>
    %159 = vector.extract_strided_slice %11 {offsets = [8, 16], sizes = [8, 8], strides = [1, 1]} : vector<16x96xf32> to vector<8x8xf32>
    %160 = vector.extract_strided_slice %11 {offsets = [8, 48], sizes = [8, 8], strides = [1, 1]} : vector<16x96xf32> to vector<8x8xf32>
    %161 = vector.extract_strided_slice %11 {offsets = [8, 80], sizes = [8, 8], strides = [1, 1]} : vector<16x96xf32> to vector<8x8xf32>
    %162 = arith.truncf %159 : vector<8x8xf32> to vector<8x8xbf16>
    %163 = tpu.transpose %160, [1, 0] : vector<8x8xf32> -> vector<8x8xf32>
    %164 = arith.truncf %163 : vector<8x8xf32> to vector<8x8xbf16>
    %cst_41 = arith.constant dense<0.000000e+00> : vector<8x8xf32>
    %165 = tpu.matmul %162, %164, %cst_41 {dimension_numbers = #tpu.dot_dimension_numbers<[1], [0], [0], [1], [0, 0, 1, 1], [], []>} : vector<8x8xbf16>, vector<8x8xbf16>, vector<8x8xf32> -> vector<8x8xf32>
    %cst_42 = arith.constant 0.353553385 : f32
    %166 = vector.broadcast %cst_42 : f32 to vector<8x8xf32>
    %167 = arith.mulf %165, %166 : vector<8x8xf32>
    %168 = vector.broadcast %110 : vector<1x8xf32> to vector<8x8xf32>
    %169 = arith.addf %167, %168 : vector<8x8xf32>
    %cst_43 = arith.constant dense<0xFF800000> : vector<8xf32>
    %170 = vector.multi_reduction <maximumf>, %169, %cst_43 [1] : vector<8x8xf32> to vector<8xf32>
    %171 = vector.shape_cast %170 : vector<8xf32> to vector<8x1xf32>
    %172 = vector.broadcast %171 : vector<8x1xf32> to vector<8x8xf32>
    %173 = arith.subf %169, %172 : vector<8x8xf32>
    %174 = math.exp %173 : vector<8x8xf32>
    %cst_44 = arith.constant dense<0.000000e+00> : vector<8xf32>
    %175 = vector.multi_reduction <add>, %174, %cst_44 [1] : vector<8x8xf32> to vector<8xf32>
    %176 = vector.shape_cast %175 : vector<8xf32> to vector<8x1xf32>
    %177 = tpu.reciprocal %176 {approx = true} : vector<8x1xf32> -> vector<8x1xf32>
    %178 = vector.broadcast %177 : vector<8x1xf32> to vector<8x8xf32>
    %179 = arith.mulf %174, %178 : vector<8x8xf32>
    %180 = arith.truncf %179 : vector<8x8xf32> to vector<8x8xbf16>
    %181 = arith.truncf %161 : vector<8x8xf32> to vector<8x8xbf16>
    %cst_45 = arith.constant dense<0.000000e+00> : vector<8x8xf32>
    %182 = tpu.matmul %180, %181, %cst_45 {dimension_numbers = #tpu.dot_dimension_numbers<[1], [0], [0], [1], [0, 0, 1, 1], [], []>} : vector<8x8xbf16>, vector<8x8xbf16>, vector<8x8xf32> -> vector<8x8xf32>
    %183 = vector.extract_strided_slice %11 {offsets = [8, 24], sizes = [8, 8], strides = [1, 1]} : vector<16x96xf32> to vector<8x8xf32>
    %184 = vector.extract_strided_slice %11 {offsets = [8, 56], sizes = [8, 8], strides = [1, 1]} : vector<16x96xf32> to vector<8x8xf32>
    %185 = vector.extract_strided_slice %11 {offsets = [8, 88], sizes = [8, 8], strides = [1, 1]} : vector<16x96xf32> to vector<8x8xf32>
    %186 = arith.truncf %183 : vector<8x8xf32> to vector<8x8xbf16>
    %187 = tpu.transpose %184, [1, 0] : vector<8x8xf32> -> vector<8x8xf32>
    %188 = arith.truncf %187 : vector<8x8xf32> to vector<8x8xbf16>
    %cst_46 = arith.constant dense<0.000000e+00> : vector<8x8xf32>
    %189 = tpu.matmul %186, %188, %cst_46 {dimension_numbers = #tpu.dot_dimension_numbers<[1], [0], [0], [1], [0, 0, 1, 1], [], []>} : vector<8x8xbf16>, vector<8x8xbf16>, vector<8x8xf32> -> vector<8x8xf32>
    %cst_47 = arith.constant 0.353553385 : f32
    %190 = vector.broadcast %cst_47 : f32 to vector<8x8xf32>
    %191 = arith.mulf %189, %190 : vector<8x8xf32>
    %192 = vector.broadcast %110 : vector<1x8xf32> to vector<8x8xf32>
    %193 = arith.addf %191, %192 : vector<8x8xf32>
    %cst_48 = arith.constant dense<0xFF800000> : vector<8xf32>
    %194 = vector.multi_reduction <maximumf>, %193, %cst_48 [1] : vector<8x8xf32> to vector<8xf32>
    %195 = vector.shape_cast %194 : vector<8xf32> to vector<8x1xf32>
    %196 = vector.broadcast %195 : vector<8x1xf32> to vector<8x8xf32>
    %197 = arith.subf %193, %196 : vector<8x8xf32>
    %198 = math.exp %197 : vector<8x8xf32>
    %cst_49 = arith.constant dense<0.000000e+00> : vector<8xf32>
    %199 = vector.multi_reduction <add>, %198, %cst_49 [1] : vector<8x8xf32> to vector<8xf32>
    %200 = vector.shape_cast %199 : vector<8xf32> to vector<8x1xf32>
    %201 = tpu.reciprocal %200 {approx = true} : vector<8x1xf32> -> vector<8x1xf32>
    %202 = vector.broadcast %201 : vector<8x1xf32> to vector<8x8xf32>
    %203 = arith.mulf %198, %202 : vector<8x8xf32>
    %204 = arith.truncf %203 : vector<8x8xf32> to vector<8x8xbf16>
    %205 = arith.truncf %185 : vector<8x8xf32> to vector<8x8xbf16>
    %cst_50 = arith.constant dense<0.000000e+00> : vector<8x8xf32>
    %206 = tpu.matmul %204, %205, %cst_50 {dimension_numbers = #tpu.dot_dimension_numbers<[1], [0], [0], [1], [0, 0, 1, 1], [], []>} : vector<8x8xbf16>, vector<8x8xbf16>, vector<8x8xf32> -> vector<8x8xf32>
    %207 = tpu.concatenate %134, %158, %182, %206 in 1 : vector<8x8xf32>, vector<8x8xf32>, vector<8x8xf32>, vector<8x8xf32> -> vector<8x32xf32>
    %208 = tpu.concatenate %109, %207 in 0 : vector<8x32xf32>, vector<8x32xf32> -> vector<16x32xf32>
    %c0_51 = arith.constant 0 : index
    %c0_52 = arith.constant 0 : index
    %c0_53 = arith.constant 0 : index
    %209 = vector.load %arg8[%c0_51, %c0_52, %c0_53] : memref<1x1x32xf32, #tpu.memory_space<vmem>>, vector<1x1x32xf32>
    %210 = vector.shape_cast %209 : vector<1x1x32xf32> to vector<1x32xf32>
    %211 = arith.truncf %208 : vector<16x32xf32> to vector<16x32xbf16>
    %c0_54 = arith.constant 0 : index
    %c0_55 = arith.constant 0 : index
    %c0_56 = arith.constant 0 : index
    %212 = vector.load %arg7[%c0_54, %c0_55, %c0_56] : memref<1x32x32xbf16, #tpu.memory_space<vmem>>, vector<1x32x32xbf16>
    %213 = vector.shape_cast %212 : vector<1x32x32xbf16> to vector<32x32xbf16>
    %cst_57 = arith.constant dense<0.000000e+00> : vector<16x32xf32>
    %214 = tpu.matmul %211, %213, %cst_57 {dimension_numbers = #tpu.dot_dimension_numbers<[1], [0], [0], [1], [0, 0, 1, 1], [], []>} : vector<16x32xbf16>, vector<32x32xbf16>, vector<16x32xf32> -> vector<16x32xf32>
    %215 = vector.broadcast %210 : vector<1x32xf32> to vector<16x32xf32>
    %216 = arith.addf %214, %215 : vector<16x32xf32>
    %217 = arith.addf %216, %3 : vector<16x32xf32>
    %c0_58 = arith.constant 0 : index
    %c0_59 = arith.constant 0 : index
    %c0_60 = arith.constant 0 : index
    %218 = vector.load %arg9[%c0_58, %c0_59, %c0_60] : memref<1x1x32xf32, #tpu.memory_space<vmem>>, vector<1x1x32xf32>
    %219 = vector.shape_cast %218 : vector<1x1x32xf32> to vector<1x32xf32>
    %c0_61 = arith.constant 0 : index
    %c0_62 = arith.constant 0 : index
    %c0_63 = arith.constant 0 : index
    %220 = vector.load %arg10[%c0_61, %c0_62, %c0_63] : memref<1x1x32xf32, #tpu.memory_space<vmem>>, vector<1x1x32xf32>
    %221 = vector.shape_cast %220 : vector<1x1x32xf32> to vector<1x32xf32>
    %cst_64 = arith.constant dense<0.000000e+00> : vector<16xf32>
    %222 = vector.multi_reduction <add>, %217, %cst_64 [1] : vector<16x32xf32> to vector<16xf32>
    %223 = vector.shape_cast %222 : vector<16xf32> to vector<16x1xf32>
    %cst_65 = arith.constant 3.200000e+01 : f32
    %224 = vector.broadcast %cst_65 : f32 to vector<16x1xf32>
    %225 = arith.divf %223, %224 : vector<16x1xf32>
    %226 = vector.broadcast %225 : vector<16x1xf32> to vector<16x32xf32>
    %227 = arith.subf %217, %226 : vector<16x32xf32>
    %228 = arith.mulf %227, %227 : vector<16x32xf32>
    %cst_66 = arith.constant dense<0.000000e+00> : vector<16xf32>
    %229 = vector.multi_reduction <add>, %228, %cst_66 [1] : vector<16x32xf32> to vector<16xf32>
    %230 = vector.shape_cast %229 : vector<16xf32> to vector<16x1xf32>
    %cst_67 = arith.constant 3.200000e+01 : f32
    %231 = vector.broadcast %cst_67 : f32 to vector<16x1xf32>
    %232 = arith.divf %230, %231 : vector<16x1xf32>
    %cst_68 = arith.constant 9.99999974E-6 : f32
    %233 = vector.broadcast %cst_68 : f32 to vector<16x1xf32>
    %234 = arith.addf %232, %233 : vector<16x1xf32>
    %235 = math.rsqrt %234 : vector<16x1xf32>
    %236 = vector.broadcast %235 : vector<16x1xf32> to vector<16x32xf32>
    %237 = arith.mulf %227, %236 : vector<16x32xf32>
    %238 = vector.broadcast %219 : vector<1x32xf32> to vector<16x32xf32>
    %239 = arith.mulf %237, %238 : vector<16x32xf32>
    %240 = vector.broadcast %221 : vector<1x32xf32> to vector<16x32xf32>
    %241 = arith.addf %239, %240 : vector<16x32xf32>
    %c0_69 = arith.constant 0 : index
    %c0_70 = arith.constant 0 : index
    %c0_71 = arith.constant 0 : index
    %242 = vector.load %arg12[%c0_69, %c0_70, %c0_71] : memref<1x1x64xf32, #tpu.memory_space<vmem>>, vector<1x1x64xf32>
    %243 = vector.shape_cast %242 : vector<1x1x64xf32> to vector<1x64xf32>
    %244 = arith.truncf %241 : vector<16x32xf32> to vector<16x32xbf16>
    %c0_72 = arith.constant 0 : index
    %c0_73 = arith.constant 0 : index
    %c0_74 = arith.constant 0 : index
    %245 = vector.load %arg11[%c0_72, %c0_73, %c0_74] : memref<1x32x64xbf16, #tpu.memory_space<vmem>>, vector<1x32x64xbf16>
    %246 = vector.shape_cast %245 : vector<1x32x64xbf16> to vector<32x64xbf16>
    %cst_75 = arith.constant dense<0.000000e+00> : vector<16x64xf32>
    %247 = tpu.matmul %244, %246, %cst_75 {dimension_numbers = #tpu.dot_dimension_numbers<[1], [0], [0], [1], [0, 0, 1, 1], [], []>} : vector<16x32xbf16>, vector<32x64xbf16>, vector<16x64xf32> -> vector<16x64xf32>
    %248 = vector.broadcast %243 : vector<1x64xf32> to vector<16x64xf32>
    %249 = arith.addf %247, %248 : vector<16x64xf32>
    %250 = arith.mulf %249, %249 : vector<16x64xf32>
    %251 = arith.mulf %249, %250 : vector<16x64xf32>
    %cst_76 = arith.constant 4.471500e-02 : f32
    %252 = vector.broadcast %cst_76 : f32 to vector<16x64xf32>
    %253 = arith.mulf %252, %251 : vector<16x64xf32>
    %254 = arith.addf %249, %253 : vector<16x64xf32>
    %cst_77 = arith.constant 0.797884583 : f32
    %255 = vector.broadcast %cst_77 : f32 to vector<16x64xf32>
    %256 = arith.mulf %255, %254 : vector<16x64xf32>
    %257 = math.tanh %256 : vector<16x64xf32>
    %cst_78 = arith.constant 1.000000e+00 : f32
    %258 = vector.broadcast %cst_78 : f32 to vector<16x64xf32>
    %259 = arith.addf %258, %257 : vector<16x64xf32>
    %cst_79 = arith.constant 5.000000e-01 : f32
    %260 = vector.broadcast %cst_79 : f32 to vector<16x64xf32>
    %261 = arith.mulf %260, %259 : vector<16x64xf32>
    %262 = arith.mulf %249, %261 : vector<16x64xf32>
    %c0_80 = arith.constant 0 : index
    %c0_81 = arith.constant 0 : index
    %c0_82 = arith.constant 0 : index
    %263 = vector.load %arg14[%c0_80, %c0_81, %c0_82] : memref<1x1x32xf32, #tpu.memory_space<vmem>>, vector<1x1x32xf32>
    %264 = vector.shape_cast %263 : vector<1x1x32xf32> to vector<1x32xf32>
    %265 = arith.truncf %262 : vector<16x64xf32> to vector<16x64xbf16>
    %c0_83 = arith.constant 0 : index
    %c0_84 = arith.constant 0 : index
    %c0_85 = arith.constant 0 : index
    %266 = vector.load %arg13[%c0_83, %c0_84, %c0_85] : memref<1x64x32xbf16, #tpu.memory_space<vmem>>, vector<1x64x32xbf16>
    %267 = vector.shape_cast %266 : vector<1x64x32xbf16> to vector<64x32xbf16>
    %cst_86 = arith.constant dense<0.000000e+00> : vector<16x32xf32>
    %268 = tpu.matmul %265, %267, %cst_86 {dimension_numbers = #tpu.dot_dimension_numbers<[1], [0], [0], [1], [0, 0, 1, 1], [], []>} : vector<16x64xbf16>, vector<64x32xbf16>, vector<16x32xf32> -> vector<16x32xf32>
    %269 = vector.broadcast %264 : vector<1x32xf32> to vector<16x32xf32>
    %270 = arith.addf %268, %269 : vector<16x32xf32>
    %271 = arith.addf %270, %241 : vector<16x32xf32>
    %c0_87 = arith.constant 0 : index
    %c0_88 = arith.constant 0 : index
    %c0_89 = arith.constant 0 : index
    %272 = vector.load %arg15[%c0_87, %c0_88, %c0_89] : memref<1x1x32xf32, #tpu.memory_space<vmem>>, vector<1x1x32xf32>
    %273 = vector.shape_cast %272 : vector<1x1x32xf32> to vector<1x32xf32>
    %c0_90 = arith.constant 0 : index
    %c0_91 = arith.constant 0 : index
    %c0_92 = arith.constant 0 : index
    %274 = vector.load %arg16[%c0_90, %c0_91, %c0_92] : memref<1x1x32xf32, #tpu.memory_space<vmem>>, vector<1x1x32xf32>
    %275 = vector.shape_cast %274 : vector<1x1x32xf32> to vector<1x32xf32>
    %cst_93 = arith.constant dense<0.000000e+00> : vector<16xf32>
    %276 = vector.multi_reduction <add>, %271, %cst_93 [1] : vector<16x32xf32> to vector<16xf32>
    %277 = vector.shape_cast %276 : vector<16xf32> to vector<16x1xf32>
    %cst_94 = arith.constant 3.200000e+01 : f32
    %278 = vector.broadcast %cst_94 : f32 to vector<16x1xf32>
    %279 = arith.divf %277, %278 : vector<16x1xf32>
    %280 = vector.broadcast %279 : vector<16x1xf32> to vector<16x32xf32>
    %281 = arith.subf %271, %280 : vector<16x32xf32>
    %282 = arith.mulf %281, %281 : vector<16x32xf32>
    %cst_95 = arith.constant dense<0.000000e+00> : vector<16xf32>
    %283 = vector.multi_reduction <add>, %282, %cst_95 [1] : vector<16x32xf32> to vector<16xf32>
    %284 = vector.shape_cast %283 : vector<16xf32> to vector<16x1xf32>
    %cst_96 = arith.constant 3.200000e+01 : f32
    %285 = vector.broadcast %cst_96 : f32 to vector<16x1xf32>
    %286 = arith.divf %284, %285 : vector<16x1xf32>
    %cst_97 = arith.constant 9.99999974E-6 : f32
    %287 = vector.broadcast %cst_97 : f32 to vector<16x1xf32>
    %288 = arith.addf %286, %287 : vector<16x1xf32>
    %289 = math.rsqrt %288 : vector<16x1xf32>
    %290 = vector.broadcast %289 : vector<16x1xf32> to vector<16x32xf32>
    %291 = arith.mulf %281, %290 : vector<16x32xf32>
    %292 = vector.broadcast %273 : vector<1x32xf32> to vector<16x32xf32>
    %293 = arith.mulf %291, %292 : vector<16x32xf32>
    %294 = vector.broadcast %275 : vector<1x32xf32> to vector<16x32xf32>
    %295 = arith.addf %293, %294 : vector<16x32xf32>
    %c0_98 = arith.constant 0 : index
    %c0_99 = arith.constant 0 : index
    %296 = vector.load %arg22[%c0_98, %c0_99] : memref<16x32xf32, #tpu.memory_space<vmem>>, vector<16x32xf32>
    tpu.vector_store %arg22[%c0_98, %c0_99], %295 {strides = array<i32>} : memref<16x32xf32, #tpu.memory_space<vmem>>, vector<16x32xf32>,
    %c1_i32 = arith.constant 1 : i32
    %297 = arith.cmpi eq, %arg0, %c1_i32 : i32
    %298 = arith.extui %297 : i1 to i32
    %c0_i32_100 = arith.constant 0 : i32
    %299 = arith.cmpi ne, %298, %c0_i32_100 : i32
    scf.if %299 {
      %c0_101 = arith.constant 0 : index
      %c0_102 = arith.constant 0 : index
      %300 = vector.load %arg22[%c0_101, %c0_102] : memref<16x32xf32, #tpu.memory_space<vmem>>, vector<16x32xf32>
      %301 = vector.extract_strided_slice %300 {offsets = [0, 0], sizes = [1, 32], strides = [1, 1]} : vector<16x32xf32> to vector<1x32xf32>
      %302 = vector.extract_strided_slice %300 {offsets = [8, 0], sizes = [1, 32], strides = [1, 1]} : vector<16x32xf32> to vector<1x32xf32>
      %303 = tpu.concatenate %301, %302 in 0 : vector<1x32xf32>, vector<1x32xf32> -> vector<2x32xf32>
      %c0_103 = arith.constant 0 : index
      %c0_104 = arith.constant 0 : index
      %304 = vector.load %arg18[%c0_103, %c0_104] : memref<1x32xf32, #tpu.memory_space<vmem>>, vector<1x32xf32>
      %305 = arith.truncf %303 : vector<2x32xf32> to vector<2x32xbf16>
      %c0_105 = arith.constant 0 : index
      %c0_106 = arith.constant 0 : index
      %306 = vector.load %arg17[%c0_105, %c0_106] : memref<32x32xbf16, #tpu.memory_space<vmem>>, vector<32x32xbf16>
      %cst_107 = arith.constant dense<0.000000e+00> : vector<2x32xf32>
      %307 = tpu.matmul %305, %306, %cst_107 {dimension_numbers = #tpu.dot_dimension_numbers<[1], [0], [0], [1], [0, 0, 1, 1], [], []>} : vector<2x32xbf16>, vector<32x32xbf16>, vector<2x32xf32> -> vector<2x32xf32>
      %308 = vector.broadcast %304 : vector<1x32xf32> to vector<2x32xf32>
      %309 = arith.addf %307, %308 : vector<2x32xf32>
      %310 = math.tanh %309 : vector<2x32xf32>
      %c0_108 = arith.constant 0 : index
      %c0_109 = arith.constant 0 : index
      %311 = vector.load %arg20[%c0_108, %c0_109] : memref<1x128xf32, #tpu.memory_space<vmem>>, vector<1x128xf32>
      %312 = arith.truncf %310 : vector<2x32xf32> to vector<2x32xbf16>
      %c0_110 = arith.constant 0 : index
      %c0_111 = arith.constant 0 : index
      %313 = vector.load %arg19[%c0_110, %c0_111] : memref<32x128xbf16, #tpu.memory_space<vmem>>, vector<32x128xbf16>
      %cst_112 = arith.constant dense<0.000000e+00> : vector<2x128xf32>
      %314 = tpu.matmul %312, %313, %cst_112 {dimension_numbers = #tpu.dot_dimension_numbers<[1], [0], [0], [1], [0, 0, 1, 1], [], []>} : vector<2x32xbf16>, vector<32x128xbf16>, vector<2x128xf32> -> vector<2x128xf32>
      %315 = vector.broadcast %311 : vector<1x128xf32> to vector<2x128xf32>
      %316 = arith.addf %314, %315 : vector<2x128xf32>
      %c0_113 = arith.constant 0 : index
      %c0_114 = arith.constant 0 : index
      %317 = vector.load %arg21[%c0_113, %c0_114] : memref<2x128xf32, #tpu.memory_space<vmem>>, vector<2x128xf32>
      tpu.vector_store %arg21[%c0_113, %c0_114], %316 {strides = array<i32>} : memref<2x128xf32, #tpu.memory_space<vmem>>, vector<2x128xf32>,
    } else {
    }
    return
  }
  func.func @transform_0(%arg0: i32) -> (i32, i32) {
    %c0_i32 = arith.constant 0 : i32
    %c0_i32_0 = arith.constant 0 : i32
    %c0_i32_1 = arith.constant 0 : i32
    return %c0_i32, %c0_i32_0 : i32, i32
  }
  func.func @transform_1(%arg0: i32) -> (i32, i32) {
    %c0_i32 = arith.constant 0 : i32
    %c0_i32_0 = arith.constant 0 : i32
    %c0_i32_1 = arith.constant 0 : i32
    return %c0_i32, %c0_i32_0 : i32, i32
  }
  func.func @transform_2(%arg0: i32) -> (i32, i32) {
    %c0_i32 = arith.constant 0 : i32
    %c0_i32_0 = arith.constant 0 : i32
    %c0_i32_1 = arith.constant 0 : i32
    return %c0_i32, %c0_i32_0 : i32, i32
  }
  func.func @transform_3(%arg0: i32) -> (i32, i32) {
    %c0_i32 = arith.constant 0 : i32
    %c0_i32_0 = arith.constant 0 : i32
    %c0_i32_1 = arith.constant 0 : i32
    return %c0_i32, %c0_i32_0 : i32, i32
  }
  func.func @transform_4(%arg0: i32) -> (i32, i32, i32) {
    %c0_i32 = arith.constant 0 : i32
    %c0_i32_0 = arith.constant 0 : i32
    %c0_i32_1 = arith.constant 0 : i32
    return %arg0, %c0_i32, %c0_i32_0 : i32, i32, i32
  }
  func.func @transform_5(%arg0: i32) -> (i32, i32, i32) {
    %c0_i32 = arith.constant 0 : i32
    %c0_i32_0 = arith.constant 0 : i32
    %c0_i32_1 = arith.constant 0 : i32
    return %arg0, %c0_i32, %c0_i32_0 : i32, i32, i32
  }
  func.func @transform_6(%arg0: i32) -> (i32, i32, i32) {
    %c0_i32 = arith.constant 0 : i32
    %c0_i32_0 = arith.constant 0 : i32
    %c0_i32_1 = arith.constant 0 : i32
    return %arg0, %c0_i32, %c0_i32_0 : i32, i32, i32
  }
  func.func @transform_7(%arg0: i32) -> (i32, i32, i32) {
    %c0_i32 = arith.constant 0 : i32
    %c0_i32_0 = arith.constant 0 : i32
    %c0_i32_1 = arith.constant 0 : i32
    return %arg0, %c0_i32, %c0_i32_0 : i32, i32, i32
  }
  func.func @transform_8(%arg0: i32) -> (i32, i32, i32) {
    %c0_i32 = arith.constant 0 : i32
    %c0_i32_0 = arith.constant 0 : i32
    %c0_i32_1 = arith.constant 0 : i32
    return %arg0, %c0_i32, %c0_i32_0 : i32, i32, i32
  }
  func.func @transform_9(%arg0: i32) -> (i32, i32, i32) {
    %c0_i32 = arith.constant 0 : i32
    %c0_i32_0 = arith.constant 0 : i32
    %c0_i32_1 = arith.constant 0 : i32
    return %arg0, %c0_i32, %c0_i32_0 : i32, i32, i32
  }
  func.func @transform_10(%arg0: i32) -> (i32, i32, i32) {
    %c0_i32 = arith.constant 0 : i32
    %c0_i32_0 = arith.constant 0 : i32
    %c0_i32_1 = arith.constant 0 : i32
    return %arg0, %c0_i32, %c0_i32_0 : i32, i32, i32
  }
  func.func @transform_11(%arg0: i32) -> (i32, i32, i32) {
    %c0_i32 = arith.constant 0 : i32
    %c0_i32_0 = arith.constant 0 : i32
    %c0_i32_1 = arith.constant 0 : i32
    return %arg0, %c0_i32, %c0_i32_0 : i32, i32, i32
  }
  func.func @transform_12(%arg0: i32) -> (i32, i32, i32) {
    %c0_i32 = arith.constant 0 : i32
    %c0_i32_0 = arith.constant 0 : i32
    %c0_i32_1 = arith.constant 0 : i32
    return %arg0, %c0_i32, %c0_i32_0 : i32, i32, i32
  }
  func.func @transform_13(%arg0: i32) -> (i32, i32, i32) {
    %c0_i32 = arith.constant 0 : i32
    %c0_i32_0 = arith.constant 0 : i32
    %c0_i32_1 = arith.constant 0 : i32
    return %arg0, %c0_i32, %c0_i32_0 : i32, i32, i32
  }
  func.func @transform_14(%arg0: i32) -> (i32, i32, i32) {
    %c0_i32 = arith.constant 0 : i32
    %c0_i32_0 = arith.constant 0 : i32
    %c0_i32_1 = arith.constant 0 : i32
    return %arg0, %c0_i32, %c0_i32_0 : i32, i32, i32
  }
  func.func @transform_15(%arg0: i32) -> (i32, i32, i32) {
    %c0_i32 = arith.constant 0 : i32
    %c0_i32_0 = arith.constant 0 : i32
    %c0_i32_1 = arith.constant 0 : i32
    return %arg0, %c0_i32, %c0_i32_0 : i32, i32, i32
  }
  func.func @transform_16(%arg0: i32) -> (i32, i32) {
    %c0_i32 = arith.constant 0 : i32
    %c0_i32_0 = arith.constant 0 : i32
    %c0_i32_1 = arith.constant 0 : i32
    return %c0_i32, %c0_i32_0 : i32, i32
  }
  func.func @transform_17(%arg0: i32) -> (i32, i32) {
    %c0_i32 = arith.constant 0 : i32
    %c0_i32_0 = arith.constant 0 : i32
    %c0_i32_1 = arith.constant 0 : i32
    return %c0_i32, %c0_i32_0 : i32, i32
  }
  func.func @transform_18(%arg0: i32) -> (i32, i32) {
    %c0_i32 = arith.constant 0 : i32
    %c0_i32_0 = arith.constant 0 : i32
    %c0_i32_1 = arith.constant 0 : i32
    return %c0_i32, %c0_i32_0 : i32, i32
  }
  func.func @transform_19(%arg0: i32) -> (i32, i32) {
    %c0_i32 = arith.constant 0 : i32
    %c0_i32_0 = arith.constant 0 : i32
    %c0_i32_1 = arith.constant 0 : i32
    return %c0_i32, %c0_i32_0 : i32, i32
  }
  func.func @transform_20(%arg0: i32) -> (i32, i32) {
    %c0_i32 = arith.constant 0 : i32
    %c0_i32_0 = arith.constant 0 : i32
    %c0_i32_1 = arith.constant 0 : i32
    return %c0_i32, %c0_i32_0 : i32, i32
  }
}

</mosaic_0001>

<llo_original>
// kernel: net_forward.1
$region0: #{net_forward.1}
  #allocation0 [shape = 'u32[]', space=smem, size = 0x4, offset = 0x4, fixed_abs, tag = 'smem constant byte address 0x4 - core index']
  #allocation1 [shape = 'u32[144,128]{1,0:T(1,128)}', space=vmem, size = 0x12000, scoped, tag = 'internal scratch']
  #allocation2 [shape = 'f32[16,32]{1,0:T(8,128)}', space=vmem, size = 0x2000, scoped, tag = 'scratch operand']
  %s0 = inlined_call_operand.vmem [shape: f32[16,32], index: 0, kind: input, shape index: {}]
  %s1 = inlined_call_operand.vmem [shape: f32[2,8], index: 1, kind: input, shape index: {}]
  %s2 = inlined_call_operand.vmem [shape: f32[1,32], index: 2, kind: input, shape index: {}]
  %s3 = inlined_call_operand.vmem [shape: f32[1,32], index: 3, kind: input, shape index: {}]
  %s4 = inlined_call_operand.vmem [shape: bf16[2,32,96], index: 4, kind: input, shape index: {}]
  %s5 = inlined_call_operand.vmem [shape: f32[2,1,96], index: 5, kind: input, shape index: {}]
  %s6 = inlined_call_operand.vmem [shape: bf16[2,32,32], index: 6, kind: input, shape index: {}]
  %s7 = inlined_call_operand.vmem [shape: f32[2,1,32], index: 7, kind: input, shape index: {}]
  %s8 = inlined_call_operand.vmem [shape: f32[2,1,32], index: 8, kind: input, shape index: {}]
  %s9 = inlined_call_operand.vmem [shape: f32[2,1,32], index: 9, kind: input, shape index: {}]
  %s10 = inlined_call_operand.vmem [shape: bf16[2,32,64], index: 10, kind: input, shape index: {}]
  %s11 = inlined_call_operand.vmem [shape: f32[2,1,64], index: 11, kind: input, shape index: {}]
  %s12 = inlined_call_operand.vmem [shape: bf16[2,64,32], index: 12, kind: input, shape index: {}]
  %s13 = inlined_call_operand.vmem [shape: f32[2,1,32], index: 13, kind: input, shape index: {}]
  %s14 = inlined_call_operand.vmem [shape: f32[2,1,32], index: 14, kind: input, shape index: {}]
  %s15 = inlined_call_operand.vmem [shape: f32[2,1,32], index: 15, kind: input, shape index: {}]
  %s16 = inlined_call_operand.vmem [shape: bf16[32,32], index: 16, kind: input, shape index: {}]
  %s17 = inlined_call_operand.vmem [shape: f32[1,32], index: 17, kind: input, shape index: {}]
  %s18 = inlined_call_operand.vmem [shape: bf16[32,128], index: 18, kind: input, shape index: {}]
  %s19 = inlined_call_operand.vmem [shape: f32[1,128], index: 19, kind: input, shape index: {}]
  %s20 = inlined_call_operand.hbm [shape: f32[2,128], index: 20, kind: output, shape index: {}]
  %s21 = sld [smem:[#allocation0]]
  $region121: #{net_forward.1} parent=0
    _
  %s23 = ssub.s32 1, %s21
  %s24 = scalar_select 0, %s23, %s21
  $region1: #{net_forward.1} parent=0
    #allocation3 [shape = 'u8[1024]{0}', space=vmem, size = 0x400, scoped, tag = 'output window, operand 0, single buffered']
    #allocation4 [shape = 's32[2]{0}', space=sflag, size = 0x8, scoped, tag = 'scoped memory for net_forward.1']
    %25 = vsyncpa [#allocation4], 0
    loop: start=0, step=1, limit=4
    $region2: #{net_forward.1} parent=1 // loop_pre_header
      _
    $region3: #{net_forward.1} parent=1 // loop_header
      %s27 = sphi 0, %s31
      %p28 = scmp.ge.s32.totalorder %s27, 4
      %s35 = sphi 0, %s35
      %s37 = sphi 0, %s35
      %s38 = sphi 0, %s37
      %s52 = sphi 0, %s38
      %s56 = sphi 0, %s56
      %s58 = sphi 0, %s56
      %s59 = sphi 0, %s58
      %s73 = sphi 0, %s59
      %s77 = sphi 0, %s77
      %s79 = sphi 0, %s77
      %s80 = sphi 0, %s79
      %s94 = sphi 0, %s80
      %s98 = sphi 0, %s98
      %s100 = sphi 0, %s98
      %s101 = sphi 0, %s100
      %s115 = sphi 0, %s101
      %s121 = sphi 0, %s123
      %s124 = sphi 0, %s121
      %s125 = sphi 0, %s124
      %s141 = sphi 0, %s125
      %s147 = sphi 0, %s149
      %s150 = sphi 0, %s147
      %s151 = sphi 0, %s150
      %s167 = sphi 0, %s151
      %s173 = sphi 0, %s175
      %s176 = sphi 0, %s173
      %s177 = sphi 0, %s176
      %s193 = sphi 0, %s177
      %s199 = sphi 0, %s201
      %s202 = sphi 0, %s199
      %s203 = sphi 0, %s202
      %s219 = sphi 0, %s203
      %s225 = sphi 0, %s227
      %s228 = sphi 0, %s225
      %s229 = sphi 0, %s228
      %s245 = sphi 0, %s229
      %s251 = sphi 0, %s253
      %s254 = sphi 0, %s251
      %s255 = sphi 0, %s254
      %s271 = sphi 0, %s255
      %s277 = sphi 0, %s279
      %s280 = sphi 0, %s277
      %s281 = sphi 0, %s280
      %s297 = sphi 0, %s281
      %s303 = sphi 0, %s305
      %s306 = sphi 0, %s303
      %s307 = sphi 0, %s306
      %s323 = sphi 0, %s307
      %s329 = sphi 0, %s331
      %s332 = sphi 0, %s329
      %s333 = sphi 0, %s332
      %s349 = sphi 0, %s333
      %s355 = sphi 0, %s357
      %s358 = sphi 0, %s355
      %s359 = sphi 0, %s358
      %s375 = sphi 0, %s359
      %s381 = sphi 0, %s383
      %s384 = sphi 0, %s381
      %s385 = sphi 0, %s384
      %s401 = sphi 0, %s385
      %s407 = sphi 0, %s409
      %s410 = sphi 0, %s407
      %s411 = sphi 0, %s410
      %s427 = sphi 0, %s411
      %s431 = sphi 0, %s431
      %s433 = sphi 0, %s431
      %s434 = sphi 0, %s433
      %s448 = sphi 0, %s434
      %s452 = sphi 0, %s452
      %s454 = sphi 0, %s452
      %s455 = sphi 0, %s454
      %s469 = sphi 0, %s455
      %s473 = sphi 0, %s473
      %s475 = sphi 0, %s473
      %s476 = sphi 0, %s475
      %s490 = sphi 0, %s476
      %s494 = sphi 0, %s494
      %s496 = sphi 0, %s494
      %s497 = sphi 0, %s496
      %s511 = sphi 0, %s497
      %s515 = sphi 0, %s515
      %s517 = sphi 0, %s515
      %s518 = sphi 0, %s517
      %s532 = sphi 0, %s518
    $region4: #{net_forward.1} parent=1 // loop_header_branch
      %30 = sbr.rel (%p28) target = $region8
    $region5: #{net_forward.1} parent=1 // loop_body
      %s32 = ssub.s32 %s27, 1
      %s33 = ssub.s32 %s27, 2
      %s34 = sadd.s32 %s27, 1
      %s36 = sadd.s32 %s35, 1
      %p39 = scmp.eq.s32.totalorder %s27, 1
      %p40 = scmp.ne.s32.totalorder %s35, %s37
      %p41 = scmp.eq.s32.totalorder %s27, 0
      %p42 = por %p40, %p41
      %p43 = scmp.ne.s32.totalorder %s35, %s37
      %p44 = scmp.eq.s32.totalorder %s32, 1
      %p45 = por %p43, %p44
      %p46 = scmp.ne.s32.totalorder %s37, %s38
      %p47 = scmp.eq.s32.totalorder %s32, 0
      %p48 = por %p46, %p47
      %p49 = scmp.ne.s32.totalorder %s37, %s38
      %p50 = scmp.eq.s32.totalorder %s33, 1
      %p51 = por %p49, %p50
      %p53 = scmp.ne.s32.totalorder %s38, %s52
      %p54 = scmp.eq.s32.totalorder %s33, 0
      %p55 = por %p53, %p54
      %s57 = sadd.s32 %s56, 1
      %p60 = scmp.eq.s32.totalorder %s27, 1
      %p61 = scmp.ne.s32.totalorder %s56, %s58
      %p62 = scmp.eq.s32.totalorder %s27, 0
      %p63 = por %p61, %p62
      %p64 = scmp.ne.s32.totalorder %s56, %s58
      %p65 = scmp.eq.s32.totalorder %s32, 1
      %p66 = por %p64, %p65
      %p67 = scmp.ne.s32.totalorder %s58, %s59
      %p68 = scmp.eq.s32.totalorder %s32, 0
      %p69 = por %p67, %p68
      %p70 = scmp.ne.s32.totalorder %s58, %s59
      %p71 = scmp.eq.s32.totalorder %s33, 1
      %p72 = por %p70, %p71
      %p74 = scmp.ne.s32.totalorder %s59, %s73
      %p75 = scmp.eq.s32.totalorder %s33, 0
      %p76 = por %p74, %p75
      %s78 = sadd.s32 %s77, 1
      %p81 = scmp.eq.s32.totalorder %s27, 1
      %p82 = scmp.ne.s32.totalorder %s77, %s79
      %p83 = scmp.eq.s32.totalorder %s27, 0
      %p84 = por %p82, %p83
      %p85 = scmp.ne.s32.totalorder %s77, %s79
      %p86 = scmp.eq.s32.totalorder %s32, 1
      %p87 = por %p85, %p86
      %p88 = scmp.ne.s32.totalorder %s79, %s80
      %p89 = scmp.eq.s32.totalorder %s32, 0
      %p90 = por %p88, %p89
      %p91 = scmp.ne.s32.totalorder %s79, %s80
      %p92 = scmp.eq.s32.totalorder %s33, 1
      %p93 = por %p91, %p92
      %p95 = scmp.ne.s32.totalorder %s80, %s94
      %p96 = scmp.eq.s32.totalorder %s33, 0
      %p97 = por %p95, %p96
      %s99 = sadd.s32 %s98, 1
      %p102 = scmp.eq.s32.totalorder %s27, 1
      %p103 = scmp.ne.s32.totalorder %s98, %s100
      %p104 = scmp.eq.s32.totalorder %s27, 0
      %p105 = por %p103, %p104
      %p106 = scmp.ne.s32.totalorder %s98, %s100
      %p107 = scmp.eq.s32.totalorder %s32, 1
      %p108 = por %p106, %p107
      %p109 = scmp.ne.s32.totalorder %s100, %s101
      %p110 = scmp.eq.s32.totalorder %s32, 0
      %p111 = por %p109, %p110
      %p112 = scmp.ne.s32.totalorder %s100, %s101
      %p113 = scmp.eq.s32.totalorder %s33, 1
      %p114 = por %p112, %p113
      %p116 = scmp.ne.s32.totalorder %s101, %s115
      %p117 = scmp.eq.s32.totalorder %s33, 0
      %p118 = por %p116, %p117
      %s119 = ssub.s32 %s27, %s34
      %p120 = scmp.eq.s32.totalorder %s119, 0
      %s122 = sadd.s32 %s121, 1
      %s123 = scalar_select %p120, %s121, %s122
      %p126 = pneg %p120
      %p127 = scmp.eq.s32.totalorder %s27, 1
      %p128 = por %p126, %p127
      %p129 = scmp.ne.s32.totalorder %s121, %s124
      %p130 = scmp.eq.s32.totalorder %s27, 0
      %p131 = por %p129, %p130
      %p132 = scmp.ne.s32.totalorder %s121, %s124
      %p133 = scmp.eq.s32.totalorder %s32, 1
      %p134 = por %p132, %p133
      %p135 = scmp.ne.s32.totalorder %s124, %s125
      %p136 = scmp.eq.s32.totalorder %s32, 0
      %p137 = por %p135, %p136
      %p138 = scmp.ne.s32.totalorder %s124, %s125
      %p139 = scmp.eq.s32.totalorder %s33, 1
      %p140 = por %p138, %p139
      %p142 = scmp.ne.s32.totalorder %s125, %s141
      %p143 = scmp.eq.s32.totalorder %s33, 0
      %p144 = por %p142, %p143
      %s145 = ssub.s32 %s27, %s34
      %p146 = scmp.eq.s32.totalorder %s145, 0
      %s148 = sadd.s32 %s147, 1
      %s149 = scalar_select %p146, %s147, %s148
      %p152 = pneg %p146
      %p153 = scmp.eq.s32.totalorder %s27, 1
      %p154 = por %p152, %p153
      %p155 = scmp.ne.s32.totalorder %s147, %s150
      %p156 = scmp.eq.s32.totalorder %s27, 0
      %p157 = por %p155, %p156
      %p158 = scmp.ne.s32.totalorder %s147, %s150
      %p159 = scmp.eq.s32.totalorder %s32, 1
      %p160 = por %p158, %p159
      %p161 = scmp.ne.s32.totalorder %s150, %s151
      %p162 = scmp.eq.s32.totalorder %s32, 0
      %p163 = por %p161, %p162
      %p164 = scmp.ne.s32.totalorder %s150, %s151
      %p165 = scmp.eq.s32.totalorder %s33, 1
      %p166 = por %p164, %p165
      %p168 = scmp.ne.s32.totalorder %s151, %s167
      %p169 = scmp.eq.s32.totalorder %s33, 0
      %p170 = por %p168, %p169
      %s171 = ssub.s32 %s27, %s34
      %p172 = scmp.eq.s32.totalorder %s171, 0
      %s174 = sadd.s32 %s173, 1
      %s175 = scalar_select %p172, %s173, %s174
      %p178 = pneg %p172
      %p179 = scmp.eq.s32.totalorder %s27, 1
      %p180 = por %p178, %p179
      %p181 = scmp.ne.s32.totalorder %s173, %s176
      %p182 = scmp.eq.s32.totalorder %s27, 0
      %p183 = por %p181, %p182
      %p184 = scmp.ne.s32.totalorder %s173, %s176
      %p185 = scmp.eq.s32.totalorder %s32, 1
      %p186 = por %p184, %p185
      %p187 = scmp.ne.s32.totalorder %s176, %s177
      %p188 = scmp.eq.s32.totalorder %s32, 0
      %p189 = por %p187, %p188
      %p190 = scmp.ne.s32.totalorder %s176, %s177
      %p191 = scmp.eq.s32.totalorder %s33, 1
      %p192 = por %p190, %p191
      %p194 = scmp.ne.s32.totalorder %s177, %s193
      %p195 = scmp.eq.s32.totalorder %s33, 0
      %p196 = por %p194, %p195
      %s197 = ssub.s32 %s27, %s34
      %p198 = scmp.eq.s32.totalorder %s197, 0
      %s200 = sadd.s32 %s199, 1
      %s201 = scalar_select %p198, %s199, %s200
      %p204 = pneg %p198
      %p205 = scmp.eq.s32.totalorder %s27, 1
      %p206 = por %p204, %p205
      %p207 = scmp.ne.s32.totalorder %s199, %s202
      %p208 = scmp.eq.s32.totalorder %s27, 0
      %p209 = por %p207, %p208
      %p210 = scmp.ne.s32.totalorder %s199, %s202
      %p211 = scmp.eq.s32.totalorder %s32, 1
      %p212 = por %p210, %p211
      %p213 = scmp.ne.s32.totalorder %s202, %s203
      %p214 = scmp.eq.s32.totalorder %s32, 0
      %p215 = por %p213, %p214
      %p216 = scmp.ne.s32.totalorder %s202, %s203
      %p217 = scmp.eq.s32.totalorder %s33, 1
      %p218 = por %p216, %p217
      %p220 = scmp.ne.s32.totalorder %s203, %s219
      %p221 = scmp.eq.s32.totalorder %s33, 0
      %p222 = por %p220, %p221
      %s223 = ssub.s32 %s27, %s34
      %p224 = scmp.eq.s32.totalorder %s223, 0
      %s226 = sadd.s32 %s225, 1
      %s227 = scalar_select %p224, %s225, %s226
      %p230 = pneg %p224
      %p231 = scmp.eq.s32.totalorder %s27, 1
      %p232 = por %p230, %p231
      %p233 = scmp.ne.s32.totalorder %s225, %s228
      %p234 = scmp.eq.s32.totalorder %s27, 0
      %p235 = por %p233, %p234
      %p236 = scmp.ne.s32.totalorder %s225, %s228
      %p237 = scmp.eq.s32.totalorder %s32, 1
      %p238 = por %p236, %p237
      %p239 = scmp.ne.s32.totalorder %s228, %s229
      %p240 = scmp.eq.s32.totalorder %s32, 0
      %p241 = por %p239, %p240
      %p242 = scmp.ne.s32.totalorder %s228, %s229
      %p243 = scmp.eq.s32.totalorder %s33, 1
      %p244 = por %p242, %p243
      %p246 = scmp.ne.s32.totalorder %s229, %s245
      %p247 = scmp.eq.s32.totalorder %s33, 0
      %p248 = por %p246, %p247
      %s249 = ssub.s32 %s27, %s34
      %p250 = scmp.eq.s32.totalorder %s249, 0
      %s252 = sadd.s32 %s251, 1
      %s253 = scalar_select %p250, %s251, %s252
      %p256 = pneg %p250
      %p257 = scmp.eq.s32.totalorder %s27, 1
      %p258 = por %p256, %p257
      %p259 = scmp.ne.s32.totalorder %s251, %s254
      %p260 = scmp.eq.s32.totalorder %s27, 0
      %p261 = por %p259, %p260
      %p262 = scmp.ne.s32.totalorder %s251, %s254
      %p263 = scmp.eq.s32.totalorder %s32, 1
      %p264 = por %p262, %p263
      %p265 = scmp.ne.s32.totalorder %s254, %s255
      %p266 = scmp.eq.s32.totalorder %s32, 0
      %p267 = por %p265, %p266
      %p268 = scmp.ne.s32.totalorder %s254, %s255
      %p269 = scmp.eq.s32.totalorder %s33, 1
      %p270 = por %p268, %p269
      %p272 = scmp.ne.s32.totalorder %s255, %s271
      %p273 = scmp.eq.s32.totalorder %s33, 0
      %p274 = por %p272, %p273
      %s275 = ssub.s32 %s27, %s34
      %p276 = scmp.eq.s32.totalorder %s275, 0
      %s278 = sadd.s32 %s277, 1
      %s279 = scalar_select %p276, %s277, %s278
      %p282 = pneg %p276
      %p283 = scmp.eq.s32.totalorder %s27, 1
      %p284 = por %p282, %p283
      %p285 = scmp.ne.s32.totalorder %s277, %s280
      %p286 = scmp.eq.s32.totalorder %s27, 0
      %p287 = por %p285, %p286
      %p288 = scmp.ne.s32.totalorder %s277, %s280
      %p289 = scmp.eq.s32.totalorder %s32, 1
      %p290 = por %p288, %p289
      %p291 = scmp.ne.s32.totalorder %s280, %s281
      %p292 = scmp.eq.s32.totalorder %s32, 0
      %p293 = por %p291, %p292
      %p294 = scmp.ne.s32.totalorder %s280, %s281
      %p295 = scmp.eq.s32.totalorder %s33, 1
      %p296 = por %p294, %p295
      %p298 = scmp.ne.s32.totalorder %s281, %s297
      %p299 = scmp.eq.s32.totalorder %s33, 0
      %p300 = por %p298, %p299
      %s301 = ssub.s32 %s27, %s34
      %p302 = scmp.eq.s32.totalorder %s301, 0
      %s304 = sadd.s32 %s303, 1
      %s305 = scalar_select %p302, %s303, %s304
      %p308 = pneg %p302
      %p309 = scmp.eq.s32.totalorder %s27, 1
      %p310 = por %p308, %p309
      %p311 = scmp.ne.s32.totalorder %s303, %s306
      %p312 = scmp.eq.s32.totalorder %s27, 0
      %p313 = por %p311, %p312
      %p314 = scmp.ne.s32.totalorder %s303, %s306
      %p315 = scmp.eq.s32.totalorder %s32, 1
      %p316 = por %p314, %p315
      %p317 = scmp.ne.s32.totalorder %s306, %s307
      %p318 = scmp.eq.s32.totalorder %s32, 0
      %p319 = por %p317, %p318
      %p320 = scmp.ne.s32.totalorder %s306, %s307
      %p321 = scmp.eq.s32.totalorder %s33, 1
      %p322 = por %p320, %p321
      %p324 = scmp.ne.s32.totalorder %s307, %s323
      %p325 = scmp.eq.s32.totalorder %s33, 0
      %p326 = por %p324, %p325
      %s327 = ssub.s32 %s27, %s34
      %p328 = scmp.eq.s32.totalorder %s327, 0
      %s330 = sadd.s32 %s329, 1
      %s331 = scalar_select %p328, %s329, %s330
      %p334 = pneg %p328
      %p335 = scmp.eq.s32.totalorder %s27, 1
      %p336 = por %p334, %p335
      %p337 = scmp.ne.s32.totalorder %s329, %s332
      %p338 = scmp.eq.s32.totalorder %s27, 0
      %p339 = por %p337, %p338
      %p340 = scmp.ne.s32.totalorder %s329, %s332
      %p341 = scmp.eq.s32.totalorder %s32, 1
      %p342 = por %p340, %p341
      %p343 = scmp.ne.s32.totalorder %s332, %s333
      %p344 = scmp.eq.s32.totalorder %s32, 0
      %p345 = por %p343, %p344
      %p346 = scmp.ne.s32.totalorder %s332, %s333
      %p347 = scmp.eq.s32.totalorder %s33, 1
      %p348 = por %p346, %p347
      %p350 = scmp.ne.s32.totalorder %s333, %s349
      %p351 = scmp.eq.s32.totalorder %s33, 0
      %p352 = por %p350, %p351
      %s353 = ssub.s32 %s27, %s34
      %p354 = scmp.eq.s32.totalorder %s353, 0
      %s356 = sadd.s32 %s355, 1
      %s357 = scalar_select %p354, %s355, %s356
      %p360 = pneg %p354
      %p361 = scmp.eq.s32.totalorder %s27, 1
      %p362 = por %p360, %p361
      %p363 = scmp.ne.s32.totalorder %s355, %s358
      %p364 = scmp.eq.s32.totalorder %s27, 0
      %p365 = por %p363, %p364
      %p366 = scmp.ne.s32.totalorder %s355, %s358
      %p367 = scmp.eq.s32.totalorder %s32, 1
      %p368 = por %p366, %p367
      %p369 = scmp.ne.s32.totalorder %s358, %s359
      %p370 = scmp.eq.s32.totalorder %s32, 0
      %p371 = por %p369, %p370
      %p372 = scmp.ne.s32.totalorder %s358, %s359
      %p373 = scmp.eq.s32.totalorder %s33, 1
      %p374 = por %p372, %p373
      %p376 = scmp.ne.s32.totalorder %s359, %s375
      %p377 = scmp.eq.s32.totalorder %s33, 0
      %p378 = por %p376, %p377
      %s379 = ssub.s32 %s27, %s34
      %p380 = scmp.eq.s32.totalorder %s379, 0
      %s382 = sadd.s32 %s381, 1
      %s383 = scalar_select %p380, %s381, %s382
      %p386 = pneg %p380
      %p387 = scmp.eq.s32.totalorder %s27, 1
      %p388 = por %p386, %p387
      %p389 = scmp.ne.s32.totalorder %s381, %s384
      %p390 = scmp.eq.s32.totalorder %s27, 0
      %p391 = por %p389, %p390
      %p392 = scmp.ne.s32.totalorder %s381, %s384
      %p393 = scmp.eq.s32.totalorder %s32, 1
      %p394 = por %p392, %p393
      %p395 = scmp.ne.s32.totalorder %s384, %s385
      %p396 = scmp.eq.s32.totalorder %s32, 0
      %p397 = por %p395, %p396
      %p398 = scmp.ne.s32.totalorder %s384, %s385
      %p399 = scmp.eq.s32.totalorder %s33, 1
      %p400 = por %p398, %p399
      %p402 = scmp.ne.s32.totalorder %s385, %s401
      %p403 = scmp.eq.s32.totalorder %s33, 0
      %p404 = por %p402, %p403
      %s405 = ssub.s32 %s27, %s34
      %p406 = scmp.eq.s32.totalorder %s405, 0
      %s408 = sadd.s32 %s407, 1
      %s409 = scalar_select %p406, %s407, %s408
      %p412 = pneg %p406
      %p413 = scmp.eq.s32.totalorder %s27, 1
      %p414 = por %p412, %p413
      %p415 = scmp.ne.s32.totalorder %s407, %s410
      %p416 = scmp.eq.s32.totalorder %s27, 0
      %p417 = por %p415, %p416
      %p418 = scmp.ne.s32.totalorder %s407, %s410
      %p419 = scmp.eq.s32.totalorder %s32, 1
      %p420 = por %p418, %p419
      %p421 = scmp.ne.s32.totalorder %s410, %s411
      %p422 = scmp.eq.s32.totalorder %s32, 0
      %p423 = por %p421, %p422
      %p424 = scmp.ne.s32.totalorder %s410, %s411
      %p425 = scmp.eq.s32.totalorder %s33, 1
      %p426 = por %p424, %p425
      %p428 = scmp.ne.s32.totalorder %s411, %s427
      %p429 = scmp.eq.s32.totalorder %s33, 0
      %p430 = por %p428, %p429
      %s432 = sadd.s32 %s431, 1
      %p435 = scmp.eq.s32.totalorder %s27, 1
      %p436 = scmp.ne.s32.totalorder %s431, %s433
      %p437 = scmp.eq.s32.totalorder %s27, 0
      %p438 = por %p436, %p437
      %p439 = scmp.ne.s32.totalorder %s431, %s433
      %p440 = scmp.eq.s32.totalorder %s32, 1
      %p441 = por %p439, %p440
      %p442 = scmp.ne.s32.totalorder %s433, %s434
      %p443 = scmp.eq.s32.totalorder %s32, 0
      %p444 = por %p442, %p443
      %p445 = scmp.ne.s32.totalorder %s433, %s434
      %p446 = scmp.eq.s32.totalorder %s33, 1
      %p447 = por %p445, %p446
      %p449 = scmp.ne.s32.totalorder %s434, %s448
      %p450 = scmp.eq.s32.totalorder %s33, 0
      %p451 = por %p449, %p450
      %s453 = sadd.s32 %s452, 1
      %p456 = scmp.eq.s32.totalorder %s27, 1
      %p457 = scmp.ne.s32.totalorder %s452, %s454
      %p458 = scmp.eq.s32.totalorder %s27, 0
      %p459 = por %p457, %p458
      %p460 = scmp.ne.s32.totalorder %s452, %s454
      %p461 = scmp.eq.s32.totalorder %s32, 1
      %p462 = por %p460, %p461
      %p463 = scmp.ne.s32.totalorder %s454, %s455
      %p464 = scmp.eq.s32.totalorder %s32, 0
      %p465 = por %p463, %p464
      %p466 = scmp.ne.s32.totalorder %s454, %s455
      %p467 = scmp.eq.s32.totalorder %s33, 1
      %p468 = por %p466, %p467
      %p470 = scmp.ne.s32.totalorder %s455, %s469
      %p471 = scmp.eq.s32.totalorder %s33, 0
      %p472 = por %p470, %p471
      %s474 = sadd.s32 %s473, 1
      %p477 = scmp.eq.s32.totalorder %s27, 1
      %p478 = scmp.ne.s32.totalorder %s473, %s475
      %p479 = scmp.eq.s32.totalorder %s27, 0
      %p480 = por %p478, %p479
      %p481 = scmp.ne.s32.totalorder %s473, %s475
      %p482 = scmp.eq.s32.totalorder %s32, 1
      %p483 = por %p481, %p482
      %p484 = scmp.ne.s32.totalorder %s475, %s476
      %p485 = scmp.eq.s32.totalorder %s32, 0
      %p486 = por %p484, %p485
      %p487 = scmp.ne.s32.totalorder %s475, %s476
      %p488 = scmp.eq.s32.totalorder %s33, 1
      %p489 = por %p487, %p488
      %p491 = scmp.ne.s32.totalorder %s476, %s490
      %p492 = scmp.eq.s32.totalorder %s33, 0
      %p493 = por %p491, %p492
      %s495 = sadd.s32 %s494, 1
      %p498 = scmp.eq.s32.totalorder %s27, 1
      %p499 = scmp.ne.s32.totalorder %s494, %s496
      %p500 = scmp.eq.s32.totalorder %s27, 0
      %p501 = por %p499, %p500
      %p502 = scmp.ne.s32.totalorder %s494, %s496
      %p503 = scmp.eq.s32.totalorder %s32, 1
      %p504 = por %p502, %p503
      %p505 = scmp.ne.s32.totalorder %s496, %s497
      %p506 = scmp.eq.s32.totalorder %s32, 0
      %p507 = por %p505, %p506
      %p508 = scmp.ne.s32.totalorder %s496, %s497
      %p509 = scmp.eq.s32.totalorder %s33, 1
      %p510 = por %p508, %p509
      %p512 = scmp.ne.s32.totalorder %s497, %s511
      %p513 = scmp.eq.s32.totalorder %s33, 0
      %p514 = por %p512, %p513
      %s516 = sadd.s32 %s515, 1
      %p519 = scmp.eq.s32.totalorder %s27, 1
      %p520 = scmp.ne.s32.totalorder %s515, %s517
      %p521 = scmp.eq.s32.totalorder %s27, 0
      %p522 = por %p520, %p521
      %p523 = scmp.ne.s32.totalorder %s515, %s517
      %p524 = scmp.eq.s32.totalorder %s32, 1
      %p525 = por %p523, %p524
      %p526 = scmp.ne.s32.totalorder %s517, %s518
      %p527 = scmp.eq.s32.totalorder %s32, 0
      %p528 = por %p526, %p527
      %p529 = scmp.ne.s32.totalorder %s517, %s518
      %p530 = scmp.eq.s32.totalorder %s33, 1
      %p531 = por %p529, %p530
      %p533 = scmp.ne.s32.totalorder %s518, %s532
      %p534 = scmp.eq.s32.totalorder %s33, 0
      %p535 = por %p533, %p534
      %p536 = scmp.le.s32.totalorder 1, %s27
      %p537 = scmp.lt.s32.totalorder %s27, 3
      %p538 = pnand %p536, %p537
      %p539 = pneg %p538
      // Predicated region
      $region9: #{net_forward.1} parent=5 // pred_check
        _
      $region10: #{net_forward.1} parent=5 // pred_check_branch
        %541 = sbr.rel (%p538) target = $region12
      $region11: #{net_forward.1} parent=5 // pred_region
        %s542 = ssub.s32 %s27, 1
        // Predicated region
        $region13: #{net_forward.1} parent=11 // pred_check
          %p543 = pneg %p48
        $region14: #{net_forward.1} parent=11 // pred_check_branch
          %545 = sbr.rel (%p543) target = $region16
        $region15: #{net_forward.1} parent=11 // pred_region
          _
        $region16: #{net_forward.1} parent=11 // pred_fallthru
          _
        // Predicated region
        $region17: #{net_forward.1} parent=11 // pred_check
          %p546 = pneg %p69
        $region18: #{net_forward.1} parent=11 // pred_check_branch
          %548 = sbr.rel (%p546) target = $region20
        $region19: #{net_forward.1} parent=11 // pred_region
          _
        $region20: #{net_forward.1} parent=11 // pred_fallthru
          _
        // Predicated region
        $region21: #{net_forward.1} parent=11 // pred_check
          %p549 = pneg %p90
        $region22: #{net_forward.1} parent=11 // pred_check_branch
          %551 = sbr.rel (%p549) target = $region24
        $region23: #{net_forward.1} parent=11 // pred_region
          _
        $region24: #{net_forward.1} parent=11 // pred_fallthru
          _
        // Predicated region
        $region25: #{net_forward.1} parent=11 // pred_check
          %p552 = pneg %p111
        $region26: #{net_forward.1} parent=11 // pred_check_branch
          %554 = sbr.rel (%p552) target = $region28
        $region27: #{net_forward.1} parent=11 // pred_region
          _
        $region28: #{net_forward.1} parent=11 // pred_fallthru
          _
        // Predicated region
        $region29: #{net_forward.1} parent=11 // pred_check
          %p555 = pneg %p444
        $region30: #{net_forward.1} parent=11 // pred_check_branch
          %557 = sbr.rel (%p555) target = $region32
        $region31: #{net_forward.1} parent=11 // pred_region
          _
        $region32: #{net_forward.1} parent=11 // pred_fallthru
          _
        // Predicated region
        $region33: #{net_forward.1} parent=11 // pred_check
          %p558 = pneg %p465
        $region34: #{net_forward.1} parent=11 // pred_check_branch
          %560 = sbr.rel (%p558) target = $region36
        $region35: #{net_forward.1} parent=11 // pred_region
          _
        $region36: #{net_forward.1} parent=11 // pred_fallthru
          _
        // Predicated region
        $region37: #{net_forward.1} parent=11 // pred_check
          %p561 = pneg %p486
        $region38: #{net_forward.1} parent=11 // pred_check_branch
          %563 = sbr.rel (%p561) target = $region40
        $region39: #{net_forward.1} parent=11 // pred_region
          _
        $region40: #{net_forward.1} parent=11 // pred_fallthru
          _
        // Predicated region
        $region41: #{net_forward.1} parent=11 // pred_check
          %p564 = pneg %p507
        $region42: #{net_forward.1} parent=11 // pred_check_branch
          %566 = sbr.rel (%p564) target = $region44
        $region43: #{net_forward.1} parent=11 // pred_region
          _
        $region44: #{net_forward.1} parent=11 // pred_fallthru
          _
      $region12: #{net_forward.1} parent=5 // pred_fallthru
        _
      %p567 = scmp.lt.s32.totalorder %s27, 2
      // Predicated region
      $region45: #{net_forward.1} parent=5 // pred_check
        %p568 = pneg %p567
      $region46: #{net_forward.1} parent=5 // pred_check_branch
        %570 = sbr.rel (%p568) target = $region48
      $region47: #{net_forward.1} parent=5 // pred_region
        // Predicated region
        $region49: #{net_forward.1} parent=47 // pred_check
          %p571 = pneg %p131
        $region50: #{net_forward.1} parent=47 // pred_check_branch
          %573 = sbr.rel (%p571) target = $region52
        $region51: #{net_forward.1} parent=47 // pred_region
          %p574 = scmp.lt.s32.totalorder %s27, 1
          %s575 = scalar_select %p574, %s27, 1
          %s576 = smul.addr %s575, 4
          %s577 = smul.addr %s576, 4
          %s578 = scalar_lea.vmem %s4, %s577
        $region52: #{net_forward.1} parent=47 // pred_fallthru
          _
        // Predicated region
        $region53: #{net_forward.1} parent=47 // pred_check
          %p579 = pneg %p157
        $region54: #{net_forward.1} parent=47 // pred_check_branch
          %581 = sbr.rel (%p579) target = $region56
        $region55: #{net_forward.1} parent=47 // pred_region
          %p582 = scmp.lt.s32.totalorder %s27, 1
          %s583 = scalar_select %p582, %s27, 1
          %s584 = scalar_lea.vmem %s5, %s583
        $region56: #{net_forward.1} parent=47 // pred_fallthru
          _
        // Predicated region
        $region57: #{net_forward.1} parent=47 // pred_check
          %p585 = pneg %p183
        $region58: #{net_forward.1} parent=47 // pred_check_branch
          %587 = sbr.rel (%p585) target = $region60
        $region59: #{net_forward.1} parent=47 // pred_region
          %p588 = scmp.lt.s32.totalorder %s27, 1
          %s589 = scalar_select %p588, %s27, 1
          %s590 = smul.addr %s589, 4
          %s591 = smul.addr %s590, 4
          %s592 = scalar_lea.vmem %s6, %s591
        $region60: #{net_forward.1} parent=47 // pred_fallthru
          _
        // Predicated region
        $region61: #{net_forward.1} parent=47 // pred_check
          %p593 = pneg %p209
        $region62: #{net_forward.1} parent=47 // pred_check_branch
          %595 = sbr.rel (%p593) target = $region64
        $region63: #{net_forward.1} parent=47 // pred_region
          %p596 = scmp.lt.s32.totalorder %s27, 1
          %s597 = scalar_select %p596, %s27, 1
          %s598 = scalar_lea.vmem %s7, %s597
        $region64: #{net_forward.1} parent=47 // pred_fallthru
          _
        // Predicated region
        $region65: #{net_forward.1} parent=47 // pred_check
          %p599 = pneg %p235
        $region66: #{net_forward.1} parent=47 // pred_check_branch
          %601 = sbr.rel (%p599) target = $region68
        $region67: #{net_forward.1} parent=47 // pred_region
          %p602 = scmp.lt.s32.totalorder %s27, 1
          %s603 = scalar_select %p602, %s27, 1
          %s604 = scalar_lea.vmem %s8, %s603
        $region68: #{net_forward.1} parent=47 // pred_fallthru
          _
        // Predicated region
        $region69: #{net_forward.1} parent=47 // pred_check
          %p605 = pneg %p261
        $region70: #{net_forward.1} parent=47 // pred_check_branch
          %607 = sbr.rel (%p605) target = $region72
        $region71: #{net_forward.1} parent=47 // pred_region
          %p608 = scmp.lt.s32.totalorder %s27, 1
          %s609 = scalar_select %p608, %s27, 1
          %s610 = scalar_lea.vmem %s9, %s609
        $region72: #{net_forward.1} parent=47 // pred_fallthru
          _
        // Predicated region
        $region73: #{net_forward.1} parent=47 // pred_check
          %p611 = pneg %p287
        $region74: #{net_forward.1} parent=47 // pred_check_branch
          %613 = sbr.rel (%p611) target = $region76
        $region75: #{net_forward.1} parent=47 // pred_region
          %p614 = scmp.lt.s32.totalorder %s27, 1
          %s615 = scalar_select %p614, %s27, 1
          %s616 = smul.addr %s615, 4
          %s617 = smul.addr %s616, 4
          %s618 = scalar_lea.vmem %s10, %s617
        $region76: #{net_forward.1} parent=47 // pred_fallthru
          _
        // Predicated region
        $region77: #{net_forward.1} parent=47 // pred_check
          %p619 = pneg %p313
        $region78: #{net_forward.1} parent=47 // pred_check_branch
          %621 = sbr.rel (%p619) target = $region80
        $region79: #{net_forward.1} parent=47 // pred_region
          %p622 = scmp.lt.s32.totalorder %s27, 1
          %s623 = scalar_select %p622, %s27, 1
          %s624 = scalar_lea.vmem %s11, %s623
        $region80: #{net_forward.1} parent=47 // pred_fallthru
          _
        // Predicated region
        $region81: #{net_forward.1} parent=47 // pred_check
          %p625 = pneg %p339
        $region82: #{net_forward.1} parent=47 // pred_check_branch
          %627 = sbr.rel (%p625) target = $region84
        $region83: #{net_forward.1} parent=47 // pred_region
          %p628 = scmp.lt.s32.totalorder %s27, 1
          %s629 = scalar_select %p628, %s27, 1
          %s630 = smul.addr %s629, 8
          %s631 = smul.addr %s630, 4
          %s632 = scalar_lea.vmem %s12, %s631
        $region84: #{net_forward.1} parent=47 // pred_fallthru
          _
        // Predicated region
        $region85: #{net_forward.1} parent=47 // pred_check
          %p633 = pneg %p365
        $region86: #{net_forward.1} parent=47 // pred_check_branch
          %635 = sbr.rel (%p633) target = $region88
        $region87: #{net_forward.1} parent=47 // pred_region
          %p636 = scmp.lt.s32.totalorder %s27, 1
          %s637 = scalar_select %p636, %s27, 1
          %s638 = scalar_lea.vmem %s13, %s637
        $region88: #{net_forward.1} parent=47 // pred_fallthru
          _
        // Predicated region
        $region89: #{net_forward.1} parent=47 // pred_check
          %p639 = pneg %p391
        $region90: #{net_forward.1} parent=47 // pred_check_branch
          %641 = sbr.rel (%p639) target = $region92
        $region91: #{net_forward.1} parent=47 // pred_region
          %p642 = scmp.lt.s32.totalorder %s27, 1
          %s643 = scalar_select %p642, %s27, 1
          %s644 = scalar_lea.vmem %s14, %s643
        $region92: #{net_forward.1} parent=47 // pred_fallthru
          _
        // Predicated region
        $region93: #{net_forward.1} parent=47 // pred_check
          %p645 = pneg %p417
        $region94: #{net_forward.1} parent=47 // pred_check_branch
          %647 = sbr.rel (%p645) target = $region96
        $region95: #{net_forward.1} parent=47 // pred_region
          %p648 = scmp.lt.s32.totalorder %s27, 1
          %s649 = scalar_select %p648, %s27, 1
          %s650 = scalar_lea.vmem %s15, %s649
        $region96: #{net_forward.1} parent=47 // pred_fallthru
          _
      $region48: #{net_forward.1} parent=5 // pred_fallthru
        _
      %p651 = scmp.le.s32.totalorder 1, %s27
      %p652 = scmp.lt.s32.totalorder %s27, 3
      %p653 = pnand %p651, %p652
      %p654 = pneg %p653
      // Predicated region
      $region97: #{net_forward.1} parent=5 // pred_check
        _
      $region98: #{net_forward.1} parent=5 // pred_check_branch
        %656 = sbr.rel (%p653) target = $region100
      $region99: #{net_forward.1} parent=5 // pred_region
        %s657 = ssub.s32 %s27, 1
        %p658 = pneg %p48
        %p659 = pneg %p45
        %p660 = pneg %p69
        %p661 = pneg %p66
        %p662 = pneg %p90
        %p663 = pneg %p87
        %p664 = pneg %p111
        %p665 = pneg %p108
        %p666 = scmp.lt.s32.totalorder %s32, 1
        %s667 = scalar_select %p666, %s32, 1
        %s668 = smul.addr %s667, 4
        %s669 = smul.addr %s668, 4
        %s670 = scalar_lea.vmem %s4, %s669
        %p671 = pneg %p137
        %p672 = pneg %p134
        %p673 = scmp.lt.s32.totalorder %s32, 1
        %s674 = scalar_select %p673, %s32, 1
        %s675 = scalar_lea.vmem %s5, %s674
        %p676 = pneg %p163
        %p677 = pneg %p160
        %p678 = scmp.lt.s32.totalorder %s32, 1
        %s679 = scalar_select %p678, %s32, 1
        %s680 = smul.addr %s679, 4
        %s681 = smul.addr %s680, 4
        %s682 = scalar_lea.vmem %s6, %s681
        %p683 = pneg %p189
        %p684 = pneg %p186
        %p685 = scmp.lt.s32.totalorder %s32, 1
        %s686 = scalar_select %p685, %s32, 1
        %s687 = scalar_lea.vmem %s7, %s686
        %p688 = pneg %p215
        %p689 = pneg %p212
        %p690 = scmp.lt.s32.totalorder %s32, 1
        %s691 = scalar_select %p690, %s32, 1
        %s692 = scalar_lea.vmem %s8, %s691
        %p693 = pneg %p241
        %p694 = pneg %p238
        %p695 = scmp.lt.s32.totalorder %s32, 1
        %s696 = scalar_select %p695, %s32, 1
        %s697 = scalar_lea.vmem %s9, %s696
        %p698 = pneg %p267
        %p699 = pneg %p264
        %p700 = scmp.lt.s32.totalorder %s32, 1
        %s701 = scalar_select %p700, %s32, 1
        %s702 = smul.addr %s701, 4
        %s703 = smul.addr %s702, 4
        %s704 = scalar_lea.vmem %s10, %s703
        %p705 = pneg %p293
        %p706 = pneg %p290
        %p707 = scmp.lt.s32.totalorder %s32, 1
        %s708 = scalar_select %p707, %s32, 1
        %s709 = scalar_lea.vmem %s11, %s708
        %p710 = pneg %p319
        %p711 = pneg %p316
        %p712 = scmp.lt.s32.totalorder %s32, 1
        %s713 = scalar_select %p712, %s32, 1
        %s714 = smul.addr %s713, 8
        %s715 = smul.addr %s714, 4
        %s716 = scalar_lea.vmem %s12, %s715
        %p717 = pneg %p345
        %p718 = pneg %p342
        %p719 = scmp.lt.s32.totalorder %s32, 1
        %s720 = scalar_select %p719, %s32, 1
        %s721 = scalar_lea.vmem %s13, %s720
        %p722 = pneg %p371
        %p723 = pneg %p368
        %p724 = scmp.lt.s32.totalorder %s32, 1
        %s725 = scalar_select %p724, %s32, 1
        %s726 = scalar_lea.vmem %s14, %s725
        %p727 = pneg %p397
        %p728 = pneg %p394
        %p729 = scmp.lt.s32.totalorder %s32, 1
        %s730 = scalar_select %p729, %s32, 1
        %s731 = scalar_lea.vmem %s15, %s730
        %p732 = pneg %p423
        %p733 = pneg %p420
        %p734 = pneg %p444
        %p735 = pneg %p441
        %p736 = pneg %p465
        %p737 = pneg %p462
        %p738 = pneg %p486
        %p739 = pneg %p483
        %p740 = pneg %p507
        %p741 = pneg %p504
        %p742 = pneg %p528
        %p743 = pneg %p525
        %p744 = scmp.lt.s32.totalorder %s32, 1
        %s745 = scalar_select %p744, %s32, 1
        %s746 = smul.addr %s745, 4
        %s747 = smul.addr %s746, 4
        %s748 = scalar_lea.vmem %s4, %s747
        %p749 = scmp.lt.s32.totalorder %s32, 1
        %s750 = scalar_select %p749, %s32, 1
        %s751 = scalar_lea.vmem %s5, %s750
        %p752 = scmp.lt.s32.totalorder %s32, 1
        %s753 = scalar_select %p752, %s32, 1
        %s754 = smul.addr %s753, 4
        %s755 = smul.addr %s754, 4
        %s756 = scalar_lea.vmem %s6, %s755
        %p757 = scmp.lt.s32.totalorder %s32, 1
        %s758 = scalar_select %p757, %s32, 1
        %s759 = scalar_lea.vmem %s7, %s758
        %p760 = scmp.lt.s32.totalorder %s32, 1
        %s761 = scalar_select %p760, %s32, 1
        %s762 = scalar_lea.vmem %s8, %s761
        %p763 = scmp.lt.s32.totalorder %s32, 1
        %s764 = scalar_select %p763, %s32, 1
        %s765 = scalar_lea.vmem %s9, %s764
        %p766 = scmp.lt.s32.totalorder %s32, 1
        %s767 = scalar_select %p766, %s32, 1
        %s768 = smul.addr %s767, 4
        %s769 = smul.addr %s768, 4
        %s770 = scalar_lea.vmem %s10, %s769
        %p771 = scmp.lt.s32.totalorder %s32, 1
        %s772 = scalar_select %p771, %s32, 1
        %s773 = scalar_lea.vmem %s11, %s772
        %p774 = scmp.lt.s32.totalorder %s32, 1
        %s775 = scalar_select %p774, %s32, 1
        %s776 = smul.addr %s775, 8
        %s777 = smul.addr %s776, 4
        %s778 = scalar_lea.vmem %s12, %s777
        %p779 = scmp.lt.s32.totalorder %s32, 1
        %s780 = scalar_select %p779, %s32, 1
        %s781 = scalar_lea.vmem %s13, %s780
        %p782 = scmp.lt.s32.totalorder %s32, 1
        %s783 = scalar_select %p782, %s32, 1
        %s784 = scalar_lea.vmem %s14, %s783
        %p785 = scmp.lt.s32.totalorder %s32, 1
        %s786 = scalar_select %p785, %s32, 1
        %s787 = scalar_lea.vmem %s15, %s786
        %p789 = scmp.eq.s32.totalorder %s32, 0
        // Predicated region
        $region101: #{net_forward.1} parent=99 // pred_check
          %p790 = pneg %p789
        $region102: #{net_forward.1} parent=99 // pred_check_branch
          %792 = sbr.rel (%p790) target = $region104
        $region103: #{net_forward.1} parent=99 // pred_region
          %v793 = vld [vmem:[%s0] sm:$0xff]
          %v794 = vld [vmem:[%s0 + $0x8] sm:$0xff]
          %v795 = vld [vmem:[%s2] sm:$0x1]
          %v796 = vld [vmem:[%s3] sm:$0x1]
          %vm797 = vcmask 261120
          %v798 = vsel %vm797, %v793, 0.0
          %799 = vadd.xlane.f32.xlu0 %v798
          %v800 = vpop.xlane.xlu0 %799
          %v801 = vsel %vm797, %v794, 0.0
          %802 = vadd.xlane.f32.xlu0 %v801
          %v803 = vpop.xlane.xlu0 %802
          %v804 = vrcp.pop 32.0
          %v805 = vmul.f32 %v800, %v804
          %v806 = vmul.f32 %v803, %v804
          %v807 = vsub.f32 %v793, %v805
          %v808 = vsub.f32 %v794, %v806
          %v809 = vmul.f32 %v807, %v807
          %v810 = vmul.f32 %v808, %v808
          %v811 = vsel %vm797, %v809, 0.0
          %812 = vadd.xlane.f32.xlu0 %v811
          %v813 = vpop.xlane.xlu0 %812
          %v814 = vsel %vm797, %v810, 0.0
          %815 = vadd.xlane.f32.xlu0 %v814
          %v816 = vpop.xlane.xlu0 %815
          %v817 = vmul.f32 %v813, %v804
          %v818 = vmul.f32 %v816, %v804
          %v819 = vadd.f32 %v817, 1e-05
          %v820 = vadd.f32 %v818, 1e-05
          %v821 = vrsqrt.pop %v819
          %v822 = vrsqrt.pop %v820
          %v823 = vmul.f32 %v807, %v821
          %v824 = vmul.f32 %v808, %v822
          %v826 = vlaneseq
          %v827 = vshrl.u32 %v826, 7
          %v828 = vsub.s32 0, %v827
          %v829 = vrot.slane %v795, %v828
          %v831 = vmul.f32 %v823, %v829
          %v832 = vmul.f32 %v824, %v829
          %v834 = vlaneseq
          %v835 = vshrl.u32 %v834, 7
          %v836 = vsub.s32 0, %v835
          %v837 = vrot.slane %v796, %v836
          %v839 = vadd.f32 %v831, %v837
          %v840 = vadd.f32 %v832, %v837
          %841 = vst.msk [vmem:[#allocation2] sm:$0xff] %vm797, %v839
          %842 = vst.msk [vmem:[#allocation2 + $0x8] sm:$0xff] %vm797, %v840
          %843 = vst [vmem:[#allocation3] sm:$0x3] 0.0
        $region104: #{net_forward.1} parent=99 // pred_fallthru
          _
        %v844 = vld [vmem:[#allocation2] sm:$0xff]
        %v845 = vld [vmem:[#allocation2 + $0x8] sm:$0xff]
        %v846 = vld [vmem:[%s751] sm:$0x1]
        %v847 = vpack.c.bf16 %v845, %v844
        %v848 = vld [vmem:[%s748] sm:$0xf]
        %v849 = vld [vmem:[%s748 + $0x4] sm:$0xf]
        %v850 = vld [vmem:[%s748 + $0x8] sm:$0xf]
        %v851 = vld [vmem:[%s748 + $0xc] sm:$0xf]
        %v853 = vlaneseq
        %v854 = vshrl.u32 %v853, 7
        %v855 = vsub.s32 0, %v854
        %v856 = vrot.slane %v846, %v855
        %v862 = vunpack.c.l.b16 %v848
        %v863 = vunpack.c.l.b16 %v849
        %v864 = vunpack.c.l.b16 %v850
        %v865 = vunpack.c.l.b16 %v851
        %v866 = vpack.c.b16 %v863, %v862
        %v867 = vpack.c.b16 %v865, %v864
        %vm870 = vcmask 261120
        %v872 = vsel %vm870, %v847, 0
        %874 = vmatprep.subr.bf16.mxu0 0
        %875 = vmatpush1.bf16.msra.mxu0 %v866
        %876 = vmatprep.subr.bf16.mxu0 0
        %877 = vmatpush1.bf16.msra.mxu0 %v867
        %878 = vmatprep.subr.bf16.mxu0 0
        %879 = vmatpush1.bf16.msra.mxu0 0
        %880 = vmatprep.subr.bf16.mxu0 0
        %881 = vmatpush1.bf16.msra.mxu0 0
        %882 = vmatprep.subr.bf16.mxu0 0
        %883 = vmatpush1.bf16.msra.mxu0 0
        %884 = vmatprep.subr.bf16.mxu0 0
        %885 = vmatpush1.bf16.msra.mxu0 0
        %886 = vmatprep.subr.bf16.mxu0 0
        %887 = vmatpush1.bf16.msra.mxu0 0
        %888 = vmatprep.subr.bf16.mxu0 0
        %889 = vmatpush1.bf16.msra.mxu0 0
        %890 = vmatprep.subr.bf16.mxu0 0
        %891 = vmatpush1.bf16.msra.mxu0 0
        %892 = vmatprep.subr.bf16.mxu0 0
        %893 = vmatpush1.bf16.msra.mxu0 0
        %894 = vmatprep.subr.bf16.mxu0 0
        %895 = vmatpush1.bf16.msra.mxu0 0
        %896 = vmatprep.subr.bf16.mxu0 0
        %897 = vmatpush1.bf16.msra.mxu0 0
        %898 = vmatprep.subr.bf16.mxu0 0
        %899 = vmatpush1.bf16.msra.mxu0 0
        %900 = vmatprep.subr.bf16.mxu0 0
        %901 = vmatpush1.bf16.msra.mxu0 0
        %902 = vmatprep.subr.bf16.mxu0 0
        %903 = vmatpush1.bf16.msra.mxu0 0
        %904 = vmatprep.subr.bf16.mxu0 0
        %905 = vmatpush1.bf16.msra.mxu0 0
        %906 = vmatprep.mubr.bf16.mxu0 0
        %907 = vmatmul.mubr.bf16.gmra.mrb[0].mxu0 %v872
        %v908 = vpop.f32.mrb[0].mxu0
        %v909 = vadd.f32 %v856, %v908
        %v910 = vpop.f32.mrb[0].mxu0
        %v911 = vpop.f32.mrb[0].mxu0
        %v912 = vadd.f32 %v856, %v911
        %v913 = vpop.f32.mrb[0].mxu0
        %914 = vdwg.mxu0
        %v915 = vld [vmem:[%s1] sm:$0x1]
        %v916 = vpack.c.bf16 %v909, %v909
        %918 = vrot.lane.b32.xlu0 %v909, 96
        %v919 = vpop.permute.xlu0 %918
        %921 = vxpose.xlu0.b32.start [1/16] %v919, 128
        %922 = vxpose.xlu0.b32.cont [2/16] 0.0, 128
        %923 = vxpose.xlu0.b32.cont [3/16] 0.0, 128
        %924 = vxpose.xlu0.b32.cont [4/16] 0.0, 128
        %925 = vxpose.xlu0.b32.cont [5/16] 0.0, 128
        %926 = vxpose.xlu0.b32.cont [6/16] 0.0, 128
        %927 = vxpose.xlu0.b32.cont [7/16] 0.0, 128
        %928 = vxpose.xlu0.b32.cont [8/16] 0.0, 128
        %929 = vxpose.xlu0.b32.cont [9/16] 0.0, 128
        %930 = vxpose.xlu0.b32.cont [10/16] 0.0, 128
        %931 = vxpose.xlu0.b32.cont [11/16] 0.0, 128
        %932 = vxpose.xlu0.b32.cont [12/16] 0.0, 128
        %933 = vxpose.xlu0.b32.cont [13/16] 0.0, 128
        %934 = vxpose.xlu0.b32.cont [14/16] 0.0, 128
        %935 = vxpose.xlu0.b32.cont [15/16] 0.0, 128
        %936 = vxpose.xlu0.b32.end [16/16] 0.0, 128
        %v937 = vpop.trf.xlu0
        %v938 = vpop.trf.xlu0
        %v939 = vpop.trf.xlu0
        %v940 = vpop.trf.xlu0
        %v941 = vpop.trf.xlu0
        %v942 = vpop.trf.xlu0
        %v943 = vpop.trf.xlu0
        %v944 = vpop.trf.xlu0
        %v945 = vpop.trf.xlu0
        %v946 = vpop.trf.xlu0
        %v947 = vpop.trf.xlu0
        %v948 = vpop.trf.xlu0
        %v949 = vpop.trf.xlu0
        %v950 = vpop.trf.xlu0
        %v951 = vpop.trf.xlu0
        %v952 = vpop.trf.xlu0
        %v953 = vpack.c.bf16 %v937, %v937
        %vm954 = vcmask 64512
        %v956 = vsel %vm954, %v916, 0
        %vm958 = vcmask 1043456
        %v960 = vsel %vm958, %v953, 0
        %962 = vmatprep.subr.bf16.mxu0 0
        %963 = vmatpush1.bf16.msra.mxu0 %v960
        %964 = vmatprep.subr.bf16.mxu0 0
        %965 = vmatpush1.bf16.msra.mxu0 0
        %966 = vmatprep.subr.bf16.mxu0 0
        %967 = vmatpush1.bf16.msra.mxu0 0
        %968 = vmatprep.subr.bf16.mxu0 0
        %969 = vmatpush1.bf16.msra.mxu0 0
        %970 = vmatprep.subr.bf16.mxu0 0
        %971 = vmatpush1.bf16.msra.mxu0 0
        %972 = vmatprep.subr.bf16.mxu0 0
        %973 = vmatpush1.bf16.msra.mxu0 0
        %974 = vmatprep.subr.bf16.mxu0 0
        %975 = vmatpush1.bf16.msra.mxu0 0
        %976 = vmatprep.subr.bf16.mxu0 0
        %977 = vmatpush1.bf16.msra.mxu0 0
        %978 = vmatprep.subr.bf16.mxu0 0
        %979 = vmatpush1.bf16.msra.mxu0 0
        %980 = vmatprep.subr.bf16.mxu0 0
        %981 = vmatpush1.bf16.msra.mxu0 0
        %982 = vmatprep.subr.bf16.mxu0 0
        %983 = vmatpush1.bf16.msra.mxu0 0
        %984 = vmatprep.subr.bf16.mxu0 0
        %985 = vmatpush1.bf16.msra.mxu0 0
        %986 = vmatprep.subr.bf16.mxu0 0
        %987 = vmatpush1.bf16.msra.mxu0 0
        %988 = vmatprep.subr.bf16.mxu0 0
        %989 = vmatpush1.bf16.msra.mxu0 0
        %990 = vmatprep.subr.bf16.mxu0 0
        %991 = vmatpush1.bf16.msra.mxu0 0
        %992 = vmatprep.subr.bf16.mxu0 0
        %993 = vmatpush1.bf16.msra.mxu0 0
        %994 = vmatprep.mubr.bf16.mxu0 0
        %995 = vmatmul.mubr.bf16.gmra.mrb[0].mxu0 %v956
        %v996 = vpop.f32.mrb[0].mxu0
        %v997 = vadd.f32 0.0, %v996
        %v998 = vpop.f32.mrb[0].mxu0
        %v999 = vpop.f32.mrb[0].mxu0
        %v1000 = vpop.f32.mrb[0].mxu0
        %1001 = vdwg.mxu0
        %v1002 = vmul.f32 %v997, 0.35355338
        %v1003 = vlaneseq
        %v1004 = vshrl.u32 %v1003, 7
        %v1005 = vsub.s32 0, %v1004
        %v1006 = vrot.slane %v915, %v1005
        %v1007 = vadd.f32 %v1002, %v1006
        %v1008 = vsel %vm954, %v1007, -inf
        %1009 = vmax.xlane.f32.xlu0 %v1008
        %v1010 = vpop.xlane.xlu0 %1009
        %v1011 = vsub.f32 %v1007, %v1010
        %v1012 = vmul.f32 %v1011, 1.442695
        %v1013 = vpow.pop %v1012
        %v1014 = vsel %vm954, %v1013, 0.0
        %1015 = vadd.xlane.f32.xlu0 %v1014
        %v1016 = vpop.xlane.xlu0 %1015
        %v1017 = vrcp.pop %v1016
        %v1018 = vmul.f32 %v1013, %v1017
        %v1019 = vpack.c.bf16 %v1018, %v1018
        %1021 = vrot.lane.b32.xlu0 %v916, 64
        %v1022 = vpop.permute.xlu0 %1021
        %v1024 = vsel %vm954, %v1019, 0
        %v1027 = vsel %vm958, %v1022, 0
        %1029 = vmatprep.subr.bf16.mxu0 0
        %1030 = vmatpush1.bf16.msra.mxu0 %v1027
        %1031 = vmatprep.subr.bf16.mxu0 0
        %1032 = vmatpush1.bf16.msra.mxu0 0
        %1033 = vmatprep.subr.bf16.mxu0 0
        %1034 = vmatpush1.bf16.msra.mxu0 0
        %1035 = vmatprep.subr.bf16.mxu0 0
        %1036 = vmatpush1.bf16.msra.mxu0 0
        %1037 = vmatprep.subr.bf16.mxu0 0
        %1038 = vmatpush1.bf16.msra.mxu0 0
        %1039 = vmatprep.subr.bf16.mxu0 0
        %1040 = vmatpush1.bf16.msra.mxu0 0
        %1041 = vmatprep.subr.bf16.mxu0 0
        %1042 = vmatpush1.bf16.msra.mxu0 0
        %1043 = vmatprep.subr.bf16.mxu0 0
        %1044 = vmatpush1.bf16.msra.mxu0 0
        %1045 = vmatprep.subr.bf16.mxu0 0
        %1046 = vmatpush1.bf16.msra.mxu0 0
        %1047 = vmatprep.subr.bf16.mxu0 0
        %1048 = vmatpush1.bf16.msra.mxu0 0
        %1049 = vmatprep.subr.bf16.mxu0 0
        %1050 = vmatpush1.bf16.msra.mxu0 0
        %1051 = vmatprep.subr.bf16.mxu0 0
        %1052 = vmatpush1.bf16.msra.mxu0 0
        %1053 = vmatprep.subr.bf16.mxu0 0
        %1054 = vmatpush1.bf16.msra.mxu0 0
        %1055 = vmatprep.subr.bf16.mxu0 0
        %1056 = vmatpush1.bf16.msra.mxu0 0
        %1057 = vmatprep.subr.bf16.mxu0 0
        %1058 = vmatpush1.bf16.msra.mxu0 0
        %1059 = vmatprep.subr.bf16.mxu0 0
        %1060 = vmatpush1.bf16.msra.mxu0 0
        %1061 = vmatprep.mubr.bf16.mxu0 0
        %1062 = vmatmul.mubr.bf16.gmra.mrb[0].mxu0 %v1024
        %v1063 = vpop.f32.mrb[0].mxu0
        %v1064 = vadd.f32 0.0, %v1063
        %v1065 = vpop.f32.mrb[0].mxu0
        %v1066 = vpop.f32.mrb[0].mxu0
        %v1067 = vpop.f32.mrb[0].mxu0
        %1068 = vdwg.mxu0
        %1069 = vrot.lane.b32.xlu0 %v909, 88
        %v1070 = vpop.permute.xlu0 %1069
        %1072 = vxpose.xlu0.b32.start [1/16] %v1070, 128
        %1073 = vxpose.xlu0.b32.cont [2/16] 0.0, 128
        %1074 = vxpose.xlu0.b32.cont [3/16] 0.0, 128
        %1075 = vxpose.xlu0.b32.cont [4/16] 0.0, 128
        %1076 = vxpose.xlu0.b32.cont [5/16] 0.0, 128
        %1077 = vxpose.xlu0.b32.cont [6/16] 0.0, 128
        %1078 = vxpose.xlu0.b32.cont [7/16] 0.0, 128
        %1079 = vxpose.xlu0.b32.cont [8/16] 0.0, 128
        %1080 = vxpose.xlu0.b32.cont [9/16] 0.0, 128
        %1081 = vxpose.xlu0.b32.cont [10/16] 0.0, 128
        %1082 = vxpose.xlu0.b32.cont [11/16] 0.0, 128
        %1083 = vxpose.xlu0.b32.cont [12/16] 0.0, 128
        %1084 = vxpose.xlu0.b32.cont [13/16] 0.0, 128
        %1085 = vxpose.xlu0.b32.cont [14/16] 0.0, 128
        %1086 = vxpose.xlu0.b32.cont [15/16] 0.0, 128
        %1087 = vxpose.xlu0.b32.end [16/16] 0.0, 128
        %v1088 = vpop.trf.xlu0
        %v1089 = vpop.trf.xlu0
        %v1090 = vpop.trf.xlu0
        %v1091 = vpop.trf.xlu0
        %v1092 = vpop.trf.xlu0
        %v1093 = vpop.trf.xlu0
        %v1094 = vpop.trf.xlu0
        %v1095 = vpop.trf.xlu0
        %v1096 = vpop.trf.xlu0
        %v1097 = vpop.trf.xlu0
        %v1098 = vpop.trf.xlu0
        %v1099 = vpop.trf.xlu0
        %v1100 = vpop.trf.xlu0
        %v1101 = vpop.trf.xlu0
        %v1102 = vpop.trf.xlu0
        %v1103 = vpop.trf.xlu0
        %v1104 = vpack.c.bf16 %v1088, %v1088
        %1105 = vrot.lane.b32.xlu0 %v916, 120
        %v1106 = vpop.permute.xlu0 %1105
        %v1108 = vsel %vm954, %v1106, 0
        %v1111 = vsel %vm958, %v1104, 0
        %1113 = vmatprep.subr.bf16.mxu0 0
        %1114 = vmatpush1.bf16.msra.mxu0 %v1111
        %1115 = vmatprep.subr.bf16.mxu0 0
        %1116 = vmatpush1.bf16.msra.mxu0 0
        %1117 = vmatprep.subr.bf16.mxu0 0
        %1118 = vmatpush1.bf16.msra.mxu0 0
        %1119 = vmatprep.subr.bf16.mxu0 0
        %1120 = vmatpush1.bf16.msra.mxu0 0
        %1121 = vmatprep.subr.bf16.mxu0 0
        %1122 = vmatpush1.bf16.msra.mxu0 0
        %1123 = vmatprep.subr.bf16.mxu0 0
        %1124 = vmatpush1.bf16.msra.mxu0 0
        %1125 = vmatprep.subr.bf16.mxu0 0
        %1126 = vmatpush1.bf16.msra.mxu0 0
        %1127 = vmatprep.subr.bf16.mxu0 0
        %1128 = vmatpush1.bf16.msra.mxu0 0
        %1129 = vmatprep.subr.bf16.mxu0 0
        %1130 = vmatpush1.bf16.msra.mxu0 0
        %1131 = vmatprep.subr.bf16.mxu0 0
        %1132 = vmatpush1.bf16.msra.mxu0 0
        %1133 = vmatprep.subr.bf16.mxu0 0
        %1134 = vmatpush1.bf16.msra.mxu0 0
        %1135 = vmatprep.subr.bf16.mxu0 0
        %1136 = vmatpush1.bf16.msra.mxu0 0
        %1137 = vmatprep.subr.bf16.mxu0 0
        %1138 = vmatpush1.bf16.msra.mxu0 0
        %1139 = vmatprep.subr.bf16.mxu0 0
        %1140 = vmatpush1.bf16.msra.mxu0 0
        %1141 = vmatprep.subr.bf16.mxu0 0
        %1142 = vmatpush1.bf16.msra.mxu0 0
        %1143 = vmatprep.subr.bf16.mxu0 0
        %1144 = vmatpush1.bf16.msra.mxu0 0
        %1145 = vmatprep.mubr.bf16.mxu0 0
        %1146 = vmatmul.mubr.bf16.gmra.mrb[0].mxu0 %v1108
        %v1147 = vpop.f32.mrb[0].mxu0
        %v1148 = vadd.f32 0.0, %v1147
        %v1149 = vpop.f32.mrb[0].mxu0
        %v1150 = vpop.f32.mrb[0].mxu0
        %v1151 = vpop.f32.mrb[0].mxu0
        %1152 = vdwg.mxu0
        %v1153 = vmul.f32 %v1148, 0.35355338
        %v1154 = vadd.f32 %v1153, %v1006
        %v1155 = vsel %vm954, %v1154, -inf
        %1156 = vmax.xlane.f32.xlu0 %v1155
        %v1157 = vpop.xlane.xlu0 %1156
        %v1158 = vsub.f32 %v1154, %v1157
        %v1159 = vmul.f32 %v1158, 1.442695
        %v1160 = vpow.pop %v1159
        %v1161 = vsel %vm954, %v1160, 0.0
        %1162 = vadd.xlane.f32.xlu0 %v1161
        %v1163 = vpop.xlane.xlu0 %1162
        %v1164 = vrcp.pop %v1163
        %v1165 = vmul.f32 %v1160, %v1164
        %v1166 = vpack.c.bf16 %v1165, %v1165
        %1167 = vrot.lane.b32.xlu0 %v916, 56
        %v1168 = vpop.permute.xlu0 %1167
        %v1170 = vsel %vm954, %v1166, 0
        %v1173 = vsel %vm958, %v1168, 0
        %1175 = vmatprep.subr.bf16.mxu0 0
        %1176 = vmatpush1.bf16.msra.mxu0 %v1173
        %1177 = vmatprep.subr.bf16.mxu0 0
        %1178 = vmatpush1.bf16.msra.mxu0 0
        %1179 = vmatprep.subr.bf16.mxu0 0
        %1180 = vmatpush1.bf16.msra.mxu0 0
        %1181 = vmatprep.subr.bf16.mxu0 0
        %1182 = vmatpush1.bf16.msra.mxu0 0
        %1183 = vmatprep.subr.bf16.mxu0 0
        %1184 = vmatpush1.bf16.msra.mxu0 0
        %1185 = vmatprep.subr.bf16.mxu0 0
        %1186 = vmatpush1.bf16.msra.mxu0 0
        %1187 = vmatprep.subr.bf16.mxu0 0
        %1188 = vmatpush1.bf16.msra.mxu0 0
        %1189 = vmatprep.subr.bf16.mxu0 0
        %1190 = vmatpush1.bf16.msra.mxu0 0
        %1191 = vmatprep.subr.bf16.mxu0 0
        %1192 = vmatpush1.bf16.msra.mxu0 0
        %1193 = vmatprep.subr.bf16.mxu0 0
        %1194 = vmatpush1.bf16.msra.mxu0 0
        %1195 = vmatprep.subr.bf16.mxu0 0
        %1196 = vmatpush1.bf16.msra.mxu0 0
        %1197 = vmatprep.subr.bf16.mxu0 0
        %1198 = vmatpush1.bf16.msra.mxu0 0
        %1199 = vmatprep.subr.bf16.mxu0 0
        %1200 = vmatpush1.bf16.msra.mxu0 0
        %1201 = vmatprep.subr.bf16.mxu0 0
        %1202 = vmatpush1.bf16.msra.mxu0 0
        %1203 = vmatprep.subr.bf16.mxu0 0
        %1204 = vmatpush1.bf16.msra.mxu0 0
        %1205 = vmatprep.subr.bf16.mxu0 0
        %1206 = vmatpush1.bf16.msra.mxu0 0
        %1207 = vmatprep.mubr.bf16.mxu0 0
        %1208 = vmatmul.mubr.bf16.gmra.mrb[0].mxu0 %v1170
        %v1209 = vpop.f32.mrb[0].mxu0
        %v1210 = vadd.f32 0.0, %v1209
        %v1211 = vpop.f32.mrb[0].mxu0
        %v1212 = vpop.f32.mrb[0].mxu0
        %v1213 = vpop.f32.mrb[0].mxu0
        %1214 = vdwg.mxu0
        %1215 = vrot.lane.b32.xlu0 %v909, 80
        %v1216 = vpop.permute.xlu0 %1215
        %1218 = vxpose.xlu0.b32.start [1/16] %v1216, 128
        %1219 = vxpose.xlu0.b32.cont [2/16] 0.0, 128
        %1220 = vxpose.xlu0.b32.cont [3/16] 0.0, 128
        %1221 = vxpose.xlu0.b32.cont [4/16] 0.0, 128
        %1222 = vxpose.xlu0.b32.cont [5/16] 0.0, 128
        %1223 = vxpose.xlu0.b32.cont [6/16] 0.0, 128
        %1224 = vxpose.xlu0.b32.cont [7/16] 0.0, 128
        %1225 = vxpose.xlu0.b32.cont [8/16] 0.0, 128
        %1226 = vxpose.xlu0.b32.cont [9/16] 0.0, 128
        %1227 = vxpose.xlu0.b32.cont [10/16] 0.0, 128
        %1228 = vxpose.xlu0.b32.cont [11/16] 0.0, 128
        %1229 = vxpose.xlu0.b32.cont [12/16] 0.0, 128
        %1230 = vxpose.xlu0.b32.cont [13/16] 0.0, 128
        %1231 = vxpose.xlu0.b32.cont [14/16] 0.0, 128
        %1232 = vxpose.xlu0.b32.cont [15/16] 0.0, 128
        %1233 = vxpose.xlu0.b32.end [16/16] 0.0, 128
        %v1234 = vpop.trf.xlu0
        %v1235 = vpop.trf.xlu0
        %v1236 = vpop.trf.xlu0
        %v1237 = vpop.trf.xlu0
        %v1238 = vpop.trf.xlu0
        %v1239 = vpop.trf.xlu0
        %v1240 = vpop.trf.xlu0
        %v1241 = vpop.trf.xlu0
        %v1242 = vpop.trf.xlu0
        %v1243 = vpop.trf.xlu0
        %v1244 = vpop.trf.xlu0
        %v1245 = vpop.trf.xlu0
        %v1246 = vpop.trf.xlu0
        %v1247 = vpop.trf.xlu0
        %v1248 = vpop.trf.xlu0
        %v1249 = vpop.trf.xlu0
        %v1250 = vpack.c.bf16 %v1234, %v1234
        %1251 = vrot.lane.b32.xlu0 %v916, 112
        %v1252 = vpop.permute.xlu0 %1251
        %v1254 = vsel %vm954, %v1252, 0
        %v1257 = vsel %vm958, %v1250, 0
        %1259 = vmatprep.subr.bf16.mxu0 0
        %1260 = vmatpush1.bf16.msra.mxu0 %v1257
        %1261 = vmatprep.subr.bf16.mxu0 0
        %1262 = vmatpush1.bf16.msra.mxu0 0
        %1263 = vmatprep.subr.bf16.mxu0 0
        %1264 = vmatpush1.bf16.msra.mxu0 0
        %1265 = vmatprep.subr.bf16.mxu0 0
        %1266 = vmatpush1.bf16.msra.mxu0 0
        %1267 = vmatprep.subr.bf16.mxu0 0
        %1268 = vmatpush1.bf16.msra.mxu0 0
        %1269 = vmatprep.subr.bf16.mxu0 0
        %1270 = vmatpush1.bf16.msra.mxu0 0
        %1271 = vmatprep.subr.bf16.mxu0 0
        %1272 = vmatpush1.bf16.msra.mxu0 0
        %1273 = vmatprep.subr.bf16.mxu0 0
        %1274 = vmatpush1.bf16.msra.mxu0 0
        %1275 = vmatprep.subr.bf16.mxu0 0
        %1276 = vmatpush1.bf16.msra.mxu0 0
        %1277 = vmatprep.subr.bf16.mxu0 0
        %1278 = vmatpush1.bf16.msra.mxu0 0
        %1279 = vmatprep.subr.bf16.mxu0 0
        %1280 = vmatpush1.bf16.msra.mxu0 0
        %1281 = vmatprep.subr.bf16.mxu0 0
        %1282 = vmatpush1.bf16.msra.mxu0 0
        %1283 = vmatprep.subr.bf16.mxu0 0
        %1284 = vmatpush1.bf16.msra.mxu0 0
        %1285 = vmatprep.subr.bf16.mxu0 0
        %1286 = vmatpush1.bf16.msra.mxu0 0
        %1287 = vmatprep.subr.bf16.mxu0 0
        %1288 = vmatpush1.bf16.msra.mxu0 0
        %1289 = vmatprep.subr.bf16.mxu0 0
        %1290 = vmatpush1.bf16.msra.mxu0 0
        %1291 = vmatprep.mubr.bf16.mxu0 0
        %1292 = vmatmul.mubr.bf16.gmra.mrb[0].mxu0 %v1254
        %v1293 = vpop.f32.mrb[0].mxu0
        %v1294 = vadd.f32 0.0, %v1293
        %v1295 = vpop.f32.mrb[0].mxu0
        %v1296 = vpop.f32.mrb[0].mxu0
        %v1297 = vpop.f32.mrb[0].mxu0
        %1298 = vdwg.mxu0
        %v1299 = vmul.f32 %v1294, 0.35355338
        %v1300 = vadd.f32 %v1299, %v1006
        %v1301 = vsel %vm954, %v1300, -inf
        %1302 = vmax.xlane.f32.xlu0 %v1301
        %v1303 = vpop.xlane.xlu0 %1302
        %v1304 = vsub.f32 %v1300, %v1303
        %v1305 = vmul.f32 %v1304, 1.442695
        %v1306 = vpow.pop %v1305
        %v1307 = vsel %vm954, %v1306, 0.0
        %1308 = vadd.xlane.f32.xlu0 %v1307
        %v1309 = vpop.xlane.xlu0 %1308
        %v1310 = vrcp.pop %v1309
        %v1311 = vmul.f32 %v1306, %v1310
        %v1312 = vpack.c.bf16 %v1311, %v1311
        %1313 = vrot.lane.b32.xlu0 %v916, 48
        %v1314 = vpop.permute.xlu0 %1313
        %v1316 = vsel %vm954, %v1312, 0
        %v1319 = vsel %vm958, %v1314, 0
        %1321 = vmatprep.subr.bf16.mxu0 0
        %1322 = vmatpush1.bf16.msra.mxu0 %v1319
        %1323 = vmatprep.subr.bf16.mxu0 0
        %1324 = vmatpush1.bf16.msra.mxu0 0
        %1325 = vmatprep.subr.bf16.mxu0 0
        %1326 = vmatpush1.bf16.msra.mxu0 0
        %1327 = vmatprep.subr.bf16.mxu0 0
        %1328 = vmatpush1.bf16.msra.mxu0 0
        %1329 = vmatprep.subr.bf16.mxu0 0
        %1330 = vmatpush1.bf16.msra.mxu0 0
        %1331 = vmatprep.subr.bf16.mxu0 0
        %1332 = vmatpush1.bf16.msra.mxu0 0
        %1333 = vmatprep.subr.bf16.mxu0 0
        %1334 = vmatpush1.bf16.msra.mxu0 0
        %1335 = vmatprep.subr.bf16.mxu0 0
        %1336 = vmatpush1.bf16.msra.mxu0 0
        %1337 = vmatprep.subr.bf16.mxu0 0
        %1338 = vmatpush1.bf16.msra.mxu0 0
        %1339 = vmatprep.subr.bf16.mxu0 0
        %1340 = vmatpush1.bf16.msra.mxu0 0
        %1341 = vmatprep.subr.bf16.mxu0 0
        %1342 = vmatpush1.bf16.msra.mxu0 0
        %1343 = vmatprep.subr.bf16.mxu0 0
        %1344 = vmatpush1.bf16.msra.mxu0 0
        %1345 = vmatprep.subr.bf16.mxu0 0
        %1346 = vmatpush1.bf16.msra.mxu0 0
        %1347 = vmatprep.subr.bf16.mxu0 0
        %1348 = vmatpush1.bf16.msra.mxu0 0
        %1349 = vmatprep.subr.bf16.mxu0 0
        %1350 = vmatpush1.bf16.msra.mxu0 0
        %1351 = vmatprep.subr.bf16.mxu0 0
        %1352 = vmatpush1.bf16.msra.mxu0 0
        %1353 = vmatprep.mubr.bf16.mxu0 0
        %1354 = vmatmul.mubr.bf16.gmra.mrb[0].mxu0 %v1316
        %v1355 = vpop.f32.mrb[0].mxu0
        %v1356 = vadd.f32 0.0, %v1355
        %v1357 = vpop.f32.mrb[0].mxu0
        %v1358 = vpop.f32.mrb[0].mxu0
        %v1359 = vpop.f32.mrb[0].mxu0
        %1360 = vdwg.mxu0
        %1361 = vrot.lane.b32.xlu0 %v909, 72
        %v1362 = vpop.permute.xlu0 %1361
        %1364 = vxpose.xlu0.b32.start [1/16] %v1362, 128
        %1365 = vxpose.xlu0.b32.cont [2/16] 0.0, 128
        %1366 = vxpose.xlu0.b32.cont [3/16] 0.0, 128
        %1367 = vxpose.xlu0.b32.cont [4/16] 0.0, 128
        %1368 = vxpose.xlu0.b32.cont [5/16] 0.0, 128
        %1369 = vxpose.xlu0.b32.cont [6/16] 0.0, 128
        %1370 = vxpose.xlu0.b32.cont [7/16] 0.0, 128
        %1371 = vxpose.xlu0.b32.cont [8/16] 0.0, 128
        %1372 = vxpose.xlu0.b32.cont [9/16] 0.0, 128
        %1373 = vxpose.xlu0.b32.cont [10/16] 0.0, 128
        %1374 = vxpose.xlu0.b32.cont [11/16] 0.0, 128
        %1375 = vxpose.xlu0.b32.cont [12/16] 0.0, 128
        %1376 = vxpose.xlu0.b32.cont [13/16] 0.0, 128
        %1377 = vxpose.xlu0.b32.cont [14/16] 0.0, 128
        %1378 = vxpose.xlu0.b32.cont [15/16] 0.0, 128
        %1379 = vxpose.xlu0.b32.end [16/16] 0.0, 128
        %v1380 = vpop.trf.xlu0
        %v1381 = vpop.trf.xlu0
        %v1382 = vpop.trf.xlu0
        %v1383 = vpop.trf.xlu0
        %v1384 = vpop.trf.xlu0
        %v1385 = vpop.trf.xlu0
        %v1386 = vpop.trf.xlu0
        %v1387 = vpop.trf.xlu0
        %v1388 = vpop.trf.xlu0
        %v1389 = vpop.trf.xlu0
        %v1390 = vpop.trf.xlu0
        %v1391 = vpop.trf.xlu0
        %v1392 = vpop.trf.xlu0
        %v1393 = vpop.trf.xlu0
        %v1394 = vpop.trf.xlu0
        %v1395 = vpop.trf.xlu0
        %v1396 = vpack.c.bf16 %v1380, %v1380
        %1397 = vrot.lane.b32.xlu0 %v916, 104
        %v1398 = vpop.permute.xlu0 %1397
        %v1400 = vsel %vm954, %v1398, 0
        %v1403 = vsel %vm958, %v1396, 0
        %1405 = vmatprep.subr.bf16.mxu0 0
        %1406 = vmatpush1.bf16.msra.mxu0 %v1403
        %1407 = vmatprep.subr.bf16.mxu0 0
        %1408 = vmatpush1.bf16.msra.mxu0 0
        %1409 = vmatprep.subr.bf16.mxu0 0
        %1410 = vmatpush1.bf16.msra.mxu0 0
        %1411 = vmatprep.subr.bf16.mxu0 0
        %1412 = vmatpush1.bf16.msra.mxu0 0
        %1413 = vmatprep.subr.bf16.mxu0 0
        %1414 = vmatpush1.bf16.msra.mxu0 0
        %1415 = vmatprep.subr.bf16.mxu0 0
        %1416 = vmatpush1.bf16.msra.mxu0 0
        %1417 = vmatprep.subr.bf16.mxu0 0
        %1418 = vmatpush1.bf16.msra.mxu0 0
        %1419 = vmatprep.subr.bf16.mxu0 0
        %1420 = vmatpush1.bf16.msra.mxu0 0
        %1421 = vmatprep.subr.bf16.mxu0 0
        %1422 = vmatpush1.bf16.msra.mxu0 0
        %1423 = vmatprep.subr.bf16.mxu0 0
        %1424 = vmatpush1.bf16.msra.mxu0 0
        %1425 = vmatprep.subr.bf16.mxu0 0
        %1426 = vmatpush1.bf16.msra.mxu0 0
        %1427 = vmatprep.subr.bf16.mxu0 0
        %1428 = vmatpush1.bf16.msra.mxu0 0
        %1429 = vmatprep.subr.bf16.mxu0 0
        %1430 = vmatpush1.bf16.msra.mxu0 0
        %1431 = vmatprep.subr.bf16.mxu0 0
        %1432 = vmatpush1.bf16.msra.mxu0 0
        %1433 = vmatprep.subr.bf16.mxu0 0
        %1434 = vmatpush1.bf16.msra.mxu0 0
        %1435 = vmatprep.subr.bf16.mxu0 0
        %1436 = vmatpush1.bf16.msra.mxu0 0
        %1437 = vmatprep.mubr.bf16.mxu0 0
        %1438 = vmatmul.mubr.bf16.gmra.mrb[0].mxu0 %v1400
        %v1439 = vpop.f32.mrb[0].mxu0
        %v1440 = vadd.f32 0.0, %v1439
        %v1441 = vpop.f32.mrb[0].mxu0
        %v1442 = vpop.f32.mrb[0].mxu0
        %v1443 = vpop.f32.mrb[0].mxu0
        %1444 = vdwg.mxu0
        %v1445 = vmul.f32 %v1440, 0.35355338
        %v1446 = vadd.f32 %v1445, %v1006
        %v1447 = vsel %vm954, %v1446, -inf
        %1448 = vmax.xlane.f32.xlu0 %v1447
        %v1449 = vpop.xlane.xlu0 %1448
        %v1450 = vsub.f32 %v1446, %v1449
        %v1451 = vmul.f32 %v1450, 1.442695
        %v1452 = vpow.pop %v1451
        %v1453 = vsel %vm954, %v1452, 0.0
        %1454 = vadd.xlane.f32.xlu0 %v1453
        %v1455 = vpop.xlane.xlu0 %1454
        %v1456 = vrcp.pop %v1455
        %v1457 = vmul.f32 %v1452, %v1456
        %v1458 = vpack.c.bf16 %v1457, %v1457
        %1459 = vrot.lane.b32.xlu0 %v916, 40
        %v1460 = vpop.permute.xlu0 %1459
        %v1462 = vsel %vm954, %v1458, 0
        %v1465 = vsel %vm958, %v1460, 0
        %1467 = vmatprep.subr.bf16.mxu0 0
        %1468 = vmatpush1.bf16.msra.mxu0 %v1465
        %1469 = vmatprep.subr.bf16.mxu0 0
        %1470 = vmatpush1.bf16.msra.mxu0 0
        %1471 = vmatprep.subr.bf16.mxu0 0
        %1472 = vmatpush1.bf16.msra.mxu0 0
        %1473 = vmatprep.subr.bf16.mxu0 0
        %1474 = vmatpush1.bf16.msra.mxu0 0
        %1475 = vmatprep.subr.bf16.mxu0 0
        %1476 = vmatpush1.bf16.msra.mxu0 0
        %1477 = vmatprep.subr.bf16.mxu0 0
        %1478 = vmatpush1.bf16.msra.mxu0 0
        %1479 = vmatprep.subr.bf16.mxu0 0
        %1480 = vmatpush1.bf16.msra.mxu0 0
        %1481 = vmatprep.subr.bf16.mxu0 0
        %1482 = vmatpush1.bf16.msra.mxu0 0
        %1483 = vmatprep.subr.bf16.mxu0 0
        %1484 = vmatpush1.bf16.msra.mxu0 0
        %1485 = vmatprep.subr.bf16.mxu0 0
        %1486 = vmatpush1.bf16.msra.mxu0 0
        %1487 = vmatprep.subr.bf16.mxu0 0
        %1488 = vmatpush1.bf16.msra.mxu0 0
        %1489 = vmatprep.subr.bf16.mxu0 0
        %1490 = vmatpush1.bf16.msra.mxu0 0
        %1491 = vmatprep.subr.bf16.mxu0 0
        %1492 = vmatpush1.bf16.msra.mxu0 0
        %1493 = vmatprep.subr.bf16.mxu0 0
        %1494 = vmatpush1.bf16.msra.mxu0 0
        %1495 = vmatprep.subr.bf16.mxu0 0
        %1496 = vmatpush1.bf16.msra.mxu0 0
        %1497 = vmatprep.subr.bf16.mxu0 0
        %1498 = vmatpush1.bf16.msra.mxu0 0
        %1499 = vmatprep.mubr.bf16.mxu0 0
        %1500 = vmatmul.mubr.bf16.gmra.mrb[0].mxu0 %v1462
        %v1501 = vpop.f32.mrb[0].mxu0
        %v1502 = vadd.f32 0.0, %v1501
        %v1503 = vpop.f32.mrb[0].mxu0
        %v1504 = vpop.f32.mrb[0].mxu0
        %v1505 = vpop.f32.mrb[0].mxu0
        %1506 = vdwg.mxu0
        %1508 = vrot.lane.b32.xlu0 %v1210, 8
        %v1509 = vpop.permute.xlu0 %1508
        %1512 = vrot.lane.b32.xlu0 %v1356, 16
        %v1513 = vpop.permute.xlu0 %1512
        %1516 = vrot.lane.b32.xlu0 %v1502, 24
        %v1517 = vpop.permute.xlu0 %1516
        %v1519 = vsel %vm954, %v1064, %v1509
        %vm1520 = vcmask 130048
        %v1521 = vsel %vm1520, %v1519, %v1513
        %vm1522 = vcmask 195584
        %v1523 = vsel %vm1522, %v1521, %v1517
        %v1524 = vld [vmem:[%s1 + $0x1] sm:$0x1]
        %v1525 = vpack.c.bf16 %v912, %v912
        %1527 = vrot.lane.b32.xlu0 %v912, 96
        %v1528 = vpop.permute.xlu0 %1527
        %1530 = vxpose.xlu0.b32.start [1/16] %v1528, 128
        %1531 = vxpose.xlu0.b32.cont [2/16] 0.0, 128
        %1532 = vxpose.xlu0.b32.cont [3/16] 0.0, 128
        %1533 = vxpose.xlu0.b32.cont [4/16] 0.0, 128
        %1534 = vxpose.xlu0.b32.cont [5/16] 0.0, 128
        %1535 = vxpose.xlu0.b32.cont [6/16] 0.0, 128
        %1536 = vxpose.xlu0.b32.cont [7/16] 0.0, 128
        %1537 = vxpose.xlu0.b32.cont [8/16] 0.0, 128
        %1538 = vxpose.xlu0.b32.cont [9/16] 0.0, 128
        %1539 = vxpose.xlu0.b32.cont [10/16] 0.0, 128
        %1540 = vxpose.xlu0.b32.cont [11/16] 0.0, 128
        %1541 = vxpose.xlu0.b32.cont [12/16] 0.0, 128
        %1542 = vxpose.xlu0.b32.cont [13/16] 0.0, 128
        %1543 = vxpose.xlu0.b32.cont [14/16] 0.0, 128
        %1544 = vxpose.xlu0.b32.cont [15/16] 0.0, 128
        %1545 = vxpose.xlu0.b32.end [16/16] 0.0, 128
        %v1546 = vpop.trf.xlu0
        %v1547 = vpop.trf.xlu0
        %v1548 = vpop.trf.xlu0
        %v1549 = vpop.trf.xlu0
        %v1550 = vpop.trf.xlu0
        %v1551 = vpop.trf.xlu0
        %v1552 = vpop.trf.xlu0
        %v1553 = vpop.trf.xlu0
        %v1554 = vpop.trf.xlu0
        %v1555 = vpop.trf.xlu0
        %v1556 = vpop.trf.xlu0
        %v1557 = vpop.trf.xlu0
        %v1558 = vpop.trf.xlu0
        %v1559 = vpop.trf.xlu0
        %v1560 = vpop.trf.xlu0
        %v1561 = vpop.trf.xlu0
        %v1562 = vpack.c.bf16 %v1546, %v1546
        %v1564 = vsel %vm954, %v1525, 0
        %v1567 = vsel %vm958, %v1562, 0
        %1569 = vmatprep.subr.bf16.mxu0 0
        %1570 = vmatpush1.bf16.msra.mxu0 %v1567
        %1571 = vmatprep.subr.bf16.mxu0 0
        %1572 = vmatpush1.bf16.msra.mxu0 0
        %1573 = vmatprep.subr.bf16.mxu0 0
        %1574 = vmatpush1.bf16.msra.mxu0 0
        %1575 = vmatprep.subr.bf16.mxu0 0
        %1576 = vmatpush1.bf16.msra.mxu0 0
        %1577 = vmatprep.subr.bf16.mxu0 0
        %1578 = vmatpush1.bf16.msra.mxu0 0
        %1579 = vmatprep.subr.bf16.mxu0 0
        %1580 = vmatpush1.bf16.msra.mxu0 0
        %1581 = vmatprep.subr.bf16.mxu0 0
        %1582 = vmatpush1.bf16.msra.mxu0 0
        %1583 = vmatprep.subr.bf16.mxu0 0
        %1584 = vmatpush1.bf16.msra.mxu0 0
        %1585 = vmatprep.subr.bf16.mxu0 0
        %1586 = vmatpush1.bf16.msra.mxu0 0
        %1587 = vmatprep.subr.bf16.mxu0 0
        %1588 = vmatpush1.bf16.msra.mxu0 0
        %1589 = vmatprep.subr.bf16.mxu0 0
        %1590 = vmatpush1.bf16.msra.mxu0 0
        %1591 = vmatprep.subr.bf16.mxu0 0
        %1592 = vmatpush1.bf16.msra.mxu0 0
        %1593 = vmatprep.subr.bf16.mxu0 0
        %1594 = vmatpush1.bf16.msra.mxu0 0
        %1595 = vmatprep.subr.bf16.mxu0 0
        %1596 = vmatpush1.bf16.msra.mxu0 0
        %1597 = vmatprep.subr.bf16.mxu0 0
        %1598 = vmatpush1.bf16.msra.mxu0 0
        %1599 = vmatprep.subr.bf16.mxu0 0
        %1600 = vmatpush1.bf16.msra.mxu0 0
        %1601 = vmatprep.mubr.bf16.mxu0 0
        %1602 = vmatmul.mubr.bf16.gmra.mrb[0].mxu0 %v1564
        %v1603 = vpop.f32.mrb[0].mxu0
        %v1604 = vadd.f32 0.0, %v1603
        %v1605 = vpop.f32.mrb[0].mxu0
        %v1606 = vpop.f32.mrb[0].mxu0
        %v1607 = vpop.f32.mrb[0].mxu0
        %1608 = vdwg.mxu0
        %v1609 = vmul.f32 %v1604, 0.35355338
        %v1610 = vlaneseq
        %v1611 = vshrl.u32 %v1610, 7
        %v1612 = vsub.s32 0, %v1611
        %v1613 = vrot.slane %v1524, %v1612
        %v1614 = vadd.f32 %v1609, %v1613
        %v1615 = vsel %vm954, %v1614, -inf
        %1616 = vmax.xlane.f32.xlu0 %v1615
        %v1617 = vpop.xlane.xlu0 %1616
        %v1618 = vsub.f32 %v1614, %v1617
        %v1619 = vmul.f32 %v1618, 1.442695
        %v1620 = vpow.pop %v1619
        %v1621 = vsel %vm954, %v1620, 0.0
        %1622 = vadd.xlane.f32.xlu0 %v1621
        %v1623 = vpop.xlane.xlu0 %1622
        %v1624 = vrcp.pop %v1623
        %v1625 = vmul.f32 %v1620, %v1624
        %v1626 = vpack.c.bf16 %v1625, %v1625
        %1628 = vrot.lane.b32.xlu0 %v1525, 64
        %v1629 = vpop.permute.xlu0 %1628
        %v1631 = vsel %vm954, %v1626, 0
        %v1634 = vsel %vm958, %v1629, 0
        %1636 = vmatprep.subr.bf16.mxu0 0
        %1637 = vmatpush1.bf16.msra.mxu0 %v1634
        %1638 = vmatprep.subr.bf16.mxu0 0
        %1639 = vmatpush1.bf16.msra.mxu0 0
        %1640 = vmatprep.subr.bf16.mxu0 0
        %1641 = vmatpush1.bf16.msra.mxu0 0
        %1642 = vmatprep.subr.bf16.mxu0 0
        %1643 = vmatpush1.bf16.msra.mxu0 0
        %1644 = vmatprep.subr.bf16.mxu0 0
        %1645 = vmatpush1.bf16.msra.mxu0 0
        %1646 = vmatprep.subr.bf16.mxu0 0
        %1647 = vmatpush1.bf16.msra.mxu0 0
        %1648 = vmatprep.subr.bf16.mxu0 0
        %1649 = vmatpush1.bf16.msra.mxu0 0
        %1650 = vmatprep.subr.bf16.mxu0 0
        %1651 = vmatpush1.bf16.msra.mxu0 0
        %1652 = vmatprep.subr.bf16.mxu0 0
        %1653 = vmatpush1.bf16.msra.mxu0 0
        %1654 = vmatprep.subr.bf16.mxu0 0
        %1655 = vmatpush1.bf16.msra.mxu0 0
        %1656 = vmatprep.subr.bf16.mxu0 0
        %1657 = vmatpush1.bf16.msra.mxu0 0
        %1658 = vmatprep.subr.bf16.mxu0 0
        %1659 = vmatpush1.bf16.msra.mxu0 0
        %1660 = vmatprep.subr.bf16.mxu0 0
        %1661 = vmatpush1.bf16.msra.mxu0 0
        %1662 = vmatprep.subr.bf16.mxu0 0
        %1663 = vmatpush1.bf16.msra.mxu0 0
        %1664 = vmatprep.subr.bf16.mxu0 0
        %1665 = vmatpush1.bf16.msra.mxu0 0
        %1666 = vmatprep.subr.bf16.mxu0 0
        %1667 = vmatpush1.bf16.msra.mxu0 0
        %1668 = vmatprep.mubr.bf16.mxu0 0
        %1669 = vmatmul.mubr.bf16.gmra.mrb[0].mxu0 %v1631
        %v1670 = vpop.f32.mrb[0].mxu0
        %v1671 = vadd.f32 0.0, %v1670
        %v1672 = vpop.f32.mrb[0].mxu0
        %v1673 = vpop.f32.mrb[0].mxu0
        %v1674 = vpop.f32.mrb[0].mxu0
        %1675 = vdwg.mxu0
        %1676 = vrot.lane.b32.xlu0 %v912, 88
        %v1677 = vpop.permute.xlu0 %1676
        %1679 = vxpose.xlu0.b32.start [1/16] %v1677, 128
        %1680 = vxpose.xlu0.b32.cont [2/16] 0.0, 128
        %1681 = vxpose.xlu0.b32.cont [3/16] 0.0, 128
        %1682 = vxpose.xlu0.b32.cont [4/16] 0.0, 128
        %1683 = vxpose.xlu0.b32.cont [5/16] 0.0, 128
        %1684 = vxpose.xlu0.b32.cont [6/16] 0.0, 128
        %1685 = vxpose.xlu0.b32.cont [7/16] 0.0, 128
        %1686 = vxpose.xlu0.b32.cont [8/16] 0.0, 128
        %1687 = vxpose.xlu0.b32.cont [9/16] 0.0, 128
        %1688 = vxpose.xlu0.b32.cont [10/16] 0.0, 128
        %1689 = vxpose.xlu0.b32.cont [11/16] 0.0, 128
        %1690 = vxpose.xlu0.b32.cont [12/16] 0.0, 128
        %1691 = vxpose.xlu0.b32.cont [13/16] 0.0, 128
        %1692 = vxpose.xlu0.b32.cont [14/16] 0.0, 128
        %1693 = vxpose.xlu0.b32.cont [15/16] 0.0, 128
        %1694 = vxpose.xlu0.b32.end [16/16] 0.0, 128
        %v1695 = vpop.trf.xlu0
        %v1696 = vpop.trf.xlu0
        %v1697 = vpop.trf.xlu0
        %v1698 = vpop.trf.xlu0
        %v1699 = vpop.trf.xlu0
        %v1700 = vpop.trf.xlu0
        %v1701 = vpop.trf.xlu0
        %v1702 = vpop.trf.xlu0
        %v1703 = vpop.trf.xlu0
        %v1704 = vpop.trf.xlu0
        %v1705 = vpop.trf.xlu0
        %v1706 = vpop.trf.xlu0
        %v1707 = vpop.trf.xlu0
        %v1708 = vpop.trf.xlu0
        %v1709 = vpop.trf.xlu0
        %v1710 = vpop.trf.xlu0
        %v1711 = vpack.c.bf16 %v1695, %v1695
        %1712 = vrot.lane.b32.xlu0 %v1525, 120
        %v1713 = vpop.permute.xlu0 %1712
        %v1715 = vsel %vm954, %v1713, 0
        %v1718 = vsel %vm958, %v1711, 0
        %1720 = vmatprep.subr.bf16.mxu0 0
        %1721 = vmatpush1.bf16.msra.mxu0 %v1718
        %1722 = vmatprep.subr.bf16.mxu0 0
        %1723 = vmatpush1.bf16.msra.mxu0 0
        %1724 = vmatprep.subr.bf16.mxu0 0
        %1725 = vmatpush1.bf16.msra.mxu0 0
        %1726 = vmatprep.subr.bf16.mxu0 0
        %1727 = vmatpush1.bf16.msra.mxu0 0
        %1728 = vmatprep.subr.bf16.mxu0 0
        %1729 = vmatpush1.bf16.msra.mxu0 0
        %1730 = vmatprep.subr.bf16.mxu0 0
        %1731 = vmatpush1.bf16.msra.mxu0 0
        %1732 = vmatprep.subr.bf16.mxu0 0
        %1733 = vmatpush1.bf16.msra.mxu0 0
        %1734 = vmatprep.subr.bf16.mxu0 0
        %1735 = vmatpush1.bf16.msra.mxu0 0
        %1736 = vmatprep.subr.bf16.mxu0 0
        %1737 = vmatpush1.bf16.msra.mxu0 0
        %1738 = vmatprep.subr.bf16.mxu0 0
        %1739 = vmatpush1.bf16.msra.mxu0 0
        %1740 = vmatprep.subr.bf16.mxu0 0
        %1741 = vmatpush1.bf16.msra.mxu0 0
        %1742 = vmatprep.subr.bf16.mxu0 0
        %1743 = vmatpush1.bf16.msra.mxu0 0
        %1744 = vmatprep.subr.bf16.mxu0 0
        %1745 = vmatpush1.bf16.msra.mxu0 0
        %1746 = vmatprep.subr.bf16.mxu0 0
        %1747 = vmatpush1.bf16.msra.mxu0 0
        %1748 = vmatprep.subr.bf16.mxu0 0
        %1749 = vmatpush1.bf16.msra.mxu0 0
        %1750 = vmatprep.subr.bf16.mxu0 0
        %1751 = vmatpush1.bf16.msra.mxu0 0
        %1752 = vmatprep.mubr.bf16.mxu0 0
        %1753 = vmatmul.mubr.bf16.gmra.mrb[0].mxu0 %v1715
        %v1754 = vpop.f32.mrb[0].mxu0
        %v1755 = vadd.f32 0.0, %v1754
        %v1756 = vpop.f32.mrb[0].mxu0
        %v1757 = vpop.f32.mrb[0].mxu0
        %v1758 = vpop.f32.mrb[0].mxu0
        %1759 = vdwg.mxu0
        %v1760 = vmul.f32 %v1755, 0.35355338
        %v1761 = vadd.f32 %v1760, %v1613
        %v1762 = vsel %vm954, %v1761, -inf
        %1763 = vmax.xlane.f32.xlu0 %v1762
        %v1764 = vpop.xlane.xlu0 %1763
        %v1765 = vsub.f32 %v1761, %v1764
        %v1766 = vmul.f32 %v1765, 1.442695
        %v1767 = vpow.pop %v1766
        %v1768 = vsel %vm954, %v1767, 0.0
        %1769 = vadd.xlane.f32.xlu0 %v1768
        %v1770 = vpop.xlane.xlu0 %1769
        %v1771 = vrcp.pop %v1770
        %v1772 = vmul.f32 %v1767, %v1771
        %v1773 = vpack.c.bf16 %v1772, %v1772
        %1774 = vrot.lane.b32.xlu0 %v1525, 56
        %v1775 = vpop.permute.xlu0 %1774
        %v1777 = vsel %vm954, %v1773, 0
        %v1780 = vsel %vm958, %v1775, 0
        %1782 = vmatprep.subr.bf16.mxu0 0
        %1783 = vmatpush1.bf16.msra.mxu0 %v1780
        %1784 = vmatprep.subr.bf16.mxu0 0
        %1785 = vmatpush1.bf16.msra.mxu0 0
        %1786 = vmatprep.subr.bf16.mxu0 0
        %1787 = vmatpush1.bf16.msra.mxu0 0
        %1788 = vmatprep.subr.bf16.mxu0 0
        %1789 = vmatpush1.bf16.msra.mxu0 0
        %1790 = vmatprep.subr.bf16.mxu0 0
        %1791 = vmatpush1.bf16.msra.mxu0 0
        %1792 = vmatprep.subr.bf16.mxu0 0
        %1793 = vmatpush1.bf16.msra.mxu0 0
        %1794 = vmatprep.subr.bf16.mxu0 0
        %1795 = vmatpush1.bf16.msra.mxu0 0
        %1796 = vmatprep.subr.bf16.mxu0 0
        %1797 = vmatpush1.bf16.msra.mxu0 0
        %1798 = vmatprep.subr.bf16.mxu0 0
        %1799 = vmatpush1.bf16.msra.mxu0 0
        %1800 = vmatprep.subr.bf16.mxu0 0
        %1801 = vmatpush1.bf16.msra.mxu0 0
        %1802 = vmatprep.subr.bf16.mxu0 0
        %1803 = vmatpush1.bf16.msra.mxu0 0
        %1804 = vmatprep.subr.bf16.mxu0 0
        %1805 = vmatpush1.bf16.msra.mxu0 0
        %1806 = vmatprep.subr.bf16.mxu0 0
        %1807 = vmatpush1.bf16.msra.mxu0 0
        %1808 = vmatprep.subr.bf16.mxu0 0
        %1809 = vmatpush1.bf16.msra.mxu0 0
        %1810 = vmatprep.subr.bf16.mxu0 0
        %1811 = vmatpush1.bf16.msra.mxu0 0
        %1812 = vmatprep.subr.bf16.mxu0 0
        %1813 = vmatpush1.bf16.msra.mxu0 0
        %1814 = vmatprep.mubr.bf16.mxu0 0
        %1815 = vmatmul.mubr.bf16.gmra.mrb[0].mxu0 %v1777
        %v1816 = vpop.f32.mrb[0].mxu0
        %v1817 = vadd.f32 0.0, %v1816
        %v1818 = vpop.f32.mrb[0].mxu0
        %v1819 = vpop.f32.mrb[0].mxu0
        %v1820 = vpop.f32.mrb[0].mxu0
        %1821 = vdwg.mxu0
        %1822 = vrot.lane.b32.xlu0 %v912, 80
        %v1823 = vpop.permute.xlu0 %1822
        %1825 = vxpose.xlu0.b32.start [1/16] %v1823, 128
        %1826 = vxpose.xlu0.b32.cont [2/16] 0.0, 128
        %1827 = vxpose.xlu0.b32.cont [3/16] 0.0, 128
        %1828 = vxpose.xlu0.b32.cont [4/16] 0.0, 128
        %1829 = vxpose.xlu0.b32.cont [5/16] 0.0, 128
        %1830 = vxpose.xlu0.b32.cont [6/16] 0.0, 128
        %1831 = vxpose.xlu0.b32.cont [7/16] 0.0, 128
        %1832 = vxpose.xlu0.b32.cont [8/16] 0.0, 128
        %1833 = vxpose.xlu0.b32.cont [9/16] 0.0, 128
        %1834 = vxpose.xlu0.b32.cont [10/16] 0.0, 128
        %1835 = vxpose.xlu0.b32.cont [11/16] 0.0, 128
        %1836 = vxpose.xlu0.b32.cont [12/16] 0.0, 128
        %1837 = vxpose.xlu0.b32.cont [13/16] 0.0, 128
        %1838 = vxpose.xlu0.b32.cont [14/16] 0.0, 128
        %1839 = vxpose.xlu0.b32.cont [15/16] 0.0, 128
        %1840 = vxpose.xlu0.b32.end [16/16] 0.0, 128
        %v1841 = vpop.trf.xlu0
        %v1842 = vpop.trf.xlu0
        %v1843 = vpop.trf.xlu0
        %v1844 = vpop.trf.xlu0
        %v1845 = vpop.trf.xlu0
        %v1846 = vpop.trf.xlu0
        %v1847 = vpop.trf.xlu0
        %v1848 = vpop.trf.xlu0
        %v1849 = vpop.trf.xlu0
        %v1850 = vpop.trf.xlu0
        %v1851 = vpop.trf.xlu0
        %v1852 = vpop.trf.xlu0
        %v1853 = vpop.trf.xlu0
        %v1854 = vpop.trf.xlu0
        %v1855 = vpop.trf.xlu0
        %v1856 = vpop.trf.xlu0
        %v1857 = vpack.c.bf16 %v1841, %v1841
        %1858 = vrot.lane.b32.xlu0 %v1525, 112
        %v1859 = vpop.permute.xlu0 %1858
        %v1861 = vsel %vm954, %v1859, 0
        %v1864 = vsel %vm958, %v1857, 0
        %1866 = vmatprep.subr.bf16.mxu0 0
        %1867 = vmatpush1.bf16.msra.mxu0 %v1864
        %1868 = vmatprep.subr.bf16.mxu0 0
        %1869 = vmatpush1.bf16.msra.mxu0 0
        %1870 = vmatprep.subr.bf16.mxu0 0
        %1871 = vmatpush1.bf16.msra.mxu0 0
        %1872 = vmatprep.subr.bf16.mxu0 0
        %1873 = vmatpush1.bf16.msra.mxu0 0
        %1874 = vmatprep.subr.bf16.mxu0 0
        %1875 = vmatpush1.bf16.msra.mxu0 0
        %1876 = vmatprep.subr.bf16.mxu0 0
        %1877 = vmatpush1.bf16.msra.mxu0 0
        %1878 = vmatprep.subr.bf16.mxu0 0
        %1879 = vmatpush1.bf16.msra.mxu0 0
        %1880 = vmatprep.subr.bf16.mxu0 0
        %1881 = vmatpush1.bf16.msra.mxu0 0
        %1882 = vmatprep.subr.bf16.mxu0 0
        %1883 = vmatpush1.bf16.msra.mxu0 0
        %1884 = vmatprep.subr.bf16.mxu0 0
        %1885 = vmatpush1.bf16.msra.mxu0 0
        %1886 = vmatprep.subr.bf16.mxu0 0
        %1887 = vmatpush1.bf16.msra.mxu0 0
        %1888 = vmatprep.subr.bf16.mxu0 0
        %1889 = vmatpush1.bf16.msra.mxu0 0
        %1890 = vmatprep.subr.bf16.mxu0 0
        %1891 = vmatpush1.bf16.msra.mxu0 0
        %1892 = vmatprep.subr.bf16.mxu0 0
        %1893 = vmatpush1.bf16.msra.mxu0 0
        %1894 = vmatprep.subr.bf16.mxu0 0
        %1895 = vmatpush1.bf16.msra.mxu0 0
        %1896 = vmatprep.subr.bf16.mxu0 0
        %1897 = vmatpush1.bf16.msra.mxu0 0
        %1898 = vmatprep.mubr.bf16.mxu0 0
        %1899 = vmatmul.mubr.bf16.gmra.mrb[0].mxu0 %v1861
        %v1900 = vpop.f32.mrb[0].mxu0
        %v1901 = vadd.f32 0.0, %v1900
        %v1902 = vpop.f32.mrb[0].mxu0
        %v1903 = vpop.f32.mrb[0].mxu0
        %v1904 = vpop.f32.mrb[0].mxu0
        %1905 = vdwg.mxu0
        %v1906 = vmul.f32 %v1901, 0.35355338
        %v1907 = vadd.f32 %v1906, %v1613
        %v1908 = vsel %vm954, %v1907, -inf
        %1909 = vmax.xlane.f32.xlu0 %v1908
        %v1910 = vpop.xlane.xlu0 %1909
        %v1911 = vsub.f32 %v1907, %v1910
        %v1912 = vmul.f32 %v1911, 1.442695
        %v1913 = vpow.pop %v1912
        %v1914 = vsel %vm954, %v1913, 0.0
        %1915 = vadd.xlane.f32.xlu0 %v1914
        %v1916 = vpop.xlane.xlu0 %1915
        %v1917 = vrcp.pop %v1916
        %v1918 = vmul.f32 %v1913, %v1917
        %v1919 = vpack.c.bf16 %v1918, %v1918
        %1920 = vrot.lane.b32.xlu0 %v1525, 48
        %v1921 = vpop.permute.xlu0 %1920
        %v1923 = vsel %vm954, %v1919, 0
        %v1926 = vsel %vm958, %v1921, 0
        %1928 = vmatprep.subr.bf16.mxu0 0
        %1929 = vmatpush1.bf16.msra.mxu0 %v1926
        %1930 = vmatprep.subr.bf16.mxu0 0
        %1931 = vmatpush1.bf16.msra.mxu0 0
        %1932 = vmatprep.subr.bf16.mxu0 0
        %1933 = vmatpush1.bf16.msra.mxu0 0
        %1934 = vmatprep.subr.bf16.mxu0 0
        %1935 = vmatpush1.bf16.msra.mxu0 0
        %1936 = vmatprep.subr.bf16.mxu0 0
        %1937 = vmatpush1.bf16.msra.mxu0 0
        %1938 = vmatprep.subr.bf16.mxu0 0
        %1939 = vmatpush1.bf16.msra.mxu0 0
        %1940 = vmatprep.subr.bf16.mxu0 0
        %1941 = vmatpush1.bf16.msra.mxu0 0
        %1942 = vmatprep.subr.bf16.mxu0 0
        %1943 = vmatpush1.bf16.msra.mxu0 0
        %1944 = vmatprep.subr.bf16.mxu0 0
        %1945 = vmatpush1.bf16.msra.mxu0 0
        %1946 = vmatprep.subr.bf16.mxu0 0
        %1947 = vmatpush1.bf16.msra.mxu0 0
        %1948 = vmatprep.subr.bf16.mxu0 0
        %1949 = vmatpush1.bf16.msra.mxu0 0
        %1950 = vmatprep.subr.bf16.mxu0 0
        %1951 = vmatpush1.bf16.msra.mxu0 0
        %1952 = vmatprep.subr.bf16.mxu0 0
        %1953 = vmatpush1.bf16.msra.mxu0 0
        %1954 = vmatprep.subr.bf16.mxu0 0
        %1955 = vmatpush1.bf16.msra.mxu0 0
        %1956 = vmatprep.subr.bf16.mxu0 0
        %1957 = vmatpush1.bf16.msra.mxu0 0
        %1958 = vmatprep.subr.bf16.mxu0 0
        %1959 = vmatpush1.bf16.msra.mxu0 0
        %1960 = vmatprep.mubr.bf16.mxu0 0
        %1961 = vmatmul.mubr.bf16.gmra.mrb[0].mxu0 %v1923
        %v1962 = vpop.f32.mrb[0].mxu0
        %v1963 = vadd.f32 0.0, %v1962
        %v1964 = vpop.f32.mrb[0].mxu0
        %v1965 = vpop.f32.mrb[0].mxu0
        %v1966 = vpop.f32.mrb[0].mxu0
        %1967 = vdwg.mxu0
        %1968 = vrot.lane.b32.xlu0 %v912, 72
        %v1969 = vpop.permute.xlu0 %1968
        %1971 = vxpose.xlu0.b32.start [1/16] %v1969, 128
        %1972 = vxpose.xlu0.b32.cont [2/16] 0.0, 128
        %1973 = vxpose.xlu0.b32.cont [3/16] 0.0, 128
        %1974 = vxpose.xlu0.b32.cont [4/16] 0.0, 128
        %1975 = vxpose.xlu0.b32.cont [5/16] 0.0, 128
        %1976 = vxpose.xlu0.b32.cont [6/16] 0.0, 128
        %1977 = vxpose.xlu0.b32.cont [7/16] 0.0, 128
        %1978 = vxpose.xlu0.b32.cont [8/16] 0.0, 128
        %1979 = vxpose.xlu0.b32.cont [9/16] 0.0, 128
        %1980 = vxpose.xlu0.b32.cont [10/16] 0.0, 128
        %1981 = vxpose.xlu0.b32.cont [11/16] 0.0, 128
        %1982 = vxpose.xlu0.b32.cont [12/16] 0.0, 128
        %1983 = vxpose.xlu0.b32.cont [13/16] 0.0, 128
        %1984 = vxpose.xlu0.b32.cont [14/16] 0.0, 128
        %1985 = vxpose.xlu0.b32.cont [15/16] 0.0, 128
        %1986 = vxpose.xlu0.b32.end [16/16] 0.0, 128
        %v1987 = vpop.trf.xlu0
        %v1988 = vpop.trf.xlu0
        %v1989 = vpop.trf.xlu0
        %v1990 = vpop.trf.xlu0
        %v1991 = vpop.trf.xlu0
        %v1992 = vpop.trf.xlu0
        %v1993 = vpop.trf.xlu0
        %v1994 = vpop.trf.xlu0
        %v1995 = vpop.trf.xlu0
        %v1996 = vpop.trf.xlu0
        %v1997 = vpop.trf.xlu0
        %v1998 = vpop.trf.xlu0
        %v1999 = vpop.trf.xlu0
        %v2000 = vpop.trf.xlu0
        %v2001 = vpop.trf.xlu0
        %v2002 = vpop.trf.xlu0
        %v2003 = vpack.c.bf16 %v1987, %v1987
        %2004 = vrot.lane.b32.xlu0 %v1525, 104
        %v2005 = vpop.permute.xlu0 %2004
        %v2007 = vsel %vm954, %v2005, 0
        %v2010 = vsel %vm958, %v2003, 0
        %2012 = vmatprep.subr.bf16.mxu0 0
        %2013 = vmatpush1.bf16.msra.mxu0 %v2010
        %2014 = vmatprep.subr.bf16.mxu0 0
        %2015 = vmatpush1.bf16.msra.mxu0 0
        %2016 = vmatprep.subr.bf16.mxu0 0
        %2017 = vmatpush1.bf16.msra.mxu0 0
        %2018 = vmatprep.subr.bf16.mxu0 0
        %2019 = vmatpush1.bf16.msra.mxu0 0
        %2020 = vmatprep.subr.bf16.mxu0 0
        %2021 = vmatpush1.bf16.msra.mxu0 0
        %2022 = vmatprep.subr.bf16.mxu0 0
        %2023 = vmatpush1.bf16.msra.mxu0 0
        %2024 = vmatprep.subr.bf16.mxu0 0
        %2025 = vmatpush1.bf16.msra.mxu0 0
        %2026 = vmatprep.subr.bf16.mxu0 0
        %2027 = vmatpush1.bf16.msra.mxu0 0
        %2028 = vmatprep.subr.bf16.mxu0 0
        %2029 = vmatpush1.bf16.msra.mxu0 0
        %2030 = vmatprep.subr.bf16.mxu0 0
        %2031 = vmatpush1.bf16.msra.mxu0 0
        %2032 = vmatprep.subr.bf16.mxu0 0
        %2033 = vmatpush1.bf16.msra.mxu0 0
        %2034 = vmatprep.subr.bf16.mxu0 0
        %2035 = vmatpush1.bf16.msra.mxu0 0
        %2036 = vmatprep.subr.bf16.mxu0 0
        %2037 = vmatpush1.bf16.msra.mxu0 0
        %2038 = vmatprep.subr.bf16.mxu0 0
        %2039 = vmatpush1.bf16.msra.mxu0 0
        %2040 = vmatprep.subr.bf16.mxu0 0
        %2041 = vmatpush1.bf16.msra.mxu0 0
        %2042 = vmatprep.subr.bf16.mxu0 0
        %2043 = vmatpush1.bf16.msra.mxu0 0
        %2044 = vmatprep.mubr.bf16.mxu0 0
        %2045 = vmatmul.mubr.bf16.gmra.mrb[0].mxu0 %v2007
        %v2046 = vpop.f32.mrb[0].mxu0
        %v2047 = vadd.f32 0.0, %v2046
        %v2048 = vpop.f32.mrb[0].mxu0
        %v2049 = vpop.f32.mrb[0].mxu0
        %v2050 = vpop.f32.mrb[0].mxu0
        %2051 = vdwg.mxu0
        %v2052 = vmul.f32 %v2047, 0.35355338
        %v2053 = vadd.f32 %v2052, %v1613
        %v2054 = vsel %vm954, %v2053, -inf
        %2055 = vmax.xlane.f32.xlu0 %v2054
        %v2056 = vpop.xlane.xlu0 %2055
        %v2057 = vsub.f32 %v2053, %v2056
        %v2058 = vmul.f32 %v2057, 1.442695
        %v2059 = vpow.pop %v2058
        %v2060 = vsel %vm954, %v2059, 0.0
        %2061 = vadd.xlane.f32.xlu0 %v2060
        %v2062 = vpop.xlane.xlu0 %2061
        %v2063 = vrcp.pop %v2062
        %v2064 = vmul.f32 %v2059, %v2063
        %v2065 = vpack.c.bf16 %v2064, %v2064
        %2066 = vrot.lane.b32.xlu0 %v1525, 40
        %v2067 = vpop.permute.xlu0 %2066
        %v2069 = vsel %vm954, %v2065, 0
        %v2072 = vsel %vm958, %v2067, 0
        %2074 = vmatprep.subr.bf16.mxu0 0
        %2075 = vmatpush1.bf16.msra.mxu0 %v2072
        %2076 = vmatprep.subr.bf16.mxu0 0
        %2077 = vmatpush1.bf16.msra.mxu0 0
        %2078 = vmatprep.subr.bf16.mxu0 0
        %2079 = vmatpush1.bf16.msra.mxu0 0
        %2080 = vmatprep.subr.bf16.mxu0 0
        %2081 = vmatpush1.bf16.msra.mxu0 0
        %2082 = vmatprep.subr.bf16.mxu0 0
        %2083 = vmatpush1.bf16.msra.mxu0 0
        %2084 = vmatprep.subr.bf16.mxu0 0
        %2085 = vmatpush1.bf16.msra.mxu0 0
        %2086 = vmatprep.subr.bf16.mxu0 0
        %2087 = vmatpush1.bf16.msra.mxu0 0
        %2088 = vmatprep.subr.bf16.mxu0 0
        %2089 = vmatpush1.bf16.msra.mxu0 0
        %2090 = vmatprep.subr.bf16.mxu0 0
        %2091 = vmatpush1.bf16.msra.mxu0 0
        %2092 = vmatprep.subr.bf16.mxu0 0
        %2093 = vmatpush1.bf16.msra.mxu0 0
        %2094 = vmatprep.subr.bf16.mxu0 0
        %2095 = vmatpush1.bf16.msra.mxu0 0
        %2096 = vmatprep.subr.bf16.mxu0 0
        %2097 = vmatpush1.bf16.msra.mxu0 0
        %2098 = vmatprep.subr.bf16.mxu0 0
        %2099 = vmatpush1.bf16.msra.mxu0 0
        %2100 = vmatprep.subr.bf16.mxu0 0
        %2101 = vmatpush1.bf16.msra.mxu0 0
        %2102 = vmatprep.subr.bf16.mxu0 0
        %2103 = vmatpush1.bf16.msra.mxu0 0
        %2104 = vmatprep.subr.bf16.mxu0 0
        %2105 = vmatpush1.bf16.msra.mxu0 0
        %2106 = vmatprep.mubr.bf16.mxu0 0
        %2107 = vmatmul.mubr.bf16.gmra.mrb[0].mxu0 %v2069
        %v2108 = vpop.f32.mrb[0].mxu0
        %v2109 = vadd.f32 0.0, %v2108
        %v2110 = vpop.f32.mrb[0].mxu0
        %v2111 = vpop.f32.mrb[0].mxu0
        %v2112 = vpop.f32.mrb[0].mxu0
        %2113 = vdwg.mxu0
        %2115 = vrot.lane.b32.xlu0 %v1817, 8
        %v2116 = vpop.permute.xlu0 %2115
        %2119 = vrot.lane.b32.xlu0 %v1963, 16
        %v2120 = vpop.permute.xlu0 %2119
        %2123 = vrot.lane.b32.xlu0 %v2109, 24
        %v2124 = vpop.permute.xlu0 %2123
        %v2126 = vsel %vm954, %v1671, %v2116
        %v2127 = vsel %vm1520, %v2126, %v2120
        %v2128 = vsel %vm1522, %v2127, %v2124
        %v2129 = vld [vmem:[%s759] sm:$0x1]
        %v2130 = vpack.c.bf16 %v2128, %v1523
        %v2131 = vld [vmem:[%s756] sm:$0xf]
        %v2132 = vld [vmem:[%s756 + $0x4] sm:$0xf]
        %v2133 = vld [vmem:[%s756 + $0x8] sm:$0xf]
        %v2134 = vld [vmem:[%s756 + $0xc] sm:$0xf]
        %v2136 = vlaneseq
        %v2137 = vshrl.u32 %v2136, 7
        %v2138 = vsub.s32 0, %v2137
        %v2139 = vrot.slane %v2129, %v2138
        %v2145 = vunpack.c.l.b16 %v2131
        %v2146 = vunpack.c.l.b16 %v2132
        %v2147 = vunpack.c.l.b16 %v2133
        %v2148 = vunpack.c.l.b16 %v2134
        %v2149 = vpack.c.b16 %v2146, %v2145
        %v2150 = vpack.c.b16 %v2148, %v2147
        %v2154 = vsel %vm870, %v2130, 0
        %2156 = vmatprep.subr.bf16.mxu0 0
        %2157 = vmatpush1.bf16.msra.mxu0 %v2149
        %2158 = vmatprep.subr.bf16.mxu0 0
        %2159 = vmatpush1.bf16.msra.mxu0 %v2150
        %2160 = vmatprep.subr.bf16.mxu0 0
        %2161 = vmatpush1.bf16.msra.mxu0 0
        %2162 = vmatprep.subr.bf16.mxu0 0
        %2163 = vmatpush1.bf16.msra.mxu0 0
        %2164 = vmatprep.subr.bf16.mxu0 0
        %2165 = vmatpush1.bf16.msra.mxu0 0
        %2166 = vmatprep.subr.bf16.mxu0 0
        %2167 = vmatpush1.bf16.msra.mxu0 0
        %2168 = vmatprep.subr.bf16.mxu0 0
        %2169 = vmatpush1.bf16.msra.mxu0 0
        %2170 = vmatprep.subr.bf16.mxu0 0
        %2171 = vmatpush1.bf16.msra.mxu0 0
        %2172 = vmatprep.subr.bf16.mxu0 0
        %2173 = vmatpush1.bf16.msra.mxu0 0
        %2174 = vmatprep.subr.bf16.mxu0 0
        %2175 = vmatpush1.bf16.msra.mxu0 0
        %2176 = vmatprep.subr.bf16.mxu0 0
        %2177 = vmatpush1.bf16.msra.mxu0 0
        %2178 = vmatprep.subr.bf16.mxu0 0
        %2179 = vmatpush1.bf16.msra.mxu0 0
        %2180 = vmatprep.subr.bf16.mxu0 0
        %2181 = vmatpush1.bf16.msra.mxu0 0
        %2182 = vmatprep.subr.bf16.mxu0 0
        %2183 = vmatpush1.bf16.msra.mxu0 0
        %2184 = vmatprep.subr.bf16.mxu0 0
        %2185 = vmatpush1.bf16.msra.mxu0 0
        %2186 = vmatprep.subr.bf16.mxu0 0
        %2187 = vmatpush1.bf16.msra.mxu0 0
        %2188 = vmatprep.mubr.bf16.mxu0 0
        %2189 = vmatmul.mubr.bf16.gmra.mrb[0].mxu0 %v2154
        %v2190 = vpop.f32.mrb[0].mxu0
        %v2191 = vadd.f32 %v2139, %v2190
        %v2192 = vpop.f32.mrb[0].mxu0
        %v2193 = vpop.f32.mrb[0].mxu0
        %v2194 = vadd.f32 %v2139, %v2193
        %v2195 = vpop.f32.mrb[0].mxu0
        %2196 = vdwg.mxu0
        %v2197 = vadd.f32 %v2191, %v844
        %v2198 = vadd.f32 %v2194, %v845
        %v2199 = vld [vmem:[%s762] sm:$0x1]
        %v2200 = vld [vmem:[%s765] sm:$0x1]
        %v2201 = vsel %vm870, %v2197, 0.0
        %2202 = vadd.xlane.f32.xlu0 %v2201
        %v2203 = vpop.xlane.xlu0 %2202
        %v2204 = vsel %vm870, %v2198, 0.0
        %2205 = vadd.xlane.f32.xlu0 %v2204
        %v2206 = vpop.xlane.xlu0 %2205
        %v2207 = vrcp.pop 32.0
        %v2208 = vmul.f32 %v2203, %v2207
        %v2209 = vmul.f32 %v2206, %v2207
        %v2210 = vsub.f32 %v2197, %v2208
        %v2211 = vsub.f32 %v2198, %v2209
        %v2212 = vmul.f32 %v2210, %v2210
        %v2213 = vmul.f32 %v2211, %v2211
        %v2214 = vsel %vm870, %v2212, 0.0
        %2215 = vadd.xlane.f32.xlu0 %v2214
        %v2216 = vpop.xlane.xlu0 %2215
        %v2217 = vsel %vm870, %v2213, 0.0
        %2218 = vadd.xlane.f32.xlu0 %v2217
        %v2219 = vpop.xlane.xlu0 %2218
        %v2220 = vmul.f32 %v2216, %v2207
        %v2221 = vmul.f32 %v2219, %v2207
        %v2222 = vadd.f32 %v2220, 1e-05
        %v2223 = vadd.f32 %v2221, 1e-05
        %v2224 = vrsqrt.pop %v2222
        %v2225 = vrsqrt.pop %v2223
        %v2226 = vmul.f32 %v2210, %v2224
        %v2227 = vmul.f32 %v2211, %v2225
        %v2229 = vlaneseq
        %v2230 = vshrl.u32 %v2229, 7
        %v2231 = vsub.s32 0, %v2230
        %v2232 = vrot.slane %v2199, %v2231
        %v2234 = vmul.f32 %v2226, %v2232
        %v2235 = vmul.f32 %v2227, %v2232
        %v2237 = vlaneseq
        %v2238 = vshrl.u32 %v2237, 7
        %v2239 = vsub.s32 0, %v2238
        %v2240 = vrot.slane %v2200, %v2239
        %v2242 = vadd.f32 %v2234, %v2240
        %v2243 = vadd.f32 %v2235, %v2240
        %v2244 = vld [vmem:[%s773] sm:$0x1]
        %v2245 = vpack.c.bf16 %v2243, %v2242
        %v2246 = vld [vmem:[%s770] sm:$0xf]
        %v2247 = vld [vmem:[%s770 + $0x4] sm:$0xf]
        %v2248 = vld [vmem:[%s770 + $0x8] sm:$0xf]
        %v2249 = vld [vmem:[%s770 + $0xc] sm:$0xf]
        %v2251 = vlaneseq
        %v2252 = vshrl.u32 %v2251, 7
        %v2253 = vsub.s32 0, %v2252
        %v2254 = vrot.slane %v2244, %v2253
        %v2260 = vunpack.c.l.b16 %v2246
        %v2261 = vunpack.c.l.b16 %v2247
        %v2262 = vunpack.c.l.b16 %v2248
        %v2263 = vunpack.c.l.b16 %v2249
        %v2264 = vpack.c.b16 %v2261, %v2260
        %v2265 = vpack.c.b16 %v2263, %v2262
        %v2269 = vsel %vm870, %v2245, 0
        %2271 = vmatprep.subr.bf16.mxu0 0
        %2272 = vmatpush1.bf16.msra.mxu0 %v2264
        %2273 = vmatprep.subr.bf16.mxu0 0
        %2274 = vmatpush1.bf16.msra.mxu0 %v2265
        %2275 = vmatprep.subr.bf16.mxu0 0
        %2276 = vmatpush1.bf16.msra.mxu0 0
        %2277 = vmatprep.subr.bf16.mxu0 0
        %2278 = vmatpush1.bf16.msra.mxu0 0
        %2279 = vmatprep.subr.bf16.mxu0 0
        %2280 = vmatpush1.bf16.msra.mxu0 0
        %2281 = vmatprep.subr.bf16.mxu0 0
        %2282 = vmatpush1.bf16.msra.mxu0 0
        %2283 = vmatprep.subr.bf16.mxu0 0
        %2284 = vmatpush1.bf16.msra.mxu0 0
        %2285 = vmatprep.subr.bf16.mxu0 0
        %2286 = vmatpush1.bf16.msra.mxu0 0
        %2287 = vmatprep.subr.bf16.mxu0 0
        %2288 = vmatpush1.bf16.msra.mxu0 0
        %2289 = vmatprep.subr.bf16.mxu0 0
        %2290 = vmatpush1.bf16.msra.mxu0 0
        %2291 = vmatprep.subr.bf16.mxu0 0
        %2292 = vmatpush1.bf16.msra.mxu0 0
        %2293 = vmatprep.subr.bf16.mxu0 0
        %2294 = vmatpush1.bf16.msra.mxu0 0
        %2295 = vmatprep.subr.bf16.mxu0 0
        %2296 = vmatpush1.bf16.msra.mxu0 0
        %2297 = vmatprep.subr.bf16.mxu0 0
        %2298 = vmatpush1.bf16.msra.mxu0 0
        %2299 = vmatprep.subr.bf16.mxu0 0
        %2300 = vmatpush1.bf16.msra.mxu0 0
        %2301 = vmatprep.subr.bf16.mxu0 0
        %2302 = vmatpush1.bf16.msra.mxu0 0
        %2303 = vmatprep.mubr.bf16.mxu0 0
        %2304 = vmatmul.mubr.bf16.gmra.mrb[0].mxu0 %v2269
        %v2305 = vpop.f32.mrb[0].mxu0
        %v2306 = vadd.f32 %v2254, %v2305
        %v2307 = vpop.f32.mrb[0].mxu0
        %v2308 = vpop.f32.mrb[0].mxu0
        %v2309 = vadd.f32 %v2254, %v2308
        %v2310 = vpop.f32.mrb[0].mxu0
        %2311 = vdwg.mxu0
        %v2312 = vmul.f32 %v2306, %v2306
        %v2313 = vmul.f32 %v2309, %v2309
        %v2314 = vmul.f32 %v2306, %v2312
        %v2315 = vmul.f32 %v2309, %v2313
        %v2316 = vmul.f32 %v2314, 0.044715
        %v2317 = vmul.f32 %v2315, 0.044715
        %v2318 = vadd.f32 %v2306, %v2316
        %v2319 = vadd.f32 %v2309, %v2317
        %v2320 = vmul.f32 %v2318, 0.7978846
        %v2321 = vmul.f32 %v2319, 0.7978846
        %v2322 = vtanh.pop %v2320
        %v2323 = vtanh.pop %v2321
        %v2324 = vadd.f32 %v2322, 1.0
        %v2325 = vadd.f32 %v2323, 1.0
        %v2326 = vmul.f32 %v2324, 0.5
        %v2327 = vmul.f32 %v2325, 0.5
        %v2328 = vmul.f32 %v2306, %v2326
        %v2329 = vmul.f32 %v2309, %v2327
        %v2330 = vld [vmem:[%s781] sm:$0x1]
        %v2331 = vpack.c.bf16 %v2329, %v2328
        %v2332 = vld [vmem:[%s778] sm:$0xf]
        %v2333 = vld [vmem:[%s778 + $0x4] sm:$0xf]
        %v2334 = vld [vmem:[%s778 + $0x8] sm:$0xf]
        %v2335 = vld [vmem:[%s778 + $0xc] sm:$0xf]
        %v2336 = vld [vmem:[%s778 + $0x10] sm:$0xf]
        %v2337 = vld [vmem:[%s778 + $0x14] sm:$0xf]
        %v2338 = vld [vmem:[%s778 + $0x18] sm:$0xf]
        %v2339 = vld [vmem:[%s778 + $0x1c] sm:$0xf]
        %v2341 = vlaneseq
        %v2342 = vshrl.u32 %v2341, 7
        %v2343 = vsub.s32 0, %v2342
        %v2344 = vrot.slane %v2330, %v2343
        %v2354 = vunpack.c.l.b16 %v2332
        %v2355 = vunpack.c.l.b16 %v2333
        %v2356 = vunpack.c.l.b16 %v2334
        %v2357 = vunpack.c.l.b16 %v2335
        %v2358 = vunpack.c.l.b16 %v2336
        %v2359 = vunpack.c.l.b16 %v2337
        %v2360 = vunpack.c.l.b16 %v2338
        %v2361 = vunpack.c.l.b16 %v2339
        %v2362 = vpack.c.b16 %v2355, %v2354
        %v2363 = vpack.c.b16 %v2357, %v2356
        %v2364 = vpack.c.b16 %v2359, %v2358
        %v2365 = vpack.c.b16 %v2361, %v2360
        %vm2370 = vcmask 523264
        %v2372 = vsel %vm2370, %v2331, 0
        %2374 = vmatprep.subr.bf16.mxu0 0
        %2375 = vmatpush1.bf16.msra.mxu0 %v2362
        %2376 = vmatprep.subr.bf16.mxu0 0
        %2377 = vmatpush1.bf16.msra.mxu0 %v2363
        %2378 = vmatprep.subr.bf16.mxu0 0
        %2379 = vmatpush1.bf16.msra.mxu0 %v2364
        %2380 = vmatprep.subr.bf16.mxu0 0
        %2381 = vmatpush1.bf16.msra.mxu0 %v2365
        %2382 = vmatprep.subr.bf16.mxu0 0
        %2383 = vmatpush1.bf16.msra.mxu0 0
        %2384 = vmatprep.subr.bf16.mxu0 0
        %2385 = vmatpush1.bf16.msra.mxu0 0
        %2386 = vmatprep.subr.bf16.mxu0 0
        %2387 = vmatpush1.bf16.msra.mxu0 0
        %2388 = vmatprep.subr.bf16.mxu0 0
        %2389 = vmatpush1.bf16.msra.mxu0 0
        %2390 = vmatprep.subr.bf16.mxu0 0
        %2391 = vmatpush1.bf16.msra.mxu0 0
        %2392 = vmatprep.subr.bf16.mxu0 0
        %2393 = vmatpush1.bf16.msra.mxu0 0
        %2394 = vmatprep.subr.bf16.mxu0 0
        %2395 = vmatpush1.bf16.msra.mxu0 0
        %2396 = vmatprep.subr.bf16.mxu0 0
        %2397 = vmatpush1.bf16.msra.mxu0 0
        %2398 = vmatprep.subr.bf16.mxu0 0
        %2399 = vmatpush1.bf16.msra.mxu0 0
        %2400 = vmatprep.subr.bf16.mxu0 0
        %2401 = vmatpush1.bf16.msra.mxu0 0
        %2402 = vmatprep.subr.bf16.mxu0 0
        %2403 = vmatpush1.bf16.msra.mxu0 0
        %2404 = vmatprep.subr.bf16.mxu0 0
        %2405 = vmatpush1.bf16.msra.mxu0 0
        %2406 = vmatprep.mubr.bf16.mxu0 0
        %2407 = vmatmul.mubr.bf16.gmra.mrb[0].mxu0 %v2372
        %v2408 = vpop.f32.mrb[0].mxu0
        %v2409 = vadd.f32 %v2344, %v2408
        %v2410 = vpop.f32.mrb[0].mxu0
        %v2411 = vpop.f32.mrb[0].mxu0
        %v2412 = vadd.f32 %v2344, %v2411
        %v2413 = vpop.f32.mrb[0].mxu0
        %2414 = vdwg.mxu0
        %v2415 = vadd.f32 %v2409, %v2242
        %v2416 = vadd.f32 %v2412, %v2243
        %v2417 = vld [vmem:[%s784] sm:$0x1]
        %v2418 = vld [vmem:[%s787] sm:$0x1]
        %v2419 = vsel %vm870, %v2415, 0.0
        %2420 = vadd.xlane.f32.xlu0 %v2419
        %v2421 = vpop.xlane.xlu0 %2420
        %v2422 = vsel %vm870, %v2416, 0.0
        %2423 = vadd.xlane.f32.xlu0 %v2422
        %v2424 = vpop.xlane.xlu0 %2423
        %v2425 = vmul.f32 %v2421, %v2207
        %v2426 = vmul.f32 %v2424, %v2207
        %v2427 = vsub.f32 %v2415, %v2425
        %v2428 = vsub.f32 %v2416, %v2426
        %v2429 = vmul.f32 %v2427, %v2427
        %v2430 = vmul.f32 %v2428, %v2428
        %v2431 = vsel %vm870, %v2429, 0.0
        %2432 = vadd.xlane.f32.xlu0 %v2431
        %v2433 = vpop.xlane.xlu0 %2432
        %v2434 = vsel %vm870, %v2430, 0.0
        %2435 = vadd.xlane.f32.xlu0 %v2434
        %v2436 = vpop.xlane.xlu0 %2435
        %v2437 = vmul.f32 %v2433, %v2207
        %v2438 = vmul.f32 %v2436, %v2207
        %v2439 = vadd.f32 %v2437, 1e-05
        %v2440 = vadd.f32 %v2438, 1e-05
        %v2441 = vrsqrt.pop %v2439
        %v2442 = vrsqrt.pop %v2440
        %v2443 = vmul.f32 %v2427, %v2441
        %v2444 = vmul.f32 %v2428, %v2442
        %v2446 = vlaneseq
        %v2447 = vshrl.u32 %v2446, 7
        %v2448 = vsub.s32 0, %v2447
        %v2449 = vrot.slane %v2417, %v2448
        %v2451 = vmul.f32 %v2443, %v2449
        %v2452 = vmul.f32 %v2444, %v2449
        %v2454 = vlaneseq
        %v2455 = vshrl.u32 %v2454, 7
        %v2456 = vsub.s32 0, %v2455
        %v2457 = vrot.slane %v2418, %v2456
        %v2459 = vadd.f32 %v2451, %v2457
        %v2460 = vadd.f32 %v2452, %v2457
        %2461 = vst.msk [vmem:[#allocation2] sm:$0xff] %vm870, %v2459
        %2462 = vst.msk [vmem:[#allocation2 + $0x8] sm:$0xff] %vm870, %v2460
        %p2463 = scmp.eq.s32.totalorder %s32, 1
        // Predicated region
        $region105: #{net_forward.1} parent=99 // pred_check
          %p2464 = pneg %p2463
        $region106: #{net_forward.1} parent=99 // pred_check_branch
          %2466 = sbr.rel (%p2464) target = $region108
        $region107: #{net_forward.1} parent=99 // pred_region
          %v2467 = vld [vmem:[#allocation2] sm:$0xff]
          %v2468 = vld [vmem:[#allocation2 + $0x8] sm:$0xff]
          %v2470 = vrot.slane %v2468, 7
          %vm2472 = vcmask 1040384
          %v2473 = vsel %vm2472, %v2467, %v2470
          %v2474 = vld [vmem:[%s17] sm:$0x1]
          %v2475 = vpack.c.bf16 %v2473, %v2473
          %v2476 = vld [vmem:[%s16] sm:$0xf]
          %v2477 = vld [vmem:[%s16 + $0x4] sm:$0xf]
          %v2478 = vld [vmem:[%s16 + $0x8] sm:$0xf]
          %v2479 = vld [vmem:[%s16 + $0xc] sm:$0xf]
          %v2481 = vlaneseq
          %v2482 = vshrl.u32 %v2481, 7
          %v2483 = vsub.s32 0, %v2482
          %v2484 = vrot.slane %v2474, %v2483
          %v2490 = vunpack.c.l.b16 %v2476
          %v2491 = vunpack.c.l.b16 %v2477
          %v2492 = vunpack.c.l.b16 %v2478
          %v2493 = vunpack.c.l.b16 %v2479
          %v2494 = vpack.c.b16 %v2491, %v2490
          %v2495 = vpack.c.b16 %v2493, %v2492
          %v2499 = vsel %vm870, %v2475, 0
          %2501 = vmatprep.subr.bf16.mxu0 0
          %2502 = vmatpush1.bf16.msra.mxu0 %v2494
          %2503 = vmatprep.subr.bf16.mxu0 0
          %2504 = vmatpush1.bf16.msra.mxu0 %v2495
          %2505 = vmatprep.subr.bf16.mxu0 0
          %2506 = vmatpush1.bf16.msra.mxu0 0
          %2507 = vmatprep.subr.bf16.mxu0 0
          %2508 = vmatpush1.bf16.msra.mxu0 0
          %2509 = vmatprep.subr.bf16.mxu0 0
          %2510 = vmatpush1.bf16.msra.mxu0 0
          %2511 = vmatprep.subr.bf16.mxu0 0
          %2512 = vmatpush1.bf16.msra.mxu0 0
          %2513 = vmatprep.subr.bf16.mxu0 0
          %2514 = vmatpush1.bf16.msra.mxu0 0
          %2515 = vmatprep.subr.bf16.mxu0 0
          %2516 = vmatpush1.bf16.msra.mxu0 0
          %2517 = vmatprep.subr.bf16.mxu0 0
          %2518 = vmatpush1.bf16.msra.mxu0 0
          %2519 = vmatprep.subr.bf16.mxu0 0
          %2520 = vmatpush1.bf16.msra.mxu0 0
          %2521 = vmatprep.subr.bf16.mxu0 0
          %2522 = vmatpush1.bf16.msra.mxu0 0
          %2523 = vmatprep.subr.bf16.mxu0 0
          %2524 = vmatpush1.bf16.msra.mxu0 0
          %2525 = vmatprep.subr.bf16.mxu0 0
          %2526 = vmatpush1.bf16.msra.mxu0 0
          %2527 = vmatprep.subr.bf16.mxu0 0
          %2528 = vmatpush1.bf16.msra.mxu0 0
          %2529 = vmatprep.subr.bf16.mxu0 0
          %2530 = vmatpush1.bf16.msra.mxu0 0
          %2531 = vmatprep.subr.bf16.mxu0 0
          %2532 = vmatpush1.bf16.msra.mxu0 0
          %2533 = vmatprep.mubr.bf16.mxu0 0
          %2534 = vmatmul.mubr.bf16.gmra.mrb[0].mxu0 %v2499
          %v2535 = vpop.f32.mrb[0].mxu0
          %v2536 = vadd.f32 %v2484, %v2535
          %v2537 = vpop.f32.mrb[0].mxu0
          %v2538 = vpop.f32.mrb[0].mxu0
          %v2539 = vpop.f32.mrb[0].mxu0
          %2540 = vdwg.mxu0
          %v2541 = vtanh.pop %v2536
          %v2542 = vld [vmem:[%s19] sm:$0x1]
          %v2543 = vpack.c.bf16 %v2541, %v2541
          %v2544 = vld [vmem:[%s18] sm:$0xf]
          %v2545 = vld [vmem:[%s18 + $0x4] sm:$0xf]
          %v2546 = vld [vmem:[%s18 + $0x8] sm:$0xf]
          %v2547 = vld [vmem:[%s18 + $0xc] sm:$0xf]
          %v2549 = vlaneseq
          %v2550 = vshrl.u32 %v2549, 7
          %v2551 = vsub.s32 0, %v2550
          %v2552 = vrot.slane %v2542, %v2551
          %v2558 = vunpack.c.l.b16 %v2544
          %v2559 = vunpack.c.l.b16 %v2545
          %v2560 = vunpack.c.l.b16 %v2546
          %v2561 = vunpack.c.l.b16 %v2547
          %v2562 = vpack.c.b16 %v2559, %v2558
          %v2563 = vpack.c.b16 %v2561, %v2560
          %v2567 = vsel %vm870, %v2543, 0
          %2569 = vmatprep.subr.bf16.mxu0 0
          %2570 = vmatpush1.bf16.msra.mxu0 %v2562
          %2571 = vmatprep.subr.bf16.mxu0 0
          %2572 = vmatpush1.bf16.msra.mxu0 %v2563
          %2573 = vmatprep.subr.bf16.mxu0 0
          %2574 = vmatpush1.bf16.msra.mxu0 0
          %2575 = vmatprep.subr.bf16.mxu0 0
          %2576 = vmatpush1.bf16.msra.mxu0 0
          %2577 = vmatprep.subr.bf16.mxu0 0
          %2578 = vmatpush1.bf16.msra.mxu0 0
          %2579 = vmatprep.subr.bf16.mxu0 0
          %2580 = vmatpush1.bf16.msra.mxu0 0
          %2581 = vmatprep.subr.bf16.mxu0 0
          %2582 = vmatpush1.bf16.msra.mxu0 0
          %2583 = vmatprep.subr.bf16.mxu0 0
          %2584 = vmatpush1.bf16.msra.mxu0 0
          %2585 = vmatprep.subr.bf16.mxu0 0
          %2586 = vmatpush1.bf16.msra.mxu0 0
          %2587 = vmatprep.subr.bf16.mxu0 0
          %2588 = vmatpush1.bf16.msra.mxu0 0
          %2589 = vmatprep.subr.bf16.mxu0 0
          %2590 = vmatpush1.bf16.msra.mxu0 0
          %2591 = vmatprep.subr.bf16.mxu0 0
          %2592 = vmatpush1.bf16.msra.mxu0 0
          %2593 = vmatprep.subr.bf16.mxu0 0
          %2594 = vmatpush1.bf16.msra.mxu0 0
          %2595 = vmatprep.subr.bf16.mxu0 0
          %2596 = vmatpush1.bf16.msra.mxu0 0
          %2597 = vmatprep.subr.bf16.mxu0 0
          %2598 = vmatpush1.bf16.msra.mxu0 0
          %2599 = vmatprep.subr.bf16.mxu0 0
          %2600 = vmatpush1.bf16.msra.mxu0 0
          %2601 = vmatprep.mubr.bf16.mxu0 0
          %2602 = vmatmul.mubr.bf16.gmra.mrb[0].mxu0 %v2567
          %v2603 = vpop.f32.mrb[0].mxu0
          %v2604 = vadd.f32 %v2552, %v2603
          %v2605 = vpop.f32.mrb[0].mxu0
          %v2606 = vpop.f32.mrb[0].mxu0
          %v2607 = vpop.f32.mrb[0].mxu0
          %2608 = vdwg.mxu0
          %2609 = vst [vmem:[#allocation3] sm:$0x3] %v2604
        $region108: #{net_forward.1} parent=99 // pred_fallthru
          _
        // Predicated region
        $region109: #{net_forward.1} parent=99 // pred_check
          %p2610 = pneg %p525
        $region110: #{net_forward.1} parent=99 // pred_check_branch
          %2612 = sbr.rel (%p2610) target = $region112
        $region111: #{net_forward.1} parent=99 // pred_region
          %s2614 = ssub.s32 32, 32
          %2615 = vsyncadd [#allocation4], %s2614
          %s2617 = sshll.u32 [#allocation3], 4
          %s2618 = int_to_ptr.vmem [resolvable:$true] %s2617
          %2620 = dma.vmem_to_hbm [thread:$0]  %s2618, 32, %s20, [#allocation4]
        $region112: #{net_forward.1} parent=99 // pred_fallthru
          _
        // Predicated region
        $region113: #{net_forward.1} parent=99 // pred_check
          %p2621 = pneg %p525
        $region114: #{net_forward.1} parent=99 // pred_check_branch
          %2623 = sbr.rel (%p2621) target = $region116
        $region115: #{net_forward.1} parent=99 // pred_region
          %2624 = dma.done [#allocation4], 32
        $region116: #{net_forward.1} parent=99 // pred_fallthru
          _
      $region100: #{net_forward.1} parent=5 // pred_fallthru
        _
      %p2625 = scmp.le.s32.totalorder 2, %s27
      // Predicated region
      $region117: #{net_forward.1} parent=5 // pred_check
        %p2626 = pneg %p2625
      $region118: #{net_forward.1} parent=5 // pred_check_branch
        %2628 = sbr.rel (%p2626) target = $region120
      $region119: #{net_forward.1} parent=5 // pred_region
        %s2629 = ssub.s32 %s27, 2
      $region120: #{net_forward.1} parent=5 // pred_fallthru
        _
    $region6: #{net_forward.1} parent=1 // loop_footer
      %s31 = sadd.s32 1, %s27
    $region7: #{net_forward.1} parent=1 // loop_footer_branch
      %26 = sbr.rel target = $region3
    $region8: #{net_forward.1} parent=1 // loop_exit
      _
    %2630 = vsyncpa [#allocation4], 1
    %s2631 = scalar_lea.sflag [#allocation4], 1
    %2632 = vsyncpa %s2631, 1

</llo_original>
